<compile_context>
chip_gen: v6e
topology: v6e:2x2x1
jax: 0.10.0
libtpu: 0.0.40
codegen_flags: <defaults>
</compile_context>

<pallas_src>
import functools

import jax
import jax.numpy as jnp
from jax.experimental import pallas as pl
from jax.experimental.pallas import tpu as pltpu

IMG_F = 1024
GRAPH_F = 2048
GENDER_F = 32
GENDER_PAD = 128            # lane-dense gender block (zero-padded)
IN_F = IMG_F + GRAPH_F + GENDER_F  # 3104
HID = 512
OUT = 1
BN_EPS = 1e-5
MAX_TB = 512                # batch tile upper bound


def _round_up(x, m):
    return ((x + m - 1) // m) * m


def _cdiv(a, b):
    return -(-a // b)


def _choose_batch_tiling(B):
    """Pick (TB, n_steps) with minimal padding; >=2 steps for large B (v7x)."""
    n_steps = max(1, _cdiv(B, MAX_TB))
    if B > 128:
        n_steps = max(n_steps, 2)   # keep both v7x TensorCores busy
    tb = _round_up(_cdiv(B, n_steps), 8)
    return tb, n_steps


def ensemble_fc_kernel(img_ref, graph_ref, gen_ref,
                       w1a_ref, w1b_ref, w1c_ref, bias_ref,
                       w2row_ref, b2_ref, res_ref, o_ref):
    # Linear(3104 -> 512) with eval-mode BN folded in; the torch.cat is
    # replaced by three accumulating MXU dots.  Activations arrive in f32 and
    # are cast to bf16 in-register (no extra HBM copy); f32 accumulation.
    h = jnp.dot(img_ref[...].astype(jnp.bfloat16), w1a_ref[...],
                preferred_element_type=jnp.float32)
    h += jnp.dot(graph_ref[...].astype(jnp.bfloat16), w1b_ref[...],
                 preferred_element_type=jnp.float32)
    h += jnp.dot(gen_ref[...].astype(jnp.bfloat16), w1c_ref[...],
                 preferred_element_type=jnp.float32)
    h += bias_ref[...]                       # folded BN + Linear1 bias
    h = jnp.maximum(h, 0.0)                  # ReLU
    # Linear(512 -> 1): VPU multiply + XLU cross-lane sum (no N=1 MXU matmul).
    y = jnp.sum(h * w2row_ref[...], axis=-1, keepdims=True) + b2_ref[0]
    # (fc(cat(...)) + result[0]) / 2
    o_ref[...] = (y + res_ref[...]) * 0.5


def prepare_params(params):
    """One-time fold of eval-mode BatchNorm1d into Linear1; bf16 weights."""
    w1, b1, gamma, beta, run_mean, run_var, w2, b2 = params
    scale = gamma / jnp.sqrt(run_var + BN_EPS)                 # [512]
    shift = beta - run_mean * scale                            # [512]
    w1f = (w1 * scale[None, :]).astype(jnp.bfloat16)           # [3104, 512]
    bias = (b1 * scale + shift).reshape(1, HID).astype(jnp.float32)
    w1a = w1f[:IMG_F]                                          # [1024, 512]
    w1b = w1f[IMG_F:IMG_F + GRAPH_F]                           # [2048, 512]
    w1c = jnp.pad(w1f[IMG_F + GRAPH_F:],                       # [ 128, 512]
                  ((0, GENDER_PAD - GENDER_F), (0, 0)))        # zero rows
    w2row = w2.reshape(1, HID).astype(jnp.float32)             # lane-dense row
    b2s = b2.reshape(OUT).astype(jnp.float32)                  # SMEM scalar
    return w1a, w1b, w1c, bias, w2row, b2s


def ensemble_forward(image_feature, graph_feature, gender, result0, folded):
    """Fused fc head: (Linear+BN+ReLU+Linear applied to [img|graph|gender]
    + result[0]) / 2, as one Pallas call gridded over the batch."""
    w1a, w1b, w1c, bias, w2row, b2s = folded
    B = image_feature.shape[0]

    # Lane-dense gender block (tiny copy: 32 -> 128 f32 per row).
    if gender.shape[1] < GENDER_PAD:
        gender = jnp.pad(gender, ((0, 0), (0, GENDER_PAD - gender.shape[1])))

    TB, n_steps = _choose_batch_tiling(B)
    Bp = TB * n_steps
    if Bp != B:
        # Padding is at most a few rows thanks to the TB choice; padded rows
        # are computed on zeros and sliced off below.
        pad_rows = Bp - B
        pad2 = lambda a: jnp.pad(a, ((0, pad_rows), (0, 0)))
        image_feature = pad2(image_feature)
        graph_feature = pad2(graph_feature)
        gender = pad2(gender)
        result0 = pad2(result0)

    out = pl.pallas_call(
        ensemble_fc_kernel,
        out_shape=jax.ShapeDtypeStruct((Bp, OUT), jnp.float32),
        grid=(n_steps,),
        in_specs=[
            pl.BlockSpec((TB, IMG_F), lambda i: (i, 0)),
            pl.BlockSpec((TB, GRAPH_F), lambda i: (i, 0)),
            pl.BlockSpec((TB, GENDER_PAD), lambda i: (i, 0)),
            pl.BlockSpec((IMG_F, HID), lambda i: (0, 0)),      # weights stay
            pl.BlockSpec((GRAPH_F, HID), lambda i: (0, 0)),    # VMEM-resident
            pl.BlockSpec((GENDER_PAD, HID), lambda i: (0, 0)), # across grid
            pl.BlockSpec((1, HID), lambda i: (0, 0)),          # folded bias
            pl.BlockSpec((1, HID), lambda i: (0, 0)),          # w2 row
            pl.BlockSpec(memory_space=pltpu.MemorySpace.SMEM), # b2 scalar
            pl.BlockSpec((TB, OUT), lambda i: (i, 0)),         # residual
        ],
        out_specs=pl.BlockSpec((TB, OUT), lambda i: (i, 0)),
        compiler_params=pltpu.CompilerParams(
            dimension_semantics=("parallel",),
            vmem_limit_bytes=48 * 1024 * 1024),
    )(image_feature, graph_feature, gender,
      w1a, w1b, w1c, bias, w2row, b2s, result0)
    return out[:B]


def init_params(key):
    """Deterministic init matching PyTorch Linear/BatchNorm1d defaults (f32)."""
    k1, k2, k3, k4 = jax.random.split(key, 4)
    bound1 = 1.0 / jnp.sqrt(IN_F)
    w1 = jax.random.uniform(k1, (IN_F, HID), jnp.float32, -bound1, bound1)
    b1 = jax.random.uniform(k2, (HID,), jnp.float32, -bound1, bound1)
    gamma = jnp.ones((HID,), jnp.float32)
    beta = jnp.zeros((HID,), jnp.float32)
    run_mean = jnp.zeros((HID,), jnp.float32)
    run_var = jnp.ones((HID,), jnp.float32)
    bound2 = 1.0 / jnp.sqrt(HID)
    w2 = jax.random.uniform(k3, (HID, OUT), jnp.float32, -bound2, bound2)
    b2 = jax.random.uniform(k4, (OUT,), jnp.float32, -bound2, bound2)
    return (w1, b1, gamma, beta, run_mean, run_var, w2, b2)


if __name__ == "__main__":
    B = 8
    key = jax.random.PRNGKey(0)
    kp, ki, kg, kgen, kr = jax.random.split(key, 5)

    params = init_params(kp)
    folded = prepare_params(params)   # offline BN fold + bf16 weight cast

    # Synthetic backbone outputs (would come from self.model(image, gender)).
    image_feature = jax.random.normal(ki, (B, IMG_F), jnp.float32)
    graph_feature = jax.random.normal(kg, (B, GRAPH_F), jnp.float32)
    gender_feat = jax.random.normal(kgen, (B, GENDER_F), jnp.float32)
    result0 = jax.random.normal(kr, (B, OUT), jnp.float32)  # result[0]

    fwd = jax.jit(ensemble_forward)
    out = fwd(image_feature, graph_feature, gender_feat, result0, folded)
    out = jax.block_until_ready(out)
    assert out.shape == (B, OUT)

    # --- Reference 1: exact f32 semantics of the original PyTorch module ---
    x = jnp.concatenate([image_feature, graph_feature, gender_feat], axis=1)
    w1, b1, gamma, beta, rm, rv, w2, b2 = params
    h = x @ w1 + b1
    h = (h - rm) / jnp.sqrt(rv + BN_EPS) * gamma + beta
    h = jnp.maximum(h, 0.0)
    ref_f32 = ((h @ w2 + b2) + result0) / 2.0

    # --- Reference 2: same folded bf16 weights / bf16 activations as kernel ---
    w1a, w1b, w1c, bias, w2row, b2s = folded
    xb = x.astype(jnp.bfloat16)
    w1f = jnp.concatenate([w1a, w1b, w1c[:GENDER_F]], axis=0)
    hb = jnp.dot(xb, w1f, preferred_element_type=jnp.float32) + bias
    hb = jnp.maximum(hb, 0.0)
    ref_bf16 = (jnp.sum(hb * w2row, axis=-1, keepdims=True) + b2s
                + result0) / 2.0

    assert jnp.allclose(out, ref_bf16, atol=2e-3, rtol=2e-3)
    assert jnp.allclose(out, ref_f32, atol=2e-2, rtol=2e-2)

    print("KERNEL_OK")
</pallas_src>

<mosaic_0001>
module attributes {stable_mosaic.version = 11 : i64} {
  func.func @ensemble_fc_kernel(%arg0: i32, %arg1: memref<8x1024xf32, #tpu.memory_space<vmem>>, %arg2: memref<8x2048xf32, #tpu.memory_space<vmem>>, %arg3: memref<8x128xf32, #tpu.memory_space<vmem>>, %arg4: memref<1024x512xbf16, #tpu.memory_space<vmem>>, %arg5: memref<2048x512xbf16, #tpu.memory_space<vmem>>, %arg6: memref<128x512xbf16, #tpu.memory_space<vmem>>, %arg7: memref<1x512xf32, #tpu.memory_space<vmem>>, %arg8: memref<1x512xf32, #tpu.memory_space<vmem>>, %arg9: memref<1xf32, #tpu.memory_space<smem>>, %arg10: memref<8x1xf32, #tpu.memory_space<vmem>>, %arg11: memref<8x1xf32, #tpu.memory_space<vmem>>) attributes {dimension_semantics = [#tpu.dimension_semantics<parallel>], iteration_bounds = array<i64: 1>, scalar_prefetch = 0 : i64, scratch_operands = 0 : i64, tpu.core_type = #tpu.core_type<tc>, window_params = [{transform_indices = @transform_0, window_bounds = array<i64: 8, 1024>}, {transform_indices = @transform_1, window_bounds = array<i64: 8, 2048>}, {transform_indices = @transform_2, window_bounds = array<i64: 8, 128>}, {pipeline_mode = #tpu.pipeline_mode<synchronous>, transform_indices = @transform_3, window_bounds = array<i64: 1024, 512>}, {pipeline_mode = #tpu.pipeline_mode<synchronous>, transform_indices = @transform_4, window_bounds = array<i64: 2048, 512>}, {pipeline_mode = #tpu.pipeline_mode<synchronous>, transform_indices = @transform_5, window_bounds = array<i64: 128, 512>}, {pipeline_mode = #tpu.pipeline_mode<synchronous>, transform_indices = @transform_6, window_bounds = array<i64: 1, 512>}, {pipeline_mode = #tpu.pipeline_mode<synchronous>, transform_indices = @transform_7, window_bounds = array<i64: 1, 512>}, {transform_indices = @transform_8, window_bounds = array<i64: 1>}, {transform_indices = @transform_9, window_bounds = array<i64: 8, 1>}, {transform_indices = @transform_10, window_bounds = array<i64: 8, 1>}]} {
    %c0 = arith.constant 0 : index
    %c0_0 = arith.constant 0 : index
    %0 = vector.load %arg1[%c0, %c0_0] : memref<8x1024xf32, #tpu.memory_space<vmem>>, vector<8x1024xf32>
    %1 = arith.truncf %0 : vector<8x1024xf32> to vector<8x1024xbf16>
    %c0_1 = arith.constant 0 : index
    %c0_2 = arith.constant 0 : index
    %2 = vector.load %arg4[%c0_1, %c0_2] : memref<1024x512xbf16, #tpu.memory_space<vmem>>, vector<1024x512xbf16>
    %cst = arith.constant dense<0.000000e+00> : vector<8x512xf32>
    %3 = tpu.matmul %1, %2, %cst {dimension_numbers = #tpu.dot_dimension_numbers<[1], [0], [0], [1], [0, 0, 1, 1], [], []>} : vector<8x1024xbf16>, vector<1024x512xbf16>, vector<8x512xf32> -> vector<8x512xf32>
    %c0_3 = arith.constant 0 : index
    %c0_4 = arith.constant 0 : index
    %4 = vector.load %arg2[%c0_3, %c0_4] : memref<8x2048xf32, #tpu.memory_space<vmem>>, vector<8x2048xf32>
    %5 = arith.truncf %4 : vector<8x2048xf32> to vector<8x2048xbf16>
    %c0_5 = arith.constant 0 : index
    %c0_6 = arith.constant 0 : index
    %6 = vector.load %arg5[%c0_5, %c0_6] : memref<2048x512xbf16, #tpu.memory_space<vmem>>, vector<2048x512xbf16>
    %cst_7 = arith.constant dense<0.000000e+00> : vector<8x512xf32>
    %7 = tpu.matmul %5, %6, %cst_7 {dimension_numbers = #tpu.dot_dimension_numbers<[1], [0], [0], [1], [0, 0, 1, 1], [], []>} : vector<8x2048xbf16>, vector<2048x512xbf16>, vector<8x512xf32> -> vector<8x512xf32>
    %8 = arith.addf %3, %7 : vector<8x512xf32>
    %c0_8 = arith.constant 0 : index
    %c0_9 = arith.constant 0 : index
    %9 = vector.load %arg3[%c0_8, %c0_9] : memref<8x128xf32, #tpu.memory_space<vmem>>, vector<8x128xf32>
    %10 = arith.truncf %9 : vector<8x128xf32> to vector<8x128xbf16>
    %c0_10 = arith.constant 0 : index
    %c0_11 = arith.constant 0 : index
    %11 = vector.load %arg6[%c0_10, %c0_11] : memref<128x512xbf16, #tpu.memory_space<vmem>>, vector<128x512xbf16>
    %cst_12 = arith.constant dense<0.000000e+00> : vector<8x512xf32>
    %12 = tpu.matmul %10, %11, %cst_12 {dimension_numbers = #tpu.dot_dimension_numbers<[1], [0], [0], [1], [0, 0, 1, 1], [], []>} : vector<8x128xbf16>, vector<128x512xbf16>, vector<8x512xf32> -> vector<8x512xf32>
    %13 = arith.addf %8, %12 : vector<8x512xf32>
    %c0_13 = arith.constant 0 : index
    %c0_14 = arith.constant 0 : index
    %14 = vector.load %arg7[%c0_13, %c0_14] : memref<1x512xf32, #tpu.memory_space<vmem>>, vector<1x512xf32>
    %15 = vector.broadcast %14 : vector<1x512xf32> to vector<8x512xf32>
    %16 = arith.addf %13, %15 : vector<8x512xf32>
    %cst_15 = arith.constant 0.000000e+00 : f32
    %17 = vector.broadcast %cst_15 : f32 to vector<8x512xf32>
    %18 = arith.maximumf %16, %17 : vector<8x512xf32>
    %c0_16 = arith.constant 0 : index
    %c0_17 = arith.constant 0 : index
    %19 = vector.load %arg8[%c0_16, %c0_17] : memref<1x512xf32, #tpu.memory_space<vmem>>, vector<1x512xf32>
    %20 = vector.broadcast %19 : vector<1x512xf32> to vector<8x512xf32>
    %21 = arith.mulf %18, %20 : vector<8x512xf32>
    %cst_18 = arith.constant dense<0.000000e+00> : vector<8xf32>
    %22 = vector.multi_reduction <add>, %21, %cst_18 [1] : vector<8x512xf32> to vector<8xf32>
    %23 = vector.shape_cast %22 : vector<8xf32> to vector<8x1xf32>
    %c0_19 = arith.constant 0 : index
    %24 = memref.load %arg9[%c0_19] : memref<1xf32, #tpu.memory_space<smem>>
    %25 = vector.broadcast %24 : f32 to vector<8x1xf32>
    %26 = arith.addf %23, %25 : vector<8x1xf32>
    %c0_20 = arith.constant 0 : index
    %c0_21 = arith.constant 0 : index
    %27 = vector.load %arg10[%c0_20, %c0_21] : memref<8x1xf32, #tpu.memory_space<vmem>>, vector<8x1xf32>
    %28 = arith.addf %26, %27 : vector<8x1xf32>
    %cst_22 = arith.constant 5.000000e-01 : f32
    %29 = vector.broadcast %cst_22 : f32 to vector<8x1xf32>
    %30 = arith.mulf %28, %29 : vector<8x1xf32>
    %c0_23 = arith.constant 0 : index
    %c0_24 = arith.constant 0 : index
    %31 = vector.load %arg11[%c0_23, %c0_24] : memref<8x1xf32, #tpu.memory_space<vmem>>, vector<8x1xf32>
    tpu.vector_store %arg11[%c0_23, %c0_24], %30 {strides = array<i32>} : memref<8x1xf32, #tpu.memory_space<vmem>>, vector<8x1xf32>,
    return
  }
  func.func @transform_0(%arg0: i32) -> (i32, i32) {
    %c0_i32 = arith.constant 0 : i32
    %c0_i32_0 = arith.constant 0 : i32
    return %arg0, %c0_i32 : i32, i32
  }
  func.func @transform_1(%arg0: i32) -> (i32, i32) {
    %c0_i32 = arith.constant 0 : i32
    %c0_i32_0 = arith.constant 0 : i32
    return %arg0, %c0_i32 : i32, i32
  }
  func.func @transform_2(%arg0: i32) -> (i32, i32) {
    %c0_i32 = arith.constant 0 : i32
    %c0_i32_0 = arith.constant 0 : i32
    return %arg0, %c0_i32 : i32, i32
  }
  func.func @transform_3(%arg0: i32) -> (i32, i32) {
    %c0_i32 = arith.constant 0 : i32
    %c0_i32_0 = arith.constant 0 : i32
    %c0_i32_1 = arith.constant 0 : i32
    return %c0_i32, %c0_i32_0 : i32, i32
  }
  func.func @transform_4(%arg0: i32) -> (i32, i32) {
    %c0_i32 = arith.constant 0 : i32
    %c0_i32_0 = arith.constant 0 : i32
    %c0_i32_1 = arith.constant 0 : i32
    return %c0_i32, %c0_i32_0 : i32, i32
  }
  func.func @transform_5(%arg0: i32) -> (i32, i32) {
    %c0_i32 = arith.constant 0 : i32
    %c0_i32_0 = arith.constant 0 : i32
    %c0_i32_1 = arith.constant 0 : i32
    return %c0_i32, %c0_i32_0 : i32, i32
  }
  func.func @transform_6(%arg0: i32) -> (i32, i32) {
    %c0_i32 = arith.constant 0 : i32
    %c0_i32_0 = arith.constant 0 : i32
    %c0_i32_1 = arith.constant 0 : i32
    return %c0_i32, %c0_i32_0 : i32, i32
  }
  func.func @transform_7(%arg0: i32) -> (i32, i32) {
    %c0_i32 = arith.constant 0 : i32
    %c0_i32_0 = arith.constant 0 : i32
    %c0_i32_1 = arith.constant 0 : i32
    return %c0_i32, %c0_i32_0 : i32, i32
  }
  func.func @transform_8(%arg0: i32) -> i32 {
    %c0_i32 = arith.constant 0 : i32
    %c0_i32_0 = arith.constant 0 : i32
    return %c0_i32 : i32
  }
  func.func @transform_9(%arg0: i32) -> (i32, i32) {
    %c0_i32 = arith.constant 0 : i32
    %c0_i32_0 = arith.constant 0 : i32
    return %arg0, %c0_i32 : i32, i32
  }
  func.func @transform_10(%arg0: i32) -> (i32, i32) {
    %c0_i32 = arith.constant 0 : i32
    %c0_i32_0 = arith.constant 0 : i32
    return %arg0, %c0_i32 : i32, i32
  }
}

</mosaic_0001>

<llo_original>
// kernel: ensemble_forward.1
$region0: #{ensemble_forward.1}
  #allocation0 [shape = 'u32[]', space=smem, size = 0x4, offset = 0x4, fixed_abs, tag = 'smem constant byte address 0x4 - core index']
  #allocation1 [shape = 'u32[144,128]{1,0:T(1,128)}', space=vmem, size = 0x12000, scoped, tag = 'internal scratch']
  #allocation2 [shape = 'f32[1]{0:T(128)S(6)}', space=smem, size = 0x200, scoped, tag = 'scoped memory for ensemble_forward.1']
  %s0 = inlined_call_operand.hbm [shape: f32[8,1024], index: 0, kind: input, shape index: {}]
  %s1 = inlined_call_operand.hbm [shape: f32[8,2048], index: 1, kind: input, shape index: {}]
  %s2 = inlined_call_operand.vmem [shape: f32[8,128], index: 2, kind: input, shape index: {}]
  %s3 = inlined_call_operand.hbm [shape: bf16[1024,512], index: 3, kind: input, shape index: {}]
  %s4 = inlined_call_operand.hbm [shape: bf16[2048,512], index: 4, kind: input, shape index: {}]
  %s5 = inlined_call_operand.hbm [shape: bf16[128,512], index: 5, kind: input, shape index: {}]
  %s6 = inlined_call_operand.hbm [shape: f32[1,512], index: 6, kind: input, shape index: {}]
  %s7 = inlined_call_operand.hbm [shape: f32[1,512], index: 7, kind: input, shape index: {}]
  %s8 = inlined_call_operand.<no memory space> [shape: f32[1], index: 8, kind: input, shape index: {}]
  %s9 = inlined_call_operand.vmem [shape: f32[8,1], index: 9, kind: input, shape index: {}]
  %s10 = inlined_call_operand.vmem [shape: f32[8,1], index: 10, kind: output, shape index: {}]
  %s11 = sld [smem:[#allocation0]]
  $region78: #{ensemble_forward.1} parent=0
    _
  %s13 = ssub.s32 1, %s11
  %s14 = scalar_select 0, %s13, %s11
  %15 = sst [smem:[#allocation2]] %s8
  $region1: #{ensemble_forward.1} parent=0
    #allocation3 [shape = 'u8[32768]{0}', space=vmem, size = 0x8000, scoped, tag = 'input window, operand 0, single buffered']
    #allocation4 [shape = 's32[1]{0}', space=sflag, size = 0x4, scoped, tag = 'scoped memory for ensemble_forward.1']
    #allocation5 [shape = 'u8[65536]{0}', space=vmem, size = 0x10000, scoped, tag = 'input window, operand 1, single buffered']
    #allocation6 [shape = 's32[1]{0}', space=sflag, size = 0x4, scoped, tag = 'scoped memory for ensemble_forward.1']
    #allocation7 [shape = 'u8[1048576]{0}', space=vmem, size = 0x100000, scoped, tag = 'input window, operand 3, single buffered']
    #allocation8 [shape = 'u8[2097152]{0}', space=vmem, size = 0x200000, scoped, tag = 'input window, operand 4, single buffered']
    #allocation9 [shape = 's32[1]{0}', space=sflag, size = 0x4, scoped, tag = 'scoped memory for ensemble_forward.1']
    #allocation10 [shape = 'u8[131072]{0}', space=vmem, size = 0x20000, scoped, tag = 'input window, operand 5, single buffered']
    #allocation11 [shape = 'u8[2048]{0}', space=vmem, size = 0x800, scoped, tag = 'input window, operand 6, single buffered']
    #allocation12 [shape = 's32[1]{0}', space=sflag, size = 0x4, scoped, tag = 'scoped memory for ensemble_forward.1']
    #allocation13 [shape = 'u8[2048]{0}', space=vmem, size = 0x800, scoped, tag = 'input window, operand 7, single buffered']
    %16 = vsyncpa [#allocation4], 0
    %17 = vsyncpa [#allocation6], 0
    %18 = vsyncpa [#allocation9], 0
    %19 = vsyncpa [#allocation12], 0
    // Predicated region
    $region2: #{ensemble_forward.1} parent=1 // pred_check
      _
    $region3: #{ensemble_forward.1} parent=1 // pred_check_branch
      %21 = sbr.rel (0) target = $region5
    $region4: #{ensemble_forward.1} parent=1 // pred_region
      %s23 = ssub.s32 1024, 1024
      %24 = vsyncadd [#allocation4], %s23
      %s26 = sshll.u32 [#allocation3], 4
      %s27 = int_to_ptr.vmem [resolvable:$true] %s26
      %29 = dma.hbm_to_vmem [thread:$0]  %s0, 1024, %s27, [#allocation4]
    $region5: #{ensemble_forward.1} parent=1 // pred_fallthru
      _
    // Predicated region
    $region6: #{ensemble_forward.1} parent=1 // pred_check
      _
    $region7: #{ensemble_forward.1} parent=1 // pred_check_branch
      %31 = sbr.rel (0) target = $region9
    $region8: #{ensemble_forward.1} parent=1 // pred_region
      %s33 = ssub.s32 2048, 2048
      %34 = vsyncadd [#allocation6], %s33
      %s36 = sshll.u32 [#allocation5], 4
      %s37 = int_to_ptr.vmem [resolvable:$true] %s36
      %39 = dma.hbm_to_vmem [thread:$0]  %s1, 2048, %s37, [#allocation6]
    $region9: #{ensemble_forward.1} parent=1 // pred_fallthru
      _
    // Predicated region
    $region10: #{ensemble_forward.1} parent=1 // pred_check
      _
    $region11: #{ensemble_forward.1} parent=1 // pred_check_branch
      %41 = sbr.rel (0) target = $region13
    $region12: #{ensemble_forward.1} parent=1 // pred_region
      _
    $region13: #{ensemble_forward.1} parent=1 // pred_fallthru
      _
    // Predicated region
    $region14: #{ensemble_forward.1} parent=1 // pred_check
      _
    $region15: #{ensemble_forward.1} parent=1 // pred_check_branch
      %43 = sbr.rel (0) target = $region17
    $region16: #{ensemble_forward.1} parent=1 // pred_region
      %s45 = ssub.s32 32768, 32768
      %46 = vsyncadd [#allocation6], %s45
      %s47 = sshll.u32 [#allocation7], 4
      %s48 = int_to_ptr.vmem [resolvable:$true] %s47
      %53 = dma.hbm_to_vmem [thread:$0]  %s3, 32768, %s48, [#allocation6], 256, 256, 16
    $region17: #{ensemble_forward.1} parent=1 // pred_fallthru
      _
    // Predicated region
    $region18: #{ensemble_forward.1} parent=1 // pred_check
      _
    $region19: #{ensemble_forward.1} parent=1 // pred_check_branch
      %55 = sbr.rel (0) target = $region21
    $region20: #{ensemble_forward.1} parent=1 // pred_region
      %s57 = ssub.s32 65536, 65536
      %58 = vsyncadd [#allocation9], %s57
      %s59 = sshll.u32 [#allocation8], 4
      %s60 = int_to_ptr.vmem [resolvable:$true] %s59
      %65 = dma.hbm_to_vmem [thread:$0]  %s4, 65536, %s60, [#allocation9], 256, 256, 16
    $region21: #{ensemble_forward.1} parent=1 // pred_fallthru
      _
    // Predicated region
    $region22: #{ensemble_forward.1} parent=1 // pred_check
      _
    $region23: #{ensemble_forward.1} parent=1 // pred_check_branch
      %67 = sbr.rel (0) target = $region25
    $region24: #{ensemble_forward.1} parent=1 // pred_region
      %s69 = ssub.s32 4096, 4096
      %70 = vsyncadd [#allocation9], %s69
      %s71 = sshll.u32 [#allocation10], 4
      %s72 = int_to_ptr.vmem [resolvable:$true] %s71
      %77 = dma.hbm_to_vmem [thread:$0]  %s5, 4096, %s72, [#allocation9], 256, 256, 16
    $region25: #{ensemble_forward.1} parent=1 // pred_fallthru
      _
    // Predicated region
    $region26: #{ensemble_forward.1} parent=1 // pred_check
      _
    $region27: #{ensemble_forward.1} parent=1 // pred_check_branch
      %79 = sbr.rel (0) target = $region29
    $region28: #{ensemble_forward.1} parent=1 // pred_region
      %s81 = ssub.s32 64, 64
      %82 = vsyncadd [#allocation12], %s81
      %s84 = sshll.u32 [#allocation11], 4
      %s85 = int_to_ptr.vmem [resolvable:$true] %s84
      %87 = dma.hbm_to_vmem [thread:$0]  %s6, 64, %s85, [#allocation12]
    $region29: #{ensemble_forward.1} parent=1 // pred_fallthru
      _
    // Predicated region
    $region30: #{ensemble_forward.1} parent=1 // pred_check
      _
    $region31: #{ensemble_forward.1} parent=1 // pred_check_branch
      %89 = sbr.rel (0) target = $region33
    $region32: #{ensemble_forward.1} parent=1 // pred_region
      %s91 = ssub.s32 64, 64
      %92 = vsyncadd [#allocation12], %s91
      %s94 = sshll.u32 [#allocation13], 4
      %s95 = int_to_ptr.vmem [resolvable:$true] %s94
      %97 = dma.hbm_to_vmem [thread:$0]  %s7, 64, %s95, [#allocation12]
    $region33: #{ensemble_forward.1} parent=1 // pred_fallthru
      _
    // Predicated region
    $region34: #{ensemble_forward.1} parent=1 // pred_check
      _
    $region35: #{ensemble_forward.1} parent=1 // pred_check_branch
      %99 = sbr.rel (0) target = $region37
    $region36: #{ensemble_forward.1} parent=1 // pred_region
      _
    $region37: #{ensemble_forward.1} parent=1 // pred_fallthru
      _
    // Predicated region
    $region38: #{ensemble_forward.1} parent=1 // pred_check
      _
    $region39: #{ensemble_forward.1} parent=1 // pred_check_branch
      %101 = sbr.rel (0) target = $region41
    $region40: #{ensemble_forward.1} parent=1 // pred_region
      _
    $region41: #{ensemble_forward.1} parent=1 // pred_fallthru
      _
    // Predicated region
    $region42: #{ensemble_forward.1} parent=1 // pred_check
      _
    $region43: #{ensemble_forward.1} parent=1 // pred_check_branch
      %103 = sbr.rel (0) target = $region45
    $region44: #{ensemble_forward.1} parent=1 // pred_region
      %104 = dma.done [#allocation4], 1024
    $region45: #{ensemble_forward.1} parent=1 // pred_fallthru
      _
    // Predicated region
    $region46: #{ensemble_forward.1} parent=1 // pred_check
      _
    $region47: #{ensemble_forward.1} parent=1 // pred_check_branch
      %106 = sbr.rel (0) target = $region49
    $region48: #{ensemble_forward.1} parent=1 // pred_region
      %107 = dma.done [#allocation6], 2048
    $region49: #{ensemble_forward.1} parent=1 // pred_fallthru
      _
    // Predicated region
    $region50: #{ensemble_forward.1} parent=1 // pred_check
      _
    $region51: #{ensemble_forward.1} parent=1 // pred_check_branch
      %109 = sbr.rel (0) target = $region53
    $region52: #{ensemble_forward.1} parent=1 // pred_region
      %110 = dma.done [#allocation6], 32768
    $region53: #{ensemble_forward.1} parent=1 // pred_fallthru
      _
    // Predicated region
    $region54: #{ensemble_forward.1} parent=1 // pred_check
      _
    $region55: #{ensemble_forward.1} parent=1 // pred_check_branch
      %112 = sbr.rel (0) target = $region57
    $region56: #{ensemble_forward.1} parent=1 // pred_region
      %113 = dma.done [#allocation9], 65536
    $region57: #{ensemble_forward.1} parent=1 // pred_fallthru
      _
    // Predicated region
    $region58: #{ensemble_forward.1} parent=1 // pred_check
      _
    $region59: #{ensemble_forward.1} parent=1 // pred_check_branch
      %115 = sbr.rel (0) target = $region61
    $region60: #{ensemble_forward.1} parent=1 // pred_region
      %116 = dma.done [#allocation9], 4096
    $region61: #{ensemble_forward.1} parent=1 // pred_fallthru
      _
    // Predicated region
    $region62: #{ensemble_forward.1} parent=1 // pred_check
      _
    $region63: #{ensemble_forward.1} parent=1 // pred_check_branch
      %118 = sbr.rel (0) target = $region65
    $region64: #{ensemble_forward.1} parent=1 // pred_region
      %119 = dma.done [#allocation12], 64
    $region65: #{ensemble_forward.1} parent=1 // pred_fallthru
      _
    // Predicated region
    $region66: #{ensemble_forward.1} parent=1 // pred_check
      _
    $region67: #{ensemble_forward.1} parent=1 // pred_check_branch
      %121 = sbr.rel (0) target = $region69
    $region68: #{ensemble_forward.1} parent=1 // pred_region
      %122 = dma.done [#allocation12], 64
    $region69: #{ensemble_forward.1} parent=1 // pred_fallthru
      _
    %v124 = vld [vmem:[#allocation3] sm:$0xff]
    %v125 = vld [vmem:[#allocation3 + $0x8] sm:$0xff]
    %v126 = vld [vmem:[#allocation3 + $0x10] sm:$0xff]
    %v127 = vld [vmem:[#allocation3 + $0x18] sm:$0xff]
    %v128 = vld [vmem:[#allocation3 + $0x20] sm:$0xff]
    %v129 = vld [vmem:[#allocation3 + $0x28] sm:$0xff]
    %v130 = vld [vmem:[#allocation3 + $0x30] sm:$0xff]
    %v131 = vld [vmem:[#allocation3 + $0x38] sm:$0xff]
    %v132 = vpack.c.bf16 %v124, %v124
    %v133 = vpack.c.bf16 %v125, %v125
    %v134 = vpack.c.bf16 %v126, %v126
    %v135 = vpack.c.bf16 %v127, %v127
    %v136 = vpack.c.bf16 %v128, %v128
    %v137 = vpack.c.bf16 %v129, %v129
    %v138 = vpack.c.bf16 %v130, %v130
    %v139 = vpack.c.bf16 %v131, %v131
    %v140 = vld [vmem:[#allocation7] sm:$0xff]
    %v141 = vld [vmem:[#allocation7 + $0x8] sm:$0xff]
    %v142 = vld [vmem:[#allocation7 + $0x10] sm:$0xff]
    %v143 = vld [vmem:[#allocation7 + $0x18] sm:$0xff]
    %v144 = vld [vmem:[#allocation7 + $0x20] sm:$0xff]
    %v145 = vld [vmem:[#allocation7 + $0x28] sm:$0xff]
    %v146 = vld [vmem:[#allocation7 + $0x30] sm:$0xff]
    %v147 = vld [vmem:[#allocation7 + $0x38] sm:$0xff]
    %v148 = vld [vmem:[#allocation7 + $0x40] sm:$0xff]
    %v149 = vld [vmem:[#allocation7 + $0x48] sm:$0xff]
    %v150 = vld [vmem:[#allocation7 + $0x50] sm:$0xff]
    %v151 = vld [vmem:[#allocation7 + $0x58] sm:$0xff]
    %v152 = vld [vmem:[#allocation7 + $0x60] sm:$0xff]
    %v153 = vld [vmem:[#allocation7 + $0x68] sm:$0xff]
    %v154 = vld [vmem:[#allocation7 + $0x70] sm:$0xff]
    %v155 = vld [vmem:[#allocation7 + $0x78] sm:$0xff]
    %v156 = vld [vmem:[#allocation7 + $0x80] sm:$0xff]
    %v157 = vld [vmem:[#allocation7 + $0x88] sm:$0xff]
    %v158 = vld [vmem:[#allocation7 + $0x90] sm:$0xff]
    %v159 = vld [vmem:[#allocation7 + $0x98] sm:$0xff]
    %v160 = vld [vmem:[#allocation7 + $0xa0] sm:$0xff]
    %v161 = vld [vmem:[#allocation7 + $0xa8] sm:$0xff]
    %v162 = vld [vmem:[#allocation7 + $0xb0] sm:$0xff]
    %v163 = vld [vmem:[#allocation7 + $0xb8] sm:$0xff]
    %v164 = vld [vmem:[#allocation7 + $0xc0] sm:$0xff]
    %v165 = vld [vmem:[#allocation7 + $0xc8] sm:$0xff]
    %v166 = vld [vmem:[#allocation7 + $0xd0] sm:$0xff]
    %v167 = vld [vmem:[#allocation7 + $0xd8] sm:$0xff]
    %v168 = vld [vmem:[#allocation7 + $0xe0] sm:$0xff]
    %v169 = vld [vmem:[#allocation7 + $0xe8] sm:$0xff]
    %v170 = vld [vmem:[#allocation7 + $0xf0] sm:$0xff]
    %v171 = vld [vmem:[#allocation7 + $0xf8] sm:$0xff]
    %v172 = vld [vmem:[#allocation7 + $0x100] sm:$0xff]
    %v173 = vld [vmem:[#allocation7 + $0x108] sm:$0xff]
    %v174 = vld [vmem:[#allocation7 + $0x110] sm:$0xff]
    %v175 = vld [vmem:[#allocation7 + $0x118] sm:$0xff]
    %v176 = vld [vmem:[#allocation7 + $0x120] sm:$0xff]
    %v177 = vld [vmem:[#allocation7 + $0x128] sm:$0xff]
    %v178 = vld [vmem:[#allocation7 + $0x130] sm:$0xff]
    %v179 = vld [vmem:[#allocation7 + $0x138] sm:$0xff]
    %v180 = vld [vmem:[#allocation7 + $0x140] sm:$0xff]
    %v181 = vld [vmem:[#allocation7 + $0x148] sm:$0xff]
    %v182 = vld [vmem:[#allocation7 + $0x150] sm:$0xff]
    %v183 = vld [vmem:[#allocation7 + $0x158] sm:$0xff]
    %v184 = vld [vmem:[#allocation7 + $0x160] sm:$0xff]
    %v185 = vld [vmem:[#allocation7 + $0x168] sm:$0xff]
    %v186 = vld [vmem:[#allocation7 + $0x170] sm:$0xff]
    %v187 = vld [vmem:[#allocation7 + $0x178] sm:$0xff]
    %v188 = vld [vmem:[#allocation7 + $0x180] sm:$0xff]
    %v189 = vld [vmem:[#allocation7 + $0x188] sm:$0xff]
    %v190 = vld [vmem:[#allocation7 + $0x190] sm:$0xff]
    %v191 = vld [vmem:[#allocation7 + $0x198] sm:$0xff]
    %v192 = vld [vmem:[#allocation7 + $0x1a0] sm:$0xff]
    %v193 = vld [vmem:[#allocation7 + $0x1a8] sm:$0xff]
    %v194 = vld [vmem:[#allocation7 + $0x1b0] sm:$0xff]
    %v195 = vld [vmem:[#allocation7 + $0x1b8] sm:$0xff]
    %v196 = vld [vmem:[#allocation7 + $0x1c0] sm:$0xff]
    %v197 = vld [vmem:[#allocation7 + $0x1c8] sm:$0xff]
    %v198 = vld [vmem:[#allocation7 + $0x1d0] sm:$0xff]
    %v199 = vld [vmem:[#allocation7 + $0x1d8] sm:$0xff]
    %v200 = vld [vmem:[#allocation7 + $0x1e0] sm:$0xff]
    %v201 = vld [vmem:[#allocation7 + $0x1e8] sm:$0xff]
    %v202 = vld [vmem:[#allocation7 + $0x1f0] sm:$0xff]
    %v203 = vld [vmem:[#allocation7 + $0x1f8] sm:$0xff]
    %v204 = vld [vmem:[#allocation7 + $0x200] sm:$0xff]
    %v205 = vld [vmem:[#allocation7 + $0x208] sm:$0xff]
    %v206 = vld [vmem:[#allocation7 + $0x210] sm:$0xff]
    %v207 = vld [vmem:[#allocation7 + $0x218] sm:$0xff]
    %v208 = vld [vmem:[#allocation7 + $0x220] sm:$0xff]
    %v209 = vld [vmem:[#allocation7 + $0x228] sm:$0xff]
    %v210 = vld [vmem:[#allocation7 + $0x230] sm:$0xff]
    %v211 = vld [vmem:[#allocation7 + $0x238] sm:$0xff]
    %v212 = vld [vmem:[#allocation7 + $0x240] sm:$0xff]
    %v213 = vld [vmem:[#allocation7 + $0x248] sm:$0xff]
    %v214 = vld [vmem:[#allocation7 + $0x250] sm:$0xff]
    %v215 = vld [vmem:[#allocation7 + $0x258] sm:$0xff]
    %v216 = vld [vmem:[#allocation7 + $0x260] sm:$0xff]
    %v217 = vld [vmem:[#allocation7 + $0x268] sm:$0xff]
    %v218 = vld [vmem:[#allocation7 + $0x270] sm:$0xff]
    %v219 = vld [vmem:[#allocation7 + $0x278] sm:$0xff]
    %v220 = vld [vmem:[#allocation7 + $0x280] sm:$0xff]
    %v221 = vld [vmem:[#allocation7 + $0x288] sm:$0xff]
    %v222 = vld [vmem:[#allocation7 + $0x290] sm:$0xff]
    %v223 = vld [vmem:[#allocation7 + $0x298] sm:$0xff]
    %v224 = vld [vmem:[#allocation7 + $0x2a0] sm:$0xff]
    %v225 = vld [vmem:[#allocation7 + $0x2a8] sm:$0xff]
    %v226 = vld [vmem:[#allocation7 + $0x2b0] sm:$0xff]
    %v227 = vld [vmem:[#allocation7 + $0x2b8] sm:$0xff]
    %v228 = vld [vmem:[#allocation7 + $0x2c0] sm:$0xff]
    %v229 = vld [vmem:[#allocation7 + $0x2c8] sm:$0xff]
    %v230 = vld [vmem:[#allocation7 + $0x2d0] sm:$0xff]
    %v231 = vld [vmem:[#allocation7 + $0x2d8] sm:$0xff]
    %v232 = vld [vmem:[#allocation7 + $0x2e0] sm:$0xff]
    %v233 = vld [vmem:[#allocation7 + $0x2e8] sm:$0xff]
    %v234 = vld [vmem:[#allocation7 + $0x2f0] sm:$0xff]
    %v235 = vld [vmem:[#allocation7 + $0x2f8] sm:$0xff]
    %v236 = vld [vmem:[#allocation7 + $0x300] sm:$0xff]
    %v237 = vld [vmem:[#allocation7 + $0x308] sm:$0xff]
    %v238 = vld [vmem:[#allocation7 + $0x310] sm:$0xff]
    %v239 = vld [vmem:[#allocation7 + $0x318] sm:$0xff]
    %v240 = vld [vmem:[#allocation7 + $0x320] sm:$0xff]
    %v241 = vld [vmem:[#allocation7 + $0x328] sm:$0xff]
    %v242 = vld [vmem:[#allocation7 + $0x330] sm:$0xff]
    %v243 = vld [vmem:[#allocation7 + $0x338] sm:$0xff]
    %v244 = vld [vmem:[#allocation7 + $0x340] sm:$0xff]
    %v245 = vld [vmem:[#allocation7 + $0x348] sm:$0xff]
    %v246 = vld [vmem:[#allocation7 + $0x350] sm:$0xff]
    %v247 = vld [vmem:[#allocation7 + $0x358] sm:$0xff]
    %v248 = vld [vmem:[#allocation7 + $0x360] sm:$0xff]
    %v249 = vld [vmem:[#allocation7 + $0x368] sm:$0xff]
    %v250 = vld [vmem:[#allocation7 + $0x370] sm:$0xff]
    %v251 = vld [vmem:[#allocation7 + $0x378] sm:$0xff]
    %v252 = vld [vmem:[#allocation7 + $0x380] sm:$0xff]
    %v253 = vld [vmem:[#allocation7 + $0x388] sm:$0xff]
    %v254 = vld [vmem:[#allocation7 + $0x390] sm:$0xff]
    %v255 = vld [vmem:[#allocation7 + $0x398] sm:$0xff]
    %v256 = vld [vmem:[#allocation7 + $0x3a0] sm:$0xff]
    %v257 = vld [vmem:[#allocation7 + $0x3a8] sm:$0xff]
    %v258 = vld [vmem:[#allocation7 + $0x3b0] sm:$0xff]
    %v259 = vld [vmem:[#allocation7 + $0x3b8] sm:$0xff]
    %v260 = vld [vmem:[#allocation7 + $0x3c0] sm:$0xff]
    %v261 = vld [vmem:[#allocation7 + $0x3c8] sm:$0xff]
    %v262 = vld [vmem:[#allocation7 + $0x3d0] sm:$0xff]
    %v263 = vld [vmem:[#allocation7 + $0x3d8] sm:$0xff]
    %v264 = vld [vmem:[#allocation7 + $0x3e0] sm:$0xff]
    %v265 = vld [vmem:[#allocation7 + $0x3e8] sm:$0xff]
    %v266 = vld [vmem:[#allocation7 + $0x3f0] sm:$0xff]
    %v267 = vld [vmem:[#allocation7 + $0x3f8] sm:$0xff]
    %v268 = vld [vmem:[#allocation7 + $0x400] sm:$0xff]
    %v269 = vld [vmem:[#allocation7 + $0x408] sm:$0xff]
    %v270 = vld [vmem:[#allocation7 + $0x410] sm:$0xff]
    %v271 = vld [vmem:[#allocation7 + $0x418] sm:$0xff]
    %v272 = vld [vmem:[#allocation7 + $0x420] sm:$0xff]
    %v273 = vld [vmem:[#allocation7 + $0x428] sm:$0xff]
    %v274 = vld [vmem:[#allocation7 + $0x430] sm:$0xff]
    %v275 = vld [vmem:[#allocation7 + $0x438] sm:$0xff]
    %v276 = vld [vmem:[#allocation7 + $0x440] sm:$0xff]
    %v277 = vld [vmem:[#allocation7 + $0x448] sm:$0xff]
    %v278 = vld [vmem:[#allocation7 + $0x450] sm:$0xff]
    %v279 = vld [vmem:[#allocation7 + $0x458] sm:$0xff]
    %v280 = vld [vmem:[#allocation7 + $0x460] sm:$0xff]
    %v281 = vld [vmem:[#allocation7 + $0x468] sm:$0xff]
    %v282 = vld [vmem:[#allocation7 + $0x470] sm:$0xff]
    %v283 = vld [vmem:[#allocation7 + $0x478] sm:$0xff]
    %v284 = vld [vmem:[#allocation7 + $0x480] sm:$0xff]
    %v285 = vld [vmem:[#allocation7 + $0x488] sm:$0xff]
    %v286 = vld [vmem:[#allocation7 + $0x490] sm:$0xff]
    %v287 = vld [vmem:[#allocation7 + $0x498] sm:$0xff]
    %v288 = vld [vmem:[#allocation7 + $0x4a0] sm:$0xff]
    %v289 = vld [vmem:[#allocation7 + $0x4a8] sm:$0xff]
    %v290 = vld [vmem:[#allocation7 + $0x4b0] sm:$0xff]
    %v291 = vld [vmem:[#allocation7 + $0x4b8] sm:$0xff]
    %v292 = vld [vmem:[#allocation7 + $0x4c0] sm:$0xff]
    %v293 = vld [vmem:[#allocation7 + $0x4c8] sm:$0xff]
    %v294 = vld [vmem:[#allocation7 + $0x4d0] sm:$0xff]
    %v295 = vld [vmem:[#allocation7 + $0x4d8] sm:$0xff]
    %v296 = vld [vmem:[#allocation7 + $0x4e0] sm:$0xff]
    %v297 = vld [vmem:[#allocation7 + $0x4e8] sm:$0xff]
    %v298 = vld [vmem:[#allocation7 + $0x4f0] sm:$0xff]
    %v299 = vld [vmem:[#allocation7 + $0x4f8] sm:$0xff]
    %v300 = vld [vmem:[#allocation7 + $0x500] sm:$0xff]
    %v301 = vld [vmem:[#allocation7 + $0x508] sm:$0xff]
    %v302 = vld [vmem:[#allocation7 + $0x510] sm:$0xff]
    %v303 = vld [vmem:[#allocation7 + $0x518] sm:$0xff]
    %v304 = vld [vmem:[#allocation7 + $0x520] sm:$0xff]
    %v305 = vld [vmem:[#allocation7 + $0x528] sm:$0xff]
    %v306 = vld [vmem:[#allocation7 + $0x530] sm:$0xff]
    %v307 = vld [vmem:[#allocation7 + $0x538] sm:$0xff]
    %v308 = vld [vmem:[#allocation7 + $0x540] sm:$0xff]
    %v309 = vld [vmem:[#allocation7 + $0x548] sm:$0xff]
    %v310 = vld [vmem:[#allocation7 + $0x550] sm:$0xff]
    %v311 = vld [vmem:[#allocation7 + $0x558] sm:$0xff]
    %v312 = vld [vmem:[#allocation7 + $0x560] sm:$0xff]
    %v313 = vld [vmem:[#allocation7 + $0x568] sm:$0xff]
    %v314 = vld [vmem:[#allocation7 + $0x570] sm:$0xff]
    %v315 = vld [vmem:[#allocation7 + $0x578] sm:$0xff]
    %v316 = vld [vmem:[#allocation7 + $0x580] sm:$0xff]
    %v317 = vld [vmem:[#allocation7 + $0x588] sm:$0xff]
    %v318 = vld [vmem:[#allocation7 + $0x590] sm:$0xff]
    %v319 = vld [vmem:[#allocation7 + $0x598] sm:$0xff]
    %v320 = vld [vmem:[#allocation7 + $0x5a0] sm:$0xff]
    %v321 = vld [vmem:[#allocation7 + $0x5a8] sm:$0xff]
    %v322 = vld [vmem:[#allocation7 + $0x5b0] sm:$0xff]
    %v323 = vld [vmem:[#allocation7 + $0x5b8] sm:$0xff]
    %v324 = vld [vmem:[#allocation7 + $0x5c0] sm:$0xff]
    %v325 = vld [vmem:[#allocation7 + $0x5c8] sm:$0xff]
    %v326 = vld [vmem:[#allocation7 + $0x5d0] sm:$0xff]
    %v327 = vld [vmem:[#allocation7 + $0x5d8] sm:$0xff]
    %v328 = vld [vmem:[#allocation7 + $0x5e0] sm:$0xff]
    %v329 = vld [vmem:[#allocation7 + $0x5e8] sm:$0xff]
    %v330 = vld [vmem:[#allocation7 + $0x5f0] sm:$0xff]
    %v331 = vld [vmem:[#allocation7 + $0x5f8] sm:$0xff]
    %v332 = vld [vmem:[#allocation7 + $0x600] sm:$0xff]
    %v333 = vld [vmem:[#allocation7 + $0x608] sm:$0xff]
    %v334 = vld [vmem:[#allocation7 + $0x610] sm:$0xff]
    %v335 = vld [vmem:[#allocation7 + $0x618] sm:$0xff]
    %v336 = vld [vmem:[#allocation7 + $0x620] sm:$0xff]
    %v337 = vld [vmem:[#allocation7 + $0x628] sm:$0xff]
    %v338 = vld [vmem:[#allocation7 + $0x630] sm:$0xff]
    %v339 = vld [vmem:[#allocation7 + $0x638] sm:$0xff]
    %v340 = vld [vmem:[#allocation7 + $0x640] sm:$0xff]
    %v341 = vld [vmem:[#allocation7 + $0x648] sm:$0xff]
    %v342 = vld [vmem:[#allocation7 + $0x650] sm:$0xff]
    %v343 = vld [vmem:[#allocation7 + $0x658] sm:$0xff]
    %v344 = vld [vmem:[#allocation7 + $0x660] sm:$0xff]
    %v345 = vld [vmem:[#allocation7 + $0x668] sm:$0xff]
    %v346 = vld [vmem:[#allocation7 + $0x670] sm:$0xff]
    %v347 = vld [vmem:[#allocation7 + $0x678] sm:$0xff]
    %v348 = vld [vmem:[#allocation7 + $0x680] sm:$0xff]
    %v349 = vld [vmem:[#allocation7 + $0x688] sm:$0xff]
    %v350 = vld [vmem:[#allocation7 + $0x690] sm:$0xff]
    %v351 = vld [vmem:[#allocation7 + $0x698] sm:$0xff]
    %v352 = vld [vmem:[#allocation7 + $0x6a0] sm:$0xff]
    %v353 = vld [vmem:[#allocation7 + $0x6a8] sm:$0xff]
    %v354 = vld [vmem:[#allocation7 + $0x6b0] sm:$0xff]
    %v355 = vld [vmem:[#allocation7 + $0x6b8] sm:$0xff]
    %v356 = vld [vmem:[#allocation7 + $0x6c0] sm:$0xff]
    %v357 = vld [vmem:[#allocation7 + $0x6c8] sm:$0xff]
    %v358 = vld [vmem:[#allocation7 + $0x6d0] sm:$0xff]
    %v359 = vld [vmem:[#allocation7 + $0x6d8] sm:$0xff]
    %v360 = vld [vmem:[#allocation7 + $0x6e0] sm:$0xff]
    %v361 = vld [vmem:[#allocation7 + $0x6e8] sm:$0xff]
    %v362 = vld [vmem:[#allocation7 + $0x6f0] sm:$0xff]
    %v363 = vld [vmem:[#allocation7 + $0x6f8] sm:$0xff]
    %v364 = vld [vmem:[#allocation7 + $0x700] sm:$0xff]
    %v365 = vld [vmem:[#allocation7 + $0x708] sm:$0xff]
    %v366 = vld [vmem:[#allocation7 + $0x710] sm:$0xff]
    %v367 = vld [vmem:[#allocation7 + $0x718] sm:$0xff]
    %v368 = vld [vmem:[#allocation7 + $0x720] sm:$0xff]
    %v369 = vld [vmem:[#allocation7 + $0x728] sm:$0xff]
    %v370 = vld [vmem:[#allocation7 + $0x730] sm:$0xff]
    %v371 = vld [vmem:[#allocation7 + $0x738] sm:$0xff]
    %v372 = vld [vmem:[#allocation7 + $0x740] sm:$0xff]
    %v373 = vld [vmem:[#allocation7 + $0x748] sm:$0xff]
    %v374 = vld [vmem:[#allocation7 + $0x750] sm:$0xff]
    %v375 = vld [vmem:[#allocation7 + $0x758] sm:$0xff]
    %v376 = vld [vmem:[#allocation7 + $0x760] sm:$0xff]
    %v377 = vld [vmem:[#allocation7 + $0x768] sm:$0xff]
    %v378 = vld [vmem:[#allocation7 + $0x770] sm:$0xff]
    %v379 = vld [vmem:[#allocation7 + $0x778] sm:$0xff]
    %v380 = vld [vmem:[#allocation7 + $0x780] sm:$0xff]
    %v381 = vld [vmem:[#allocation7 + $0x788] sm:$0xff]
    %v382 = vld [vmem:[#allocation7 + $0x790] sm:$0xff]
    %v383 = vld [vmem:[#allocation7 + $0x798] sm:$0xff]
    %v384 = vld [vmem:[#allocation7 + $0x7a0] sm:$0xff]
    %v385 = vld [vmem:[#allocation7 + $0x7a8] sm:$0xff]
    %v386 = vld [vmem:[#allocation7 + $0x7b0] sm:$0xff]
    %v387 = vld [vmem:[#allocation7 + $0x7b8] sm:$0xff]
    %v388 = vld [vmem:[#allocation7 + $0x7c0] sm:$0xff]
    %v389 = vld [vmem:[#allocation7 + $0x7c8] sm:$0xff]
    %v390 = vld [vmem:[#allocation7 + $0x7d0] sm:$0xff]
    %v391 = vld [vmem:[#allocation7 + $0x7d8] sm:$0xff]
    %v392 = vld [vmem:[#allocation7 + $0x7e0] sm:$0xff]
    %v393 = vld [vmem:[#allocation7 + $0x7e8] sm:$0xff]
    %v394 = vld [vmem:[#allocation7 + $0x7f0] sm:$0xff]
    %v395 = vld [vmem:[#allocation7 + $0x7f8] sm:$0xff]
    %v396 = vld [vmem:[#allocation5] sm:$0xff]
    %v397 = vld [vmem:[#allocation5 + $0x8] sm:$0xff]
    %v398 = vld [vmem:[#allocation5 + $0x10] sm:$0xff]
    %v399 = vld [vmem:[#allocation5 + $0x18] sm:$0xff]
    %v400 = vld [vmem:[#allocation5 + $0x20] sm:$0xff]
    %v401 = vld [vmem:[#allocation5 + $0x28] sm:$0xff]
    %v402 = vld [vmem:[#allocation5 + $0x30] sm:$0xff]
    %v403 = vld [vmem:[#allocation5 + $0x38] sm:$0xff]
    %v404 = vld [vmem:[#allocation5 + $0x40] sm:$0xff]
    %v405 = vld [vmem:[#allocation5 + $0x48] sm:$0xff]
    %v406 = vld [vmem:[#allocation5 + $0x50] sm:$0xff]
    %v407 = vld [vmem:[#allocation5 + $0x58] sm:$0xff]
    %v408 = vld [vmem:[#allocation5 + $0x60] sm:$0xff]
    %v409 = vld [vmem:[#allocation5 + $0x68] sm:$0xff]
    %v410 = vld [vmem:[#allocation5 + $0x70] sm:$0xff]
    %v411 = vld [vmem:[#allocation5 + $0x78] sm:$0xff]
    %v412 = vpack.c.bf16 %v396, %v396
    %v413 = vpack.c.bf16 %v397, %v397
    %v414 = vpack.c.bf16 %v398, %v398
    %v415 = vpack.c.bf16 %v399, %v399
    %v416 = vpack.c.bf16 %v400, %v400
    %v417 = vpack.c.bf16 %v401, %v401
    %v418 = vpack.c.bf16 %v402, %v402
    %v419 = vpack.c.bf16 %v403, %v403
    %v420 = vpack.c.bf16 %v404, %v404
    %v421 = vpack.c.bf16 %v405, %v405
    %v422 = vpack.c.bf16 %v406, %v406
    %v423 = vpack.c.bf16 %v407, %v407
    %v424 = vpack.c.bf16 %v408, %v408
    %v425 = vpack.c.bf16 %v409, %v409
    %v426 = vpack.c.bf16 %v410, %v410
    %v427 = vpack.c.bf16 %v411, %v411
    %v428 = vld [vmem:[#allocation8] sm:$0xff]
    %v429 = vld [vmem:[#allocation8 + $0x8] sm:$0xff]
    %v430 = vld [vmem:[#allocation8 + $0x10] sm:$0xff]
    %v431 = vld [vmem:[#allocation8 + $0x18] sm:$0xff]
    %v432 = vld [vmem:[#allocation8 + $0x20] sm:$0xff]
    %v433 = vld [vmem:[#allocation8 + $0x28] sm:$0xff]
    %v434 = vld [vmem:[#allocation8 + $0x30] sm:$0xff]
    %v435 = vld [vmem:[#allocation8 + $0x38] sm:$0xff]
    %v436 = vld [vmem:[#allocation8 + $0x40] sm:$0xff]
    %v437 = vld [vmem:[#allocation8 + $0x48] sm:$0xff]
    %v438 = vld [vmem:[#allocation8 + $0x50] sm:$0xff]
    %v439 = vld [vmem:[#allocation8 + $0x58] sm:$0xff]
    %v440 = vld [vmem:[#allocation8 + $0x60] sm:$0xff]
    %v441 = vld [vmem:[#allocation8 + $0x68] sm:$0xff]
    %v442 = vld [vmem:[#allocation8 + $0x70] sm:$0xff]
    %v443 = vld [vmem:[#allocation8 + $0x78] sm:$0xff]
    %v444 = vld [vmem:[#allocation8 + $0x80] sm:$0xff]
    %v445 = vld [vmem:[#allocation8 + $0x88] sm:$0xff]
    %v446 = vld [vmem:[#allocation8 + $0x90] sm:$0xff]
    %v447 = vld [vmem:[#allocation8 + $0x98] sm:$0xff]
    %v448 = vld [vmem:[#allocation8 + $0xa0] sm:$0xff]
    %v449 = vld [vmem:[#allocation8 + $0xa8] sm:$0xff]
    %v450 = vld [vmem:[#allocation8 + $0xb0] sm:$0xff]
    %v451 = vld [vmem:[#allocation8 + $0xb8] sm:$0xff]
    %v452 = vld [vmem:[#allocation8 + $0xc0] sm:$0xff]
    %v453 = vld [vmem:[#allocation8 + $0xc8] sm:$0xff]
    %v454 = vld [vmem:[#allocation8 + $0xd0] sm:$0xff]
    %v455 = vld [vmem:[#allocation8 + $0xd8] sm:$0xff]
    %v456 = vld [vmem:[#allocation8 + $0xe0] sm:$0xff]
    %v457 = vld [vmem:[#allocation8 + $0xe8] sm:$0xff]
    %v458 = vld [vmem:[#allocation8 + $0xf0] sm:$0xff]
    %v459 = vld [vmem:[#allocation8 + $0xf8] sm:$0xff]
    %v460 = vld [vmem:[#allocation8 + $0x100] sm:$0xff]
    %v461 = vld [vmem:[#allocation8 + $0x108] sm:$0xff]
    %v462 = vld [vmem:[#allocation8 + $0x110] sm:$0xff]
    %v463 = vld [vmem:[#allocation8 + $0x118] sm:$0xff]
    %v464 = vld [vmem:[#allocation8 + $0x120] sm:$0xff]
    %v465 = vld [vmem:[#allocation8 + $0x128] sm:$0xff]
    %v466 = vld [vmem:[#allocation8 + $0x130] sm:$0xff]
    %v467 = vld [vmem:[#allocation8 + $0x138] sm:$0xff]
    %v468 = vld [vmem:[#allocation8 + $0x140] sm:$0xff]
    %v469 = vld [vmem:[#allocation8 + $0x148] sm:$0xff]
    %v470 = vld [vmem:[#allocation8 + $0x150] sm:$0xff]
    %v471 = vld [vmem:[#allocation8 + $0x158] sm:$0xff]
    %v472 = vld [vmem:[#allocation8 + $0x160] sm:$0xff]
    %v473 = vld [vmem:[#allocation8 + $0x168] sm:$0xff]
    %v474 = vld [vmem:[#allocation8 + $0x170] sm:$0xff]
    %v475 = vld [vmem:[#allocation8 + $0x178] sm:$0xff]
    %v476 = vld [vmem:[#allocation8 + $0x180] sm:$0xff]
    %v477 = vld [vmem:[#allocation8 + $0x188] sm:$0xff]
    %v478 = vld [vmem:[#allocation8 + $0x190] sm:$0xff]
    %v479 = vld [vmem:[#allocation8 + $0x198] sm:$0xff]
    %v480 = vld [vmem:[#allocation8 + $0x1a0] sm:$0xff]
    %v481 = vld [vmem:[#allocation8 + $0x1a8] sm:$0xff]
    %v482 = vld [vmem:[#allocation8 + $0x1b0] sm:$0xff]
    %v483 = vld [vmem:[#allocation8 + $0x1b8] sm:$0xff]
    %v484 = vld [vmem:[#allocation8 + $0x1c0] sm:$0xff]
    %v485 = vld [vmem:[#allocation8 + $0x1c8] sm:$0xff]
    %v486 = vld [vmem:[#allocation8 + $0x1d0] sm:$0xff]
    %v487 = vld [vmem:[#allocation8 + $0x1d8] sm:$0xff]
    %v488 = vld [vmem:[#allocation8 + $0x1e0] sm:$0xff]
    %v489 = vld [vmem:[#allocation8 + $0x1e8] sm:$0xff]
    %v490 = vld [vmem:[#allocation8 + $0x1f0] sm:$0xff]
    %v491 = vld [vmem:[#allocation8 + $0x1f8] sm:$0xff]
    %v492 = vld [vmem:[#allocation8 + $0x200] sm:$0xff]
    %v493 = vld [vmem:[#allocation8 + $0x208] sm:$0xff]
    %v494 = vld [vmem:[#allocation8 + $0x210] sm:$0xff]
    %v495 = vld [vmem:[#allocation8 + $0x218] sm:$0xff]
    %v496 = vld [vmem:[#allocation8 + $0x220] sm:$0xff]
    %v497 = vld [vmem:[#allocation8 + $0x228] sm:$0xff]
    %v498 = vld [vmem:[#allocation8 + $0x230] sm:$0xff]
    %v499 = vld [vmem:[#allocation8 + $0x238] sm:$0xff]
    %v500 = vld [vmem:[#allocation8 + $0x240] sm:$0xff]
    %v501 = vld [vmem:[#allocation8 + $0x248] sm:$0xff]
    %v502 = vld [vmem:[#allocation8 + $0x250] sm:$0xff]
    %v503 = vld [vmem:[#allocation8 + $0x258] sm:$0xff]
    %v504 = vld [vmem:[#allocation8 + $0x260] sm:$0xff]
    %v505 = vld [vmem:[#allocation8 + $0x268] sm:$0xff]
    %v506 = vld [vmem:[#allocation8 + $0x270] sm:$0xff]
    %v507 = vld [vmem:[#allocation8 + $0x278] sm:$0xff]
    %v508 = vld [vmem:[#allocation8 + $0x280] sm:$0xff]
    %v509 = vld [vmem:[#allocation8 + $0x288] sm:$0xff]
    %v510 = vld [vmem:[#allocation8 + $0x290] sm:$0xff]
    %v511 = vld [vmem:[#allocation8 + $0x298] sm:$0xff]
    %v512 = vld [vmem:[#allocation8 + $0x2a0] sm:$0xff]
    %v513 = vld [vmem:[#allocation8 + $0x2a8] sm:$0xff]
    %v514 = vld [vmem:[#allocation8 + $0x2b0] sm:$0xff]
    %v515 = vld [vmem:[#allocation8 + $0x2b8] sm:$0xff]
    %v516 = vld [vmem:[#allocation8 + $0x2c0] sm:$0xff]
    %v517 = vld [vmem:[#allocation8 + $0x2c8] sm:$0xff]
    %v518 = vld [vmem:[#allocation8 + $0x2d0] sm:$0xff]
    %v519 = vld [vmem:[#allocation8 + $0x2d8] sm:$0xff]
    %v520 = vld [vmem:[#allocation8 + $0x2e0] sm:$0xff]
    %v521 = vld [vmem:[#allocation8 + $0x2e8] sm:$0xff]
    %v522 = vld [vmem:[#allocation8 + $0x2f0] sm:$0xff]
    %v523 = vld [vmem:[#allocation8 + $0x2f8] sm:$0xff]
    %v524 = vld [vmem:[#allocation8 + $0x300] sm:$0xff]
    %v525 = vld [vmem:[#allocation8 + $0x308] sm:$0xff]
    %v526 = vld [vmem:[#allocation8 + $0x310] sm:$0xff]
    %v527 = vld [vmem:[#allocation8 + $0x318] sm:$0xff]
    %v528 = vld [vmem:[#allocation8 + $0x320] sm:$0xff]
    %v529 = vld [vmem:[#allocation8 + $0x328] sm:$0xff]
    %v530 = vld [vmem:[#allocation8 + $0x330] sm:$0xff]
    %v531 = vld [vmem:[#allocation8 + $0x338] sm:$0xff]
    %v532 = vld [vmem:[#allocation8 + $0x340] sm:$0xff]
    %v533 = vld [vmem:[#allocation8 + $0x348] sm:$0xff]
    %v534 = vld [vmem:[#allocation8 + $0x350] sm:$0xff]
    %v535 = vld [vmem:[#allocation8 + $0x358] sm:$0xff]
    %v536 = vld [vmem:[#allocation8 + $0x360] sm:$0xff]
    %v537 = vld [vmem:[#allocation8 + $0x368] sm:$0xff]
    %v538 = vld [vmem:[#allocation8 + $0x370] sm:$0xff]
    %v539 = vld [vmem:[#allocation8 + $0x378] sm:$0xff]
    %v540 = vld [vmem:[#allocation8 + $0x380] sm:$0xff]
    %v541 = vld [vmem:[#allocation8 + $0x388] sm:$0xff]
    %v542 = vld [vmem:[#allocation8 + $0x390] sm:$0xff]
    %v543 = vld [vmem:[#allocation8 + $0x398] sm:$0xff]
    %v544 = vld [vmem:[#allocation8 + $0x3a0] sm:$0xff]
    %v545 = vld [vmem:[#allocation8 + $0x3a8] sm:$0xff]
    %v546 = vld [vmem:[#allocation8 + $0x3b0] sm:$0xff]
    %v547 = vld [vmem:[#allocation8 + $0x3b8] sm:$0xff]
    %v548 = vld [vmem:[#allocation8 + $0x3c0] sm:$0xff]
    %v549 = vld [vmem:[#allocation8 + $0x3c8] sm:$0xff]
    %v550 = vld [vmem:[#allocation8 + $0x3d0] sm:$0xff]
    %v551 = vld [vmem:[#allocation8 + $0x3d8] sm:$0xff]
    %v552 = vld [vmem:[#allocation8 + $0x3e0] sm:$0xff]
    %v553 = vld [vmem:[#allocation8 + $0x3e8] sm:$0xff]
    %v554 = vld [vmem:[#allocation8 + $0x3f0] sm:$0xff]
    %v555 = vld [vmem:[#allocation8 + $0x3f8] sm:$0xff]
    %v556 = vld [vmem:[#allocation8 + $0x400] sm:$0xff]
    %v557 = vld [vmem:[#allocation8 + $0x408] sm:$0xff]
    %v558 = vld [vmem:[#allocation8 + $0x410] sm:$0xff]
    %v559 = vld [vmem:[#allocation8 + $0x418] sm:$0xff]
    %v560 = vld [vmem:[#allocation8 + $0x420] sm:$0xff]
    %v561 = vld [vmem:[#allocation8 + $0x428] sm:$0xff]
    %v562 = vld [vmem:[#allocation8 + $0x430] sm:$0xff]
    %v563 = vld [vmem:[#allocation8 + $0x438] sm:$0xff]
    %v564 = vld [vmem:[#allocation8 + $0x440] sm:$0xff]
    %v565 = vld [vmem:[#allocation8 + $0x448] sm:$0xff]
    %v566 = vld [vmem:[#allocation8 + $0x450] sm:$0xff]
    %v567 = vld [vmem:[#allocation8 + $0x458] sm:$0xff]
    %v568 = vld [vmem:[#allocation8 + $0x460] sm:$0xff]
    %v569 = vld [vmem:[#allocation8 + $0x468] sm:$0xff]
    %v570 = vld [vmem:[#allocation8 + $0x470] sm:$0xff]
    %v571 = vld [vmem:[#allocation8 + $0x478] sm:$0xff]
    %v572 = vld [vmem:[#allocation8 + $0x480] sm:$0xff]
    %v573 = vld [vmem:[#allocation8 + $0x488] sm:$0xff]
    %v574 = vld [vmem:[#allocation8 + $0x490] sm:$0xff]
    %v575 = vld [vmem:[#allocation8 + $0x498] sm:$0xff]
    %v576 = vld [vmem:[#allocation8 + $0x4a0] sm:$0xff]
    %v577 = vld [vmem:[#allocation8 + $0x4a8] sm:$0xff]
    %v578 = vld [vmem:[#allocation8 + $0x4b0] sm:$0xff]
    %v579 = vld [vmem:[#allocation8 + $0x4b8] sm:$0xff]
    %v580 = vld [vmem:[#allocation8 + $0x4c0] sm:$0xff]
    %v581 = vld [vmem:[#allocation8 + $0x4c8] sm:$0xff]
    %v582 = vld [vmem:[#allocation8 + $0x4d0] sm:$0xff]
    %v583 = vld [vmem:[#allocation8 + $0x4d8] sm:$0xff]
    %v584 = vld [vmem:[#allocation8 + $0x4e0] sm:$0xff]
    %v585 = vld [vmem:[#allocation8 + $0x4e8] sm:$0xff]
    %v586 = vld [vmem:[#allocation8 + $0x4f0] sm:$0xff]
    %v587 = vld [vmem:[#allocation8 + $0x4f8] sm:$0xff]
    %v588 = vld [vmem:[#allocation8 + $0x500] sm:$0xff]
    %v589 = vld [vmem:[#allocation8 + $0x508] sm:$0xff]
    %v590 = vld [vmem:[#allocation8 + $0x510] sm:$0xff]
    %v591 = vld [vmem:[#allocation8 + $0x518] sm:$0xff]
    %v592 = vld [vmem:[#allocation8 + $0x520] sm:$0xff]
    %v593 = vld [vmem:[#allocation8 + $0x528] sm:$0xff]
    %v594 = vld [vmem:[#allocation8 + $0x530] sm:$0xff]
    %v595 = vld [vmem:[#allocation8 + $0x538] sm:$0xff]
    %v596 = vld [vmem:[#allocation8 + $0x540] sm:$0xff]
    %v597 = vld [vmem:[#allocation8 + $0x548] sm:$0xff]
    %v598 = vld [vmem:[#allocation8 + $0x550] sm:$0xff]
    %v599 = vld [vmem:[#allocation8 + $0x558] sm:$0xff]
    %v600 = vld [vmem:[#allocation8 + $0x560] sm:$0xff]
    %v601 = vld [vmem:[#allocation8 + $0x568] sm:$0xff]
    %v602 = vld [vmem:[#allocation8 + $0x570] sm:$0xff]
    %v603 = vld [vmem:[#allocation8 + $0x578] sm:$0xff]
    %v604 = vld [vmem:[#allocation8 + $0x580] sm:$0xff]
    %v605 = vld [vmem:[#allocation8 + $0x588] sm:$0xff]
    %v606 = vld [vmem:[#allocation8 + $0x590] sm:$0xff]
    %v607 = vld [vmem:[#allocation8 + $0x598] sm:$0xff]
    %v608 = vld [vmem:[#allocation8 + $0x5a0] sm:$0xff]
    %v609 = vld [vmem:[#allocation8 + $0x5a8] sm:$0xff]
    %v610 = vld [vmem:[#allocation8 + $0x5b0] sm:$0xff]
    %v611 = vld [vmem:[#allocation8 + $0x5b8] sm:$0xff]
    %v612 = vld [vmem:[#allocation8 + $0x5c0] sm:$0xff]
    %v613 = vld [vmem:[#allocation8 + $0x5c8] sm:$0xff]
    %v614 = vld [vmem:[#allocation8 + $0x5d0] sm:$0xff]
    %v615 = vld [vmem:[#allocation8 + $0x5d8] sm:$0xff]
    %v616 = vld [vmem:[#allocation8 + $0x5e0] sm:$0xff]
    %v617 = vld [vmem:[#allocation8 + $0x5e8] sm:$0xff]
    %v618 = vld [vmem:[#allocation8 + $0x5f0] sm:$0xff]
    %v619 = vld [vmem:[#allocation8 + $0x5f8] sm:$0xff]
    %v620 = vld [vmem:[#allocation8 + $0x600] sm:$0xff]
    %v621 = vld [vmem:[#allocation8 + $0x608] sm:$0xff]
    %v622 = vld [vmem:[#allocation8 + $0x610] sm:$0xff]
    %v623 = vld [vmem:[#allocation8 + $0x618] sm:$0xff]
    %v624 = vld [vmem:[#allocation8 + $0x620] sm:$0xff]
    %v625 = vld [vmem:[#allocation8 + $0x628] sm:$0xff]
    %v626 = vld [vmem:[#allocation8 + $0x630] sm:$0xff]
    %v627 = vld [vmem:[#allocation8 + $0x638] sm:$0xff]
    %v628 = vld [vmem:[#allocation8 + $0x640] sm:$0xff]
    %v629 = vld [vmem:[#allocation8 + $0x648] sm:$0xff]
    %v630 = vld [vmem:[#allocation8 + $0x650] sm:$0xff]
    %v631 = vld [vmem:[#allocation8 + $0x658] sm:$0xff]
    %v632 = vld [vmem:[#allocation8 + $0x660] sm:$0xff]
    %v633 = vld [vmem:[#allocation8 + $0x668] sm:$0xff]
    %v634 = vld [vmem:[#allocation8 + $0x670] sm:$0xff]
    %v635 = vld [vmem:[#allocation8 + $0x678] sm:$0xff]
    %v636 = vld [vmem:[#allocation8 + $0x680] sm:$0xff]
    %v637 = vld [vmem:[#allocation8 + $0x688] sm:$0xff]
    %v638 = vld [vmem:[#allocation8 + $0x690] sm:$0xff]
    %v639 = vld [vmem:[#allocation8 + $0x698] sm:$0xff]
    %v640 = vld [vmem:[#allocation8 + $0x6a0] sm:$0xff]
    %v641 = vld [vmem:[#allocation8 + $0x6a8] sm:$0xff]
    %v642 = vld [vmem:[#allocation8 + $0x6b0] sm:$0xff]
    %v643 = vld [vmem:[#allocation8 + $0x6b8] sm:$0xff]
    %v644 = vld [vmem:[#allocation8 + $0x6c0] sm:$0xff]
    %v645 = vld [vmem:[#allocation8 + $0x6c8] sm:$0xff]
    %v646 = vld [vmem:[#allocation8 + $0x6d0] sm:$0xff]
    %v647 = vld [vmem:[#allocation8 + $0x6d8] sm:$0xff]
    %v648 = vld [vmem:[#allocation8 + $0x6e0] sm:$0xff]
    %v649 = vld [vmem:[#allocation8 + $0x6e8] sm:$0xff]
    %v650 = vld [vmem:[#allocation8 + $0x6f0] sm:$0xff]
    %v651 = vld [vmem:[#allocation8 + $0x6f8] sm:$0xff]
    %v652 = vld [vmem:[#allocation8 + $0x700] sm:$0xff]
    %v653 = vld [vmem:[#allocation8 + $0x708] sm:$0xff]
    %v654 = vld [vmem:[#allocation8 + $0x710] sm:$0xff]
    %v655 = vld [vmem:[#allocation8 + $0x718] sm:$0xff]
    %v656 = vld [vmem:[#allocation8 + $0x720] sm:$0xff]
    %v657 = vld [vmem:[#allocation8 + $0x728] sm:$0xff]
    %v658 = vld [vmem:[#allocation8 + $0x730] sm:$0xff]
    %v659 = vld [vmem:[#allocation8 + $0x738] sm:$0xff]
    %v660 = vld [vmem:[#allocation8 + $0x740] sm:$0xff]
    %v661 = vld [vmem:[#allocation8 + $0x748] sm:$0xff]
    %v662 = vld [vmem:[#allocation8 + $0x750] sm:$0xff]
    %v663 = vld [vmem:[#allocation8 + $0x758] sm:$0xff]
    %v664 = vld [vmem:[#allocation8 + $0x760] sm:$0xff]
    %v665 = vld [vmem:[#allocation8 + $0x768] sm:$0xff]
    %v666 = vld [vmem:[#allocation8 + $0x770] sm:$0xff]
    %v667 = vld [vmem:[#allocation8 + $0x778] sm:$0xff]
    %v668 = vld [vmem:[#allocation8 + $0x780] sm:$0xff]
    %v669 = vld [vmem:[#allocation8 + $0x788] sm:$0xff]
    %v670 = vld [vmem:[#allocation8 + $0x790] sm:$0xff]
    %v671 = vld [vmem:[#allocation8 + $0x798] sm:$0xff]
    %v672 = vld [vmem:[#allocation8 + $0x7a0] sm:$0xff]
    %v673 = vld [vmem:[#allocation8 + $0x7a8] sm:$0xff]
    %v674 = vld [vmem:[#allocation8 + $0x7b0] sm:$0xff]
    %v675 = vld [vmem:[#allocation8 + $0x7b8] sm:$0xff]
    %v676 = vld [vmem:[#allocation8 + $0x7c0] sm:$0xff]
    %v677 = vld [vmem:[#allocation8 + $0x7c8] sm:$0xff]
    %v678 = vld [vmem:[#allocation8 + $0x7d0] sm:$0xff]
    %v679 = vld [vmem:[#allocation8 + $0x7d8] sm:$0xff]
    %v680 = vld [vmem:[#allocation8 + $0x7e0] sm:$0xff]
    %v681 = vld [vmem:[#allocation8 + $0x7e8] sm:$0xff]
    %v682 = vld [vmem:[#allocation8 + $0x7f0] sm:$0xff]
    %v683 = vld [vmem:[#allocation8 + $0x7f8] sm:$0xff]
    %v684 = vld [vmem:[#allocation8 + $0x800] sm:$0xff]
    %v685 = vld [vmem:[#allocation8 + $0x808] sm:$0xff]
    %v686 = vld [vmem:[#allocation8 + $0x810] sm:$0xff]
    %v687 = vld [vmem:[#allocation8 + $0x818] sm:$0xff]
    %v688 = vld [vmem:[#allocation8 + $0x820] sm:$0xff]
    %v689 = vld [vmem:[#allocation8 + $0x828] sm:$0xff]
    %v690 = vld [vmem:[#allocation8 + $0x830] sm:$0xff]
    %v691 = vld [vmem:[#allocation8 + $0x838] sm:$0xff]
    %v692 = vld [vmem:[#allocation8 + $0x840] sm:$0xff]
    %v693 = vld [vmem:[#allocation8 + $0x848] sm:$0xff]
    %v694 = vld [vmem:[#allocation8 + $0x850] sm:$0xff]
    %v695 = vld [vmem:[#allocation8 + $0x858] sm:$0xff]
    %v696 = vld [vmem:[#allocation8 + $0x860] sm:$0xff]
    %v697 = vld [vmem:[#allocation8 + $0x868] sm:$0xff]
    %v698 = vld [vmem:[#allocation8 + $0x870] sm:$0xff]
    %v699 = vld [vmem:[#allocation8 + $0x878] sm:$0xff]
    %v700 = vld [vmem:[#allocation8 + $0x880] sm:$0xff]
    %v701 = vld [vmem:[#allocation8 + $0x888] sm:$0xff]
    %v702 = vld [vmem:[#allocation8 + $0x890] sm:$0xff]
    %v703 = vld [vmem:[#allocation8 + $0x898] sm:$0xff]
    %v704 = vld [vmem:[#allocation8 + $0x8a0] sm:$0xff]
    %v705 = vld [vmem:[#allocation8 + $0x8a8] sm:$0xff]
    %v706 = vld [vmem:[#allocation8 + $0x8b0] sm:$0xff]
    %v707 = vld [vmem:[#allocation8 + $0x8b8] sm:$0xff]
    %v708 = vld [vmem:[#allocation8 + $0x8c0] sm:$0xff]
    %v709 = vld [vmem:[#allocation8 + $0x8c8] sm:$0xff]
    %v710 = vld [vmem:[#allocation8 + $0x8d0] sm:$0xff]
    %v711 = vld [vmem:[#allocation8 + $0x8d8] sm:$0xff]
    %v712 = vld [vmem:[#allocation8 + $0x8e0] sm:$0xff]
    %v713 = vld [vmem:[#allocation8 + $0x8e8] sm:$0xff]
    %v714 = vld [vmem:[#allocation8 + $0x8f0] sm:$0xff]
    %v715 = vld [vmem:[#allocation8 + $0x8f8] sm:$0xff]
    %v716 = vld [vmem:[#allocation8 + $0x900] sm:$0xff]
    %v717 = vld [vmem:[#allocation8 + $0x908] sm:$0xff]
    %v718 = vld [vmem:[#allocation8 + $0x910] sm:$0xff]
    %v719 = vld [vmem:[#allocation8 + $0x918] sm:$0xff]
    %v720 = vld [vmem:[#allocation8 + $0x920] sm:$0xff]
    %v721 = vld [vmem:[#allocation8 + $0x928] sm:$0xff]
    %v722 = vld [vmem:[#allocation8 + $0x930] sm:$0xff]
    %v723 = vld [vmem:[#allocation8 + $0x938] sm:$0xff]
    %v724 = vld [vmem:[#allocation8 + $0x940] sm:$0xff]
    %v725 = vld [vmem:[#allocation8 + $0x948] sm:$0xff]
    %v726 = vld [vmem:[#allocation8 + $0x950] sm:$0xff]
    %v727 = vld [vmem:[#allocation8 + $0x958] sm:$0xff]
    %v728 = vld [vmem:[#allocation8 + $0x960] sm:$0xff]
    %v729 = vld [vmem:[#allocation8 + $0x968] sm:$0xff]
    %v730 = vld [vmem:[#allocation8 + $0x970] sm:$0xff]
    %v731 = vld [vmem:[#allocation8 + $0x978] sm:$0xff]
    %v732 = vld [vmem:[#allocation8 + $0x980] sm:$0xff]
    %v733 = vld [vmem:[#allocation8 + $0x988] sm:$0xff]
    %v734 = vld [vmem:[#allocation8 + $0x990] sm:$0xff]
    %v735 = vld [vmem:[#allocation8 + $0x998] sm:$0xff]
    %v736 = vld [vmem:[#allocation8 + $0x9a0] sm:$0xff]
    %v737 = vld [vmem:[#allocation8 + $0x9a8] sm:$0xff]
    %v738 = vld [vmem:[#allocation8 + $0x9b0] sm:$0xff]
    %v739 = vld [vmem:[#allocation8 + $0x9b8] sm:$0xff]
    %v740 = vld [vmem:[#allocation8 + $0x9c0] sm:$0xff]
    %v741 = vld [vmem:[#allocation8 + $0x9c8] sm:$0xff]
    %v742 = vld [vmem:[#allocation8 + $0x9d0] sm:$0xff]
    %v743 = vld [vmem:[#allocation8 + $0x9d8] sm:$0xff]
    %v744 = vld [vmem:[#allocation8 + $0x9e0] sm:$0xff]
    %v745 = vld [vmem:[#allocation8 + $0x9e8] sm:$0xff]
    %v746 = vld [vmem:[#allocation8 + $0x9f0] sm:$0xff]
    %v747 = vld [vmem:[#allocation8 + $0x9f8] sm:$0xff]
    %v748 = vld [vmem:[#allocation8 + $0xa00] sm:$0xff]
    %v749 = vld [vmem:[#allocation8 + $0xa08] sm:$0xff]
    %v750 = vld [vmem:[#allocation8 + $0xa10] sm:$0xff]
    %v751 = vld [vmem:[#allocation8 + $0xa18] sm:$0xff]
    %v752 = vld [vmem:[#allocation8 + $0xa20] sm:$0xff]
    %v753 = vld [vmem:[#allocation8 + $0xa28] sm:$0xff]
    %v754 = vld [vmem:[#allocation8 + $0xa30] sm:$0xff]
    %v755 = vld [vmem:[#allocation8 + $0xa38] sm:$0xff]
    %v756 = vld [vmem:[#allocation8 + $0xa40] sm:$0xff]
    %v757 = vld [vmem:[#allocation8 + $0xa48] sm:$0xff]
    %v758 = vld [vmem:[#allocation8 + $0xa50] sm:$0xff]
    %v759 = vld [vmem:[#allocation8 + $0xa58] sm:$0xff]
    %v760 = vld [vmem:[#allocation8 + $0xa60] sm:$0xff]
    %v761 = vld [vmem:[#allocation8 + $0xa68] sm:$0xff]
    %v762 = vld [vmem:[#allocation8 + $0xa70] sm:$0xff]
    %v763 = vld [vmem:[#allocation8 + $0xa78] sm:$0xff]
    %v764 = vld [vmem:[#allocation8 + $0xa80] sm:$0xff]
    %v765 = vld [vmem:[#allocation8 + $0xa88] sm:$0xff]
    %v766 = vld [vmem:[#allocation8 + $0xa90] sm:$0xff]
    %v767 = vld [vmem:[#allocation8 + $0xa98] sm:$0xff]
    %v768 = vld [vmem:[#allocation8 + $0xaa0] sm:$0xff]
    %v769 = vld [vmem:[#allocation8 + $0xaa8] sm:$0xff]
    %v770 = vld [vmem:[#allocation8 + $0xab0] sm:$0xff]
    %v771 = vld [vmem:[#allocation8 + $0xab8] sm:$0xff]
    %v772 = vld [vmem:[#allocation8 + $0xac0] sm:$0xff]
    %v773 = vld [vmem:[#allocation8 + $0xac8] sm:$0xff]
    %v774 = vld [vmem:[#allocation8 + $0xad0] sm:$0xff]
    %v775 = vld [vmem:[#allocation8 + $0xad8] sm:$0xff]
    %v776 = vld [vmem:[#allocation8 + $0xae0] sm:$0xff]
    %v777 = vld [vmem:[#allocation8 + $0xae8] sm:$0xff]
    %v778 = vld [vmem:[#allocation8 + $0xaf0] sm:$0xff]
    %v779 = vld [vmem:[#allocation8 + $0xaf8] sm:$0xff]
    %v780 = vld [vmem:[#allocation8 + $0xb00] sm:$0xff]
    %v781 = vld [vmem:[#allocation8 + $0xb08] sm:$0xff]
    %v782 = vld [vmem:[#allocation8 + $0xb10] sm:$0xff]
    %v783 = vld [vmem:[#allocation8 + $0xb18] sm:$0xff]
    %v784 = vld [vmem:[#allocation8 + $0xb20] sm:$0xff]
    %v785 = vld [vmem:[#allocation8 + $0xb28] sm:$0xff]
    %v786 = vld [vmem:[#allocation8 + $0xb30] sm:$0xff]
    %v787 = vld [vmem:[#allocation8 + $0xb38] sm:$0xff]
    %v788 = vld [vmem:[#allocation8 + $0xb40] sm:$0xff]
    %v789 = vld [vmem:[#allocation8 + $0xb48] sm:$0xff]
    %v790 = vld [vmem:[#allocation8 + $0xb50] sm:$0xff]
    %v791 = vld [vmem:[#allocation8 + $0xb58] sm:$0xff]
    %v792 = vld [vmem:[#allocation8 + $0xb60] sm:$0xff]
    %v793 = vld [vmem:[#allocation8 + $0xb68] sm:$0xff]
    %v794 = vld [vmem:[#allocation8 + $0xb70] sm:$0xff]
    %v795 = vld [vmem:[#allocation8 + $0xb78] sm:$0xff]
    %v796 = vld [vmem:[#allocation8 + $0xb80] sm:$0xff]
    %v797 = vld [vmem:[#allocation8 + $0xb88] sm:$0xff]
    %v798 = vld [vmem:[#allocation8 + $0xb90] sm:$0xff]
    %v799 = vld [vmem:[#allocation8 + $0xb98] sm:$0xff]
    %v800 = vld [vmem:[#allocation8 + $0xba0] sm:$0xff]
    %v801 = vld [vmem:[#allocation8 + $0xba8] sm:$0xff]
    %v802 = vld [vmem:[#allocation8 + $0xbb0] sm:$0xff]
    %v803 = vld [vmem:[#allocation8 + $0xbb8] sm:$0xff]
    %v804 = vld [vmem:[#allocation8 + $0xbc0] sm:$0xff]
    %v805 = vld [vmem:[#allocation8 + $0xbc8] sm:$0xff]
    %v806 = vld [vmem:[#allocation8 + $0xbd0] sm:$0xff]
    %v807 = vld [vmem:[#allocation8 + $0xbd8] sm:$0xff]
    %v808 = vld [vmem:[#allocation8 + $0xbe0] sm:$0xff]
    %v809 = vld [vmem:[#allocation8 + $0xbe8] sm:$0xff]
    %v810 = vld [vmem:[#allocation8 + $0xbf0] sm:$0xff]
    %v811 = vld [vmem:[#allocation8 + $0xbf8] sm:$0xff]
    %v812 = vld [vmem:[#allocation8 + $0xc00] sm:$0xff]
    %v813 = vld [vmem:[#allocation8 + $0xc08] sm:$0xff]
    %v814 = vld [vmem:[#allocation8 + $0xc10] sm:$0xff]
    %v815 = vld [vmem:[#allocation8 + $0xc18] sm:$0xff]
    %v816 = vld [vmem:[#allocation8 + $0xc20] sm:$0xff]
    %v817 = vld [vmem:[#allocation8 + $0xc28] sm:$0xff]
    %v818 = vld [vmem:[#allocation8 + $0xc30] sm:$0xff]
    %v819 = vld [vmem:[#allocation8 + $0xc38] sm:$0xff]
    %v820 = vld [vmem:[#allocation8 + $0xc40] sm:$0xff]
    %v821 = vld [vmem:[#allocation8 + $0xc48] sm:$0xff]
    %v822 = vld [vmem:[#allocation8 + $0xc50] sm:$0xff]
    %v823 = vld [vmem:[#allocation8 + $0xc58] sm:$0xff]
    %v824 = vld [vmem:[#allocation8 + $0xc60] sm:$0xff]
    %v825 = vld [vmem:[#allocation8 + $0xc68] sm:$0xff]
    %v826 = vld [vmem:[#allocation8 + $0xc70] sm:$0xff]
    %v827 = vld [vmem:[#allocation8 + $0xc78] sm:$0xff]
    %v828 = vld [vmem:[#allocation8 + $0xc80] sm:$0xff]
    %v829 = vld [vmem:[#allocation8 + $0xc88] sm:$0xff]
    %v830 = vld [vmem:[#allocation8 + $0xc90] sm:$0xff]
    %v831 = vld [vmem:[#allocation8 + $0xc98] sm:$0xff]
    %v832 = vld [vmem:[#allocation8 + $0xca0] sm:$0xff]
    %v833 = vld [vmem:[#allocation8 + $0xca8] sm:$0xff]
    %v834 = vld [vmem:[#allocation8 + $0xcb0] sm:$0xff]
    %v835 = vld [vmem:[#allocation8 + $0xcb8] sm:$0xff]
    %v836 = vld [vmem:[#allocation8 + $0xcc0] sm:$0xff]
    %v837 = vld [vmem:[#allocation8 + $0xcc8] sm:$0xff]
    %v838 = vld [vmem:[#allocation8 + $0xcd0] sm:$0xff]
    %v839 = vld [vmem:[#allocation8 + $0xcd8] sm:$0xff]
    %v840 = vld [vmem:[#allocation8 + $0xce0] sm:$0xff]
    %v841 = vld [vmem:[#allocation8 + $0xce8] sm:$0xff]
    %v842 = vld [vmem:[#allocation8 + $0xcf0] sm:$0xff]
    %v843 = vld [vmem:[#allocation8 + $0xcf8] sm:$0xff]
    %v844 = vld [vmem:[#allocation8 + $0xd00] sm:$0xff]
    %v845 = vld [vmem:[#allocation8 + $0xd08] sm:$0xff]
    %v846 = vld [vmem:[#allocation8 + $0xd10] sm:$0xff]
    %v847 = vld [vmem:[#allocation8 + $0xd18] sm:$0xff]
    %v848 = vld [vmem:[#allocation8 + $0xd20] sm:$0xff]
    %v849 = vld [vmem:[#allocation8 + $0xd28] sm:$0xff]
    %v850 = vld [vmem:[#allocation8 + $0xd30] sm:$0xff]
    %v851 = vld [vmem:[#allocation8 + $0xd38] sm:$0xff]
    %v852 = vld [vmem:[#allocation8 + $0xd40] sm:$0xff]
    %v853 = vld [vmem:[#allocation8 + $0xd48] sm:$0xff]
    %v854 = vld [vmem:[#allocation8 + $0xd50] sm:$0xff]
    %v855 = vld [vmem:[#allocation8 + $0xd58] sm:$0xff]
    %v856 = vld [vmem:[#allocation8 + $0xd60] sm:$0xff]
    %v857 = vld [vmem:[#allocation8 + $0xd68] sm:$0xff]
    %v858 = vld [vmem:[#allocation8 + $0xd70] sm:$0xff]
    %v859 = vld [vmem:[#allocation8 + $0xd78] sm:$0xff]
    %v860 = vld [vmem:[#allocation8 + $0xd80] sm:$0xff]
    %v861 = vld [vmem:[#allocation8 + $0xd88] sm:$0xff]
    %v862 = vld [vmem:[#allocation8 + $0xd90] sm:$0xff]
    %v863 = vld [vmem:[#allocation8 + $0xd98] sm:$0xff]
    %v864 = vld [vmem:[#allocation8 + $0xda0] sm:$0xff]
    %v865 = vld [vmem:[#allocation8 + $0xda8] sm:$0xff]
    %v866 = vld [vmem:[#allocation8 + $0xdb0] sm:$0xff]
    %v867 = vld [vmem:[#allocation8 + $0xdb8] sm:$0xff]
    %v868 = vld [vmem:[#allocation8 + $0xdc0] sm:$0xff]
    %v869 = vld [vmem:[#allocation8 + $0xdc8] sm:$0xff]
    %v870 = vld [vmem:[#allocation8 + $0xdd0] sm:$0xff]
    %v871 = vld [vmem:[#allocation8 + $0xdd8] sm:$0xff]
    %v872 = vld [vmem:[#allocation8 + $0xde0] sm:$0xff]
    %v873 = vld [vmem:[#allocation8 + $0xde8] sm:$0xff]
    %v874 = vld [vmem:[#allocation8 + $0xdf0] sm:$0xff]
    %v875 = vld [vmem:[#allocation8 + $0xdf8] sm:$0xff]
    %v876 = vld [vmem:[#allocation8 + $0xe00] sm:$0xff]
    %v877 = vld [vmem:[#allocation8 + $0xe08] sm:$0xff]
    %v878 = vld [vmem:[#allocation8 + $0xe10] sm:$0xff]
    %v879 = vld [vmem:[#allocation8 + $0xe18] sm:$0xff]
    %v880 = vld [vmem:[#allocation8 + $0xe20] sm:$0xff]
    %v881 = vld [vmem:[#allocation8 + $0xe28] sm:$0xff]
    %v882 = vld [vmem:[#allocation8 + $0xe30] sm:$0xff]
    %v883 = vld [vmem:[#allocation8 + $0xe38] sm:$0xff]
    %v884 = vld [vmem:[#allocation8 + $0xe40] sm:$0xff]
    %v885 = vld [vmem:[#allocation8 + $0xe48] sm:$0xff]
    %v886 = vld [vmem:[#allocation8 + $0xe50] sm:$0xff]
    %v887 = vld [vmem:[#allocation8 + $0xe58] sm:$0xff]
    %v888 = vld [vmem:[#allocation8 + $0xe60] sm:$0xff]
    %v889 = vld [vmem:[#allocation8 + $0xe68] sm:$0xff]
    %v890 = vld [vmem:[#allocation8 + $0xe70] sm:$0xff]
    %v891 = vld [vmem:[#allocation8 + $0xe78] sm:$0xff]
    %v892 = vld [vmem:[#allocation8 + $0xe80] sm:$0xff]
    %v893 = vld [vmem:[#allocation8 + $0xe88] sm:$0xff]
    %v894 = vld [vmem:[#allocation8 + $0xe90] sm:$0xff]
    %v895 = vld [vmem:[#allocation8 + $0xe98] sm:$0xff]
    %v896 = vld [vmem:[#allocation8 + $0xea0] sm:$0xff]
    %v897 = vld [vmem:[#allocation8 + $0xea8] sm:$0xff]
    %v898 = vld [vmem:[#allocation8 + $0xeb0] sm:$0xff]
    %v899 = vld [vmem:[#allocation8 + $0xeb8] sm:$0xff]
    %v900 = vld [vmem:[#allocation8 + $0xec0] sm:$0xff]
    %v901 = vld [vmem:[#allocation8 + $0xec8] sm:$0xff]
    %v902 = vld [vmem:[#allocation8 + $0xed0] sm:$0xff]
    %v903 = vld [vmem:[#allocation8 + $0xed8] sm:$0xff]
    %v904 = vld [vmem:[#allocation8 + $0xee0] sm:$0xff]
    %v905 = vld [vmem:[#allocation8 + $0xee8] sm:$0xff]
    %v906 = vld [vmem:[#allocation8 + $0xef0] sm:$0xff]
    %v907 = vld [vmem:[#allocation8 + $0xef8] sm:$0xff]
    %v908 = vld [vmem:[#allocation8 + $0xf00] sm:$0xff]
    %v909 = vld [vmem:[#allocation8 + $0xf08] sm:$0xff]
    %v910 = vld [vmem:[#allocation8 + $0xf10] sm:$0xff]
    %v911 = vld [vmem:[#allocation8 + $0xf18] sm:$0xff]
    %v912 = vld [vmem:[#allocation8 + $0xf20] sm:$0xff]
    %v913 = vld [vmem:[#allocation8 + $0xf28] sm:$0xff]
    %v914 = vld [vmem:[#allocation8 + $0xf30] sm:$0xff]
    %v915 = vld [vmem:[#allocation8 + $0xf38] sm:$0xff]
    %v916 = vld [vmem:[#allocation8 + $0xf40] sm:$0xff]
    %v917 = vld [vmem:[#allocation8 + $0xf48] sm:$0xff]
    %v918 = vld [vmem:[#allocation8 + $0xf50] sm:$0xff]
    %v919 = vld [vmem:[#allocation8 + $0xf58] sm:$0xff]
    %v920 = vld [vmem:[#allocation8 + $0xf60] sm:$0xff]
    %v921 = vld [vmem:[#allocation8 + $0xf68] sm:$0xff]
    %v922 = vld [vmem:[#allocation8 + $0xf70] sm:$0xff]
    %v923 = vld [vmem:[#allocation8 + $0xf78] sm:$0xff]
    %v924 = vld [vmem:[#allocation8 + $0xf80] sm:$0xff]
    %v925 = vld [vmem:[#allocation8 + $0xf88] sm:$0xff]
    %v926 = vld [vmem:[#allocation8 + $0xf90] sm:$0xff]
    %v927 = vld [vmem:[#allocation8 + $0xf98] sm:$0xff]
    %v928 = vld [vmem:[#allocation8 + $0xfa0] sm:$0xff]
    %v929 = vld [vmem:[#allocation8 + $0xfa8] sm:$0xff]
    %v930 = vld [vmem:[#allocation8 + $0xfb0] sm:$0xff]
    %v931 = vld [vmem:[#allocation8 + $0xfb8] sm:$0xff]
    %v932 = vld [vmem:[#allocation8 + $0xfc0] sm:$0xff]
    %v933 = vld [vmem:[#allocation8 + $0xfc8] sm:$0xff]
    %v934 = vld [vmem:[#allocation8 + $0xfd0] sm:$0xff]
    %v935 = vld [vmem:[#allocation8 + $0xfd8] sm:$0xff]
    %v936 = vld [vmem:[#allocation8 + $0xfe0] sm:$0xff]
    %v937 = vld [vmem:[#allocation8 + $0xfe8] sm:$0xff]
    %v938 = vld [vmem:[#allocation8 + $0xff0] sm:$0xff]
    %v939 = vld [vmem:[#allocation8 + $0xff8] sm:$0xff]
    %v1452 = vunpack.c.l.b16 %v428
    %v1453 = vunpack.c.h.b16 %v428
    %v1454 = vunpack.c.l.b16 %v429
    %v1455 = vunpack.c.h.b16 %v429
    %v1456 = vunpack.c.l.b16 %v430
    %v1457 = vunpack.c.h.b16 %v430
    %v1458 = vunpack.c.l.b16 %v431
    %v1459 = vunpack.c.h.b16 %v431
    %v1460 = vunpack.c.l.b16 %v432
    %v1461 = vunpack.c.h.b16 %v432
    %v1462 = vunpack.c.l.b16 %v433
    %v1463 = vunpack.c.h.b16 %v433
    %v1464 = vunpack.c.l.b16 %v434
    %v1465 = vunpack.c.h.b16 %v434
    %v1466 = vunpack.c.l.b16 %v435
    %v1467 = vunpack.c.h.b16 %v435
    %v1468 = vunpack.c.l.b16 %v436
    %v1469 = vunpack.c.h.b16 %v436
    %v1470 = vunpack.c.l.b16 %v437
    %v1471 = vunpack.c.h.b16 %v437
    %v1472 = vunpack.c.l.b16 %v438
    %v1473 = vunpack.c.h.b16 %v438
    %v1474 = vunpack.c.l.b16 %v439
    %v1475 = vunpack.c.h.b16 %v439
    %v1476 = vunpack.c.l.b16 %v440
    %v1477 = vunpack.c.h.b16 %v440
    %v1478 = vunpack.c.l.b16 %v441
    %v1479 = vunpack.c.h.b16 %v441
    %v1480 = vunpack.c.l.b16 %v442
    %v1481 = vunpack.c.h.b16 %v442
    %v1482 = vunpack.c.l.b16 %v443
    %v1483 = vunpack.c.h.b16 %v443
    %v1484 = vunpack.c.l.b16 %v444
    %v1485 = vunpack.c.h.b16 %v444
    %v1486 = vunpack.c.l.b16 %v445
    %v1487 = vunpack.c.h.b16 %v445
    %v1488 = vunpack.c.l.b16 %v446
    %v1489 = vunpack.c.h.b16 %v446
    %v1490 = vunpack.c.l.b16 %v447
    %v1491 = vunpack.c.h.b16 %v447
    %v1492 = vunpack.c.l.b16 %v448
    %v1493 = vunpack.c.h.b16 %v448
    %v1494 = vunpack.c.l.b16 %v449
    %v1495 = vunpack.c.h.b16 %v449
    %v1496 = vunpack.c.l.b16 %v450
    %v1497 = vunpack.c.h.b16 %v450
    %v1498 = vunpack.c.l.b16 %v451
    %v1499 = vunpack.c.h.b16 %v451
    %v1500 = vunpack.c.l.b16 %v452
    %v1501 = vunpack.c.h.b16 %v452
    %v1502 = vunpack.c.l.b16 %v453
    %v1503 = vunpack.c.h.b16 %v453
    %v1504 = vunpack.c.l.b16 %v454
    %v1505 = vunpack.c.h.b16 %v454
    %v1506 = vunpack.c.l.b16 %v455
    %v1507 = vunpack.c.h.b16 %v455
    %v1508 = vunpack.c.l.b16 %v456
    %v1509 = vunpack.c.h.b16 %v456
    %v1510 = vunpack.c.l.b16 %v457
    %v1511 = vunpack.c.h.b16 %v457
    %v1512 = vunpack.c.l.b16 %v458
    %v1513 = vunpack.c.h.b16 %v458
    %v1514 = vunpack.c.l.b16 %v459
    %v1515 = vunpack.c.h.b16 %v459
    %v1516 = vunpack.c.l.b16 %v460
    %v1517 = vunpack.c.h.b16 %v460
    %v1518 = vunpack.c.l.b16 %v461
    %v1519 = vunpack.c.h.b16 %v461
    %v1520 = vunpack.c.l.b16 %v462
    %v1521 = vunpack.c.h.b16 %v462
    %v1522 = vunpack.c.l.b16 %v463
    %v1523 = vunpack.c.h.b16 %v463
    %v1524 = vunpack.c.l.b16 %v464
    %v1525 = vunpack.c.h.b16 %v464
    %v1526 = vunpack.c.l.b16 %v465
    %v1527 = vunpack.c.h.b16 %v465
    %v1528 = vunpack.c.l.b16 %v466
    %v1529 = vunpack.c.h.b16 %v466
    %v1530 = vunpack.c.l.b16 %v467
    %v1531 = vunpack.c.h.b16 %v467
    %v1532 = vunpack.c.l.b16 %v468
    %v1533 = vunpack.c.h.b16 %v468
    %v1534 = vunpack.c.l.b16 %v469
    %v1535 = vunpack.c.h.b16 %v469
    %v1536 = vunpack.c.l.b16 %v470
    %v1537 = vunpack.c.h.b16 %v470
    %v1538 = vunpack.c.l.b16 %v471
    %v1539 = vunpack.c.h.b16 %v471
    %v1540 = vunpack.c.l.b16 %v472
    %v1541 = vunpack.c.h.b16 %v472
    %v1542 = vunpack.c.l.b16 %v473
    %v1543 = vunpack.c.h.b16 %v473
    %v1544 = vunpack.c.l.b16 %v474
    %v1545 = vunpack.c.h.b16 %v474
    %v1546 = vunpack.c.l.b16 %v475
    %v1547 = vunpack.c.h.b16 %v475
    %v1548 = vunpack.c.l.b16 %v476
    %v1549 = vunpack.c.h.b16 %v476
    %v1550 = vunpack.c.l.b16 %v477
    %v1551 = vunpack.c.h.b16 %v477
    %v1552 = vunpack.c.l.b16 %v478
    %v1553 = vunpack.c.h.b16 %v478
    %v1554 = vunpack.c.l.b16 %v479
    %v1555 = vunpack.c.h.b16 %v479
    %v1556 = vunpack.c.l.b16 %v480
    %v1557 = vunpack.c.h.b16 %v480
    %v1558 = vunpack.c.l.b16 %v481
    %v1559 = vunpack.c.h.b16 %v481
    %v1560 = vunpack.c.l.b16 %v482
    %v1561 = vunpack.c.h.b16 %v482
    %v1562 = vunpack.c.l.b16 %v483
    %v1563 = vunpack.c.h.b16 %v483
    %v1564 = vunpack.c.l.b16 %v484
    %v1565 = vunpack.c.h.b16 %v484
    %v1566 = vunpack.c.l.b16 %v485
    %v1567 = vunpack.c.h.b16 %v485
    %v1568 = vunpack.c.l.b16 %v486
    %v1569 = vunpack.c.h.b16 %v486
    %v1570 = vunpack.c.l.b16 %v487
    %v1571 = vunpack.c.h.b16 %v487
    %v1572 = vunpack.c.l.b16 %v488
    %v1573 = vunpack.c.h.b16 %v488
    %v1574 = vunpack.c.l.b16 %v489
    %v1575 = vunpack.c.h.b16 %v489
    %v1576 = vunpack.c.l.b16 %v490
    %v1577 = vunpack.c.h.b16 %v490
    %v1578 = vunpack.c.l.b16 %v491
    %v1579 = vunpack.c.h.b16 %v491
    %v1580 = vunpack.c.l.b16 %v492
    %v1581 = vunpack.c.h.b16 %v492
    %v1582 = vunpack.c.l.b16 %v493
    %v1583 = vunpack.c.h.b16 %v493
    %v1584 = vunpack.c.l.b16 %v494
    %v1585 = vunpack.c.h.b16 %v494
    %v1586 = vunpack.c.l.b16 %v495
    %v1587 = vunpack.c.h.b16 %v495
    %v1588 = vunpack.c.l.b16 %v496
    %v1589 = vunpack.c.h.b16 %v496
    %v1590 = vunpack.c.l.b16 %v497
    %v1591 = vunpack.c.h.b16 %v497
    %v1592 = vunpack.c.l.b16 %v498
    %v1593 = vunpack.c.h.b16 %v498
    %v1594 = vunpack.c.l.b16 %v499
    %v1595 = vunpack.c.h.b16 %v499
    %v1596 = vunpack.c.l.b16 %v500
    %v1597 = vunpack.c.h.b16 %v500
    %v1598 = vunpack.c.l.b16 %v501
    %v1599 = vunpack.c.h.b16 %v501
    %v1600 = vunpack.c.l.b16 %v502
    %v1601 = vunpack.c.h.b16 %v502
    %v1602 = vunpack.c.l.b16 %v503
    %v1603 = vunpack.c.h.b16 %v503
    %v1604 = vunpack.c.l.b16 %v504
    %v1605 = vunpack.c.h.b16 %v504
    %v1606 = vunpack.c.l.b16 %v505
    %v1607 = vunpack.c.h.b16 %v505
    %v1608 = vunpack.c.l.b16 %v506
    %v1609 = vunpack.c.h.b16 %v506
    %v1610 = vunpack.c.l.b16 %v507
    %v1611 = vunpack.c.h.b16 %v507
    %v1612 = vunpack.c.l.b16 %v508
    %v1613 = vunpack.c.h.b16 %v508
    %v1614 = vunpack.c.l.b16 %v509
    %v1615 = vunpack.c.h.b16 %v509
    %v1616 = vunpack.c.l.b16 %v510
    %v1617 = vunpack.c.h.b16 %v510
    %v1618 = vunpack.c.l.b16 %v511
    %v1619 = vunpack.c.h.b16 %v511
    %v1620 = vunpack.c.l.b16 %v512
    %v1621 = vunpack.c.h.b16 %v512
    %v1622 = vunpack.c.l.b16 %v513
    %v1623 = vunpack.c.h.b16 %v513
    %v1624 = vunpack.c.l.b16 %v514
    %v1625 = vunpack.c.h.b16 %v514
    %v1626 = vunpack.c.l.b16 %v515
    %v1627 = vunpack.c.h.b16 %v515
    %v1628 = vunpack.c.l.b16 %v516
    %v1629 = vunpack.c.h.b16 %v516
    %v1630 = vunpack.c.l.b16 %v517
    %v1631 = vunpack.c.h.b16 %v517
    %v1632 = vunpack.c.l.b16 %v518
    %v1633 = vunpack.c.h.b16 %v518
    %v1634 = vunpack.c.l.b16 %v519
    %v1635 = vunpack.c.h.b16 %v519
    %v1636 = vunpack.c.l.b16 %v520
    %v1637 = vunpack.c.h.b16 %v520
    %v1638 = vunpack.c.l.b16 %v521
    %v1639 = vunpack.c.h.b16 %v521
    %v1640 = vunpack.c.l.b16 %v522
    %v1641 = vunpack.c.h.b16 %v522
    %v1642 = vunpack.c.l.b16 %v523
    %v1643 = vunpack.c.h.b16 %v523
    %v1644 = vunpack.c.l.b16 %v524
    %v1645 = vunpack.c.h.b16 %v524
    %v1646 = vunpack.c.l.b16 %v525
    %v1647 = vunpack.c.h.b16 %v525
    %v1648 = vunpack.c.l.b16 %v526
    %v1649 = vunpack.c.h.b16 %v526
    %v1650 = vunpack.c.l.b16 %v527
    %v1651 = vunpack.c.h.b16 %v527
    %v1652 = vunpack.c.l.b16 %v528
    %v1653 = vunpack.c.h.b16 %v528
    %v1654 = vunpack.c.l.b16 %v529
    %v1655 = vunpack.c.h.b16 %v529
    %v1656 = vunpack.c.l.b16 %v530
    %v1657 = vunpack.c.h.b16 %v530
    %v1658 = vunpack.c.l.b16 %v531
    %v1659 = vunpack.c.h.b16 %v531
    %v1660 = vunpack.c.l.b16 %v532
    %v1661 = vunpack.c.h.b16 %v532
    %v1662 = vunpack.c.l.b16 %v533
    %v1663 = vunpack.c.h.b16 %v533
    %v1664 = vunpack.c.l.b16 %v534
    %v1665 = vunpack.c.h.b16 %v534
    %v1666 = vunpack.c.l.b16 %v535
    %v1667 = vunpack.c.h.b16 %v535
    %v1668 = vunpack.c.l.b16 %v536
    %v1669 = vunpack.c.h.b16 %v536
    %v1670 = vunpack.c.l.b16 %v537
    %v1671 = vunpack.c.h.b16 %v537
    %v1672 = vunpack.c.l.b16 %v538
    %v1673 = vunpack.c.h.b16 %v538
    %v1674 = vunpack.c.l.b16 %v539
    %v1675 = vunpack.c.h.b16 %v539
    %v1676 = vunpack.c.l.b16 %v540
    %v1677 = vunpack.c.h.b16 %v540
    %v1678 = vunpack.c.l.b16 %v541
    %v1679 = vunpack.c.h.b16 %v541
    %v1680 = vunpack.c.l.b16 %v542
    %v1681 = vunpack.c.h.b16 %v542
    %v1682 = vunpack.c.l.b16 %v543
    %v1683 = vunpack.c.h.b16 %v543
    %v1684 = vunpack.c.l.b16 %v544
    %v1685 = vunpack.c.h.b16 %v544
    %v1686 = vunpack.c.l.b16 %v545
    %v1687 = vunpack.c.h.b16 %v545
    %v1688 = vunpack.c.l.b16 %v546
    %v1689 = vunpack.c.h.b16 %v546
    %v1690 = vunpack.c.l.b16 %v547
    %v1691 = vunpack.c.h.b16 %v547
    %v1692 = vunpack.c.l.b16 %v548
    %v1693 = vunpack.c.h.b16 %v548
    %v1694 = vunpack.c.l.b16 %v549
    %v1695 = vunpack.c.h.b16 %v549
    %v1696 = vunpack.c.l.b16 %v550
    %v1697 = vunpack.c.h.b16 %v550
    %v1698 = vunpack.c.l.b16 %v551
    %v1699 = vunpack.c.h.b16 %v551
    %v1700 = vunpack.c.l.b16 %v552
    %v1701 = vunpack.c.h.b16 %v552
    %v1702 = vunpack.c.l.b16 %v553
    %v1703 = vunpack.c.h.b16 %v553
    %v1704 = vunpack.c.l.b16 %v554
    %v1705 = vunpack.c.h.b16 %v554
    %v1706 = vunpack.c.l.b16 %v555
    %v1707 = vunpack.c.h.b16 %v555
    %v1708 = vunpack.c.l.b16 %v556
    %v1709 = vunpack.c.h.b16 %v556
    %v1710 = vunpack.c.l.b16 %v557
    %v1711 = vunpack.c.h.b16 %v557
    %v1712 = vunpack.c.l.b16 %v558
    %v1713 = vunpack.c.h.b16 %v558
    %v1714 = vunpack.c.l.b16 %v559
    %v1715 = vunpack.c.h.b16 %v559
    %v1716 = vunpack.c.l.b16 %v560
    %v1717 = vunpack.c.h.b16 %v560
    %v1718 = vunpack.c.l.b16 %v561
    %v1719 = vunpack.c.h.b16 %v561
    %v1720 = vunpack.c.l.b16 %v562
    %v1721 = vunpack.c.h.b16 %v562
    %v1722 = vunpack.c.l.b16 %v563
    %v1723 = vunpack.c.h.b16 %v563
    %v1724 = vunpack.c.l.b16 %v564
    %v1725 = vunpack.c.h.b16 %v564
    %v1726 = vunpack.c.l.b16 %v565
    %v1727 = vunpack.c.h.b16 %v565
    %v1728 = vunpack.c.l.b16 %v566
    %v1729 = vunpack.c.h.b16 %v566
    %v1730 = vunpack.c.l.b16 %v567
    %v1731 = vunpack.c.h.b16 %v567
    %v1732 = vunpack.c.l.b16 %v568
    %v1733 = vunpack.c.h.b16 %v568
    %v1734 = vunpack.c.l.b16 %v569
    %v1735 = vunpack.c.h.b16 %v569
    %v1736 = vunpack.c.l.b16 %v570
    %v1737 = vunpack.c.h.b16 %v570
    %v1738 = vunpack.c.l.b16 %v571
    %v1739 = vunpack.c.h.b16 %v571
    %v1740 = vunpack.c.l.b16 %v572
    %v1741 = vunpack.c.h.b16 %v572
    %v1742 = vunpack.c.l.b16 %v573
    %v1743 = vunpack.c.h.b16 %v573
    %v1744 = vunpack.c.l.b16 %v574
    %v1745 = vunpack.c.h.b16 %v574
    %v1746 = vunpack.c.l.b16 %v575
    %v1747 = vunpack.c.h.b16 %v575
    %v1748 = vunpack.c.l.b16 %v576
    %v1749 = vunpack.c.h.b16 %v576
    %v1750 = vunpack.c.l.b16 %v577
    %v1751 = vunpack.c.h.b16 %v577
    %v1752 = vunpack.c.l.b16 %v578
    %v1753 = vunpack.c.h.b16 %v578
    %v1754 = vunpack.c.l.b16 %v579
    %v1755 = vunpack.c.h.b16 %v579
    %v1756 = vunpack.c.l.b16 %v580
    %v1757 = vunpack.c.h.b16 %v580
    %v1758 = vunpack.c.l.b16 %v581
    %v1759 = vunpack.c.h.b16 %v581
    %v1760 = vunpack.c.l.b16 %v582
    %v1761 = vunpack.c.h.b16 %v582
    %v1762 = vunpack.c.l.b16 %v583
    %v1763 = vunpack.c.h.b16 %v583
    %v1764 = vunpack.c.l.b16 %v584
    %v1765 = vunpack.c.h.b16 %v584
    %v1766 = vunpack.c.l.b16 %v585
    %v1767 = vunpack.c.h.b16 %v585
    %v1768 = vunpack.c.l.b16 %v586
    %v1769 = vunpack.c.h.b16 %v586
    %v1770 = vunpack.c.l.b16 %v587
    %v1771 = vunpack.c.h.b16 %v587
    %v1772 = vunpack.c.l.b16 %v588
    %v1773 = vunpack.c.h.b16 %v588
    %v1774 = vunpack.c.l.b16 %v589
    %v1775 = vunpack.c.h.b16 %v589
    %v1776 = vunpack.c.l.b16 %v590
    %v1777 = vunpack.c.h.b16 %v590
    %v1778 = vunpack.c.l.b16 %v591
    %v1779 = vunpack.c.h.b16 %v591
    %v1780 = vunpack.c.l.b16 %v592
    %v1781 = vunpack.c.h.b16 %v592
    %v1782 = vunpack.c.l.b16 %v593
    %v1783 = vunpack.c.h.b16 %v593
    %v1784 = vunpack.c.l.b16 %v594
    %v1785 = vunpack.c.h.b16 %v594
    %v1786 = vunpack.c.l.b16 %v595
    %v1787 = vunpack.c.h.b16 %v595
    %v1788 = vunpack.c.l.b16 %v596
    %v1789 = vunpack.c.h.b16 %v596
    %v1790 = vunpack.c.l.b16 %v597
    %v1791 = vunpack.c.h.b16 %v597
    %v1792 = vunpack.c.l.b16 %v598
    %v1793 = vunpack.c.h.b16 %v598
    %v1794 = vunpack.c.l.b16 %v599
    %v1795 = vunpack.c.h.b16 %v599
    %v1796 = vunpack.c.l.b16 %v600
    %v1797 = vunpack.c.h.b16 %v600
    %v1798 = vunpack.c.l.b16 %v601
    %v1799 = vunpack.c.h.b16 %v601
    %v1800 = vunpack.c.l.b16 %v602
    %v1801 = vunpack.c.h.b16 %v602
    %v1802 = vunpack.c.l.b16 %v603
    %v1803 = vunpack.c.h.b16 %v603
    %v1804 = vunpack.c.l.b16 %v604
    %v1805 = vunpack.c.h.b16 %v604
    %v1806 = vunpack.c.l.b16 %v605
    %v1807 = vunpack.c.h.b16 %v605
    %v1808 = vunpack.c.l.b16 %v606
    %v1809 = vunpack.c.h.b16 %v606
    %v1810 = vunpack.c.l.b16 %v607
    %v1811 = vunpack.c.h.b16 %v607
    %v1812 = vunpack.c.l.b16 %v608
    %v1813 = vunpack.c.h.b16 %v608
    %v1814 = vunpack.c.l.b16 %v609
    %v1815 = vunpack.c.h.b16 %v609
    %v1816 = vunpack.c.l.b16 %v610
    %v1817 = vunpack.c.h.b16 %v610
    %v1818 = vunpack.c.l.b16 %v611
    %v1819 = vunpack.c.h.b16 %v611
    %v1820 = vunpack.c.l.b16 %v612
    %v1821 = vunpack.c.h.b16 %v612
    %v1822 = vunpack.c.l.b16 %v613
    %v1823 = vunpack.c.h.b16 %v613
    %v1824 = vunpack.c.l.b16 %v614
    %v1825 = vunpack.c.h.b16 %v614
    %v1826 = vunpack.c.l.b16 %v615
    %v1827 = vunpack.c.h.b16 %v615
    %v1828 = vunpack.c.l.b16 %v616
    %v1829 = vunpack.c.h.b16 %v616
    %v1830 = vunpack.c.l.b16 %v617
    %v1831 = vunpack.c.h.b16 %v617
    %v1832 = vunpack.c.l.b16 %v618
    %v1833 = vunpack.c.h.b16 %v618
    %v1834 = vunpack.c.l.b16 %v619
    %v1835 = vunpack.c.h.b16 %v619
    %v1836 = vunpack.c.l.b16 %v620
    %v1837 = vunpack.c.h.b16 %v620
    %v1838 = vunpack.c.l.b16 %v621
    %v1839 = vunpack.c.h.b16 %v621
    %v1840 = vunpack.c.l.b16 %v622
    %v1841 = vunpack.c.h.b16 %v622
    %v1842 = vunpack.c.l.b16 %v623
    %v1843 = vunpack.c.h.b16 %v623
    %v1844 = vunpack.c.l.b16 %v624
    %v1845 = vunpack.c.h.b16 %v624
    %v1846 = vunpack.c.l.b16 %v625
    %v1847 = vunpack.c.h.b16 %v625
    %v1848 = vunpack.c.l.b16 %v626
    %v1849 = vunpack.c.h.b16 %v626
    %v1850 = vunpack.c.l.b16 %v627
    %v1851 = vunpack.c.h.b16 %v627
    %v1852 = vunpack.c.l.b16 %v628
    %v1853 = vunpack.c.h.b16 %v628
    %v1854 = vunpack.c.l.b16 %v629
    %v1855 = vunpack.c.h.b16 %v629
    %v1856 = vunpack.c.l.b16 %v630
    %v1857 = vunpack.c.h.b16 %v630
    %v1858 = vunpack.c.l.b16 %v631
    %v1859 = vunpack.c.h.b16 %v631
    %v1860 = vunpack.c.l.b16 %v632
    %v1861 = vunpack.c.h.b16 %v632
    %v1862 = vunpack.c.l.b16 %v633
    %v1863 = vunpack.c.h.b16 %v633
    %v1864 = vunpack.c.l.b16 %v634
    %v1865 = vunpack.c.h.b16 %v634
    %v1866 = vunpack.c.l.b16 %v635
    %v1867 = vunpack.c.h.b16 %v635
    %v1868 = vunpack.c.l.b16 %v636
    %v1869 = vunpack.c.h.b16 %v636
    %v1870 = vunpack.c.l.b16 %v637
    %v1871 = vunpack.c.h.b16 %v637
    %v1872 = vunpack.c.l.b16 %v638
    %v1873 = vunpack.c.h.b16 %v638
    %v1874 = vunpack.c.l.b16 %v639
    %v1875 = vunpack.c.h.b16 %v639
    %v1876 = vunpack.c.l.b16 %v640
    %v1877 = vunpack.c.h.b16 %v640
    %v1878 = vunpack.c.l.b16 %v641
    %v1879 = vunpack.c.h.b16 %v641
    %v1880 = vunpack.c.l.b16 %v642
    %v1881 = vunpack.c.h.b16 %v642
    %v1882 = vunpack.c.l.b16 %v643
    %v1883 = vunpack.c.h.b16 %v643
    %v1884 = vunpack.c.l.b16 %v644
    %v1885 = vunpack.c.h.b16 %v644
    %v1886 = vunpack.c.l.b16 %v645
    %v1887 = vunpack.c.h.b16 %v645
    %v1888 = vunpack.c.l.b16 %v646
    %v1889 = vunpack.c.h.b16 %v646
    %v1890 = vunpack.c.l.b16 %v647
    %v1891 = vunpack.c.h.b16 %v647
    %v1892 = vunpack.c.l.b16 %v648
    %v1893 = vunpack.c.h.b16 %v648
    %v1894 = vunpack.c.l.b16 %v649
    %v1895 = vunpack.c.h.b16 %v649
    %v1896 = vunpack.c.l.b16 %v650
    %v1897 = vunpack.c.h.b16 %v650
    %v1898 = vunpack.c.l.b16 %v651
    %v1899 = vunpack.c.h.b16 %v651
    %v1900 = vunpack.c.l.b16 %v652
    %v1901 = vunpack.c.h.b16 %v652
    %v1902 = vunpack.c.l.b16 %v653
    %v1903 = vunpack.c.h.b16 %v653
    %v1904 = vunpack.c.l.b16 %v654
    %v1905 = vunpack.c.h.b16 %v654
    %v1906 = vunpack.c.l.b16 %v655
    %v1907 = vunpack.c.h.b16 %v655
    %v1908 = vunpack.c.l.b16 %v656
    %v1909 = vunpack.c.h.b16 %v656
    %v1910 = vunpack.c.l.b16 %v657
    %v1911 = vunpack.c.h.b16 %v657
    %v1912 = vunpack.c.l.b16 %v658
    %v1913 = vunpack.c.h.b16 %v658
    %v1914 = vunpack.c.l.b16 %v659
    %v1915 = vunpack.c.h.b16 %v659
    %v1916 = vunpack.c.l.b16 %v660
    %v1917 = vunpack.c.h.b16 %v660
    %v1918 = vunpack.c.l.b16 %v661
    %v1919 = vunpack.c.h.b16 %v661
    %v1920 = vunpack.c.l.b16 %v662
    %v1921 = vunpack.c.h.b16 %v662
    %v1922 = vunpack.c.l.b16 %v663
    %v1923 = vunpack.c.h.b16 %v663
    %v1924 = vunpack.c.l.b16 %v664
    %v1925 = vunpack.c.h.b16 %v664
    %v1926 = vunpack.c.l.b16 %v665
    %v1927 = vunpack.c.h.b16 %v665
    %v1928 = vunpack.c.l.b16 %v666
    %v1929 = vunpack.c.h.b16 %v666
    %v1930 = vunpack.c.l.b16 %v667
    %v1931 = vunpack.c.h.b16 %v667
    %v1932 = vunpack.c.l.b16 %v668
    %v1933 = vunpack.c.h.b16 %v668
    %v1934 = vunpack.c.l.b16 %v669
    %v1935 = vunpack.c.h.b16 %v669
    %v1936 = vunpack.c.l.b16 %v670
    %v1937 = vunpack.c.h.b16 %v670
    %v1938 = vunpack.c.l.b16 %v671
    %v1939 = vunpack.c.h.b16 %v671
    %v1940 = vunpack.c.l.b16 %v672
    %v1941 = vunpack.c.h.b16 %v672
    %v1942 = vunpack.c.l.b16 %v673
    %v1943 = vunpack.c.h.b16 %v673
    %v1944 = vunpack.c.l.b16 %v674
    %v1945 = vunpack.c.h.b16 %v674
    %v1946 = vunpack.c.l.b16 %v675
    %v1947 = vunpack.c.h.b16 %v675
    %v1948 = vunpack.c.l.b16 %v676
    %v1949 = vunpack.c.h.b16 %v676
    %v1950 = vunpack.c.l.b16 %v677
    %v1951 = vunpack.c.h.b16 %v677
    %v1952 = vunpack.c.l.b16 %v678
    %v1953 = vunpack.c.h.b16 %v678
    %v1954 = vunpack.c.l.b16 %v679
    %v1955 = vunpack.c.h.b16 %v679
    %v1956 = vunpack.c.l.b16 %v680
    %v1957 = vunpack.c.h.b16 %v680
    %v1958 = vunpack.c.l.b16 %v681
    %v1959 = vunpack.c.h.b16 %v681
    %v1960 = vunpack.c.l.b16 %v682
    %v1961 = vunpack.c.h.b16 %v682
    %v1962 = vunpack.c.l.b16 %v683
    %v1963 = vunpack.c.h.b16 %v683
    %v1964 = vunpack.c.l.b16 %v684
    %v1965 = vunpack.c.h.b16 %v684
    %v1966 = vunpack.c.l.b16 %v685
    %v1967 = vunpack.c.h.b16 %v685
    %v1968 = vunpack.c.l.b16 %v686
    %v1969 = vunpack.c.h.b16 %v686
    %v1970 = vunpack.c.l.b16 %v687
    %v1971 = vunpack.c.h.b16 %v687
    %v1972 = vunpack.c.l.b16 %v688
    %v1973 = vunpack.c.h.b16 %v688
    %v1974 = vunpack.c.l.b16 %v689
    %v1975 = vunpack.c.h.b16 %v689
    %v1976 = vunpack.c.l.b16 %v690
    %v1977 = vunpack.c.h.b16 %v690
    %v1978 = vunpack.c.l.b16 %v691
    %v1979 = vunpack.c.h.b16 %v691
    %v1980 = vunpack.c.l.b16 %v692
    %v1981 = vunpack.c.h.b16 %v692
    %v1982 = vunpack.c.l.b16 %v693
    %v1983 = vunpack.c.h.b16 %v693
    %v1984 = vunpack.c.l.b16 %v694
    %v1985 = vunpack.c.h.b16 %v694
    %v1986 = vunpack.c.l.b16 %v695
    %v1987 = vunpack.c.h.b16 %v695
    %v1988 = vunpack.c.l.b16 %v696
    %v1989 = vunpack.c.h.b16 %v696
    %v1990 = vunpack.c.l.b16 %v697
    %v1991 = vunpack.c.h.b16 %v697
    %v1992 = vunpack.c.l.b16 %v698
    %v1993 = vunpack.c.h.b16 %v698
    %v1994 = vunpack.c.l.b16 %v699
    %v1995 = vunpack.c.h.b16 %v699
    %v1996 = vunpack.c.l.b16 %v700
    %v1997 = vunpack.c.h.b16 %v700
    %v1998 = vunpack.c.l.b16 %v701
    %v1999 = vunpack.c.h.b16 %v701
    %v2000 = vunpack.c.l.b16 %v702
    %v2001 = vunpack.c.h.b16 %v702
    %v2002 = vunpack.c.l.b16 %v703
    %v2003 = vunpack.c.h.b16 %v703
    %v2004 = vunpack.c.l.b16 %v704
    %v2005 = vunpack.c.h.b16 %v704
    %v2006 = vunpack.c.l.b16 %v705
    %v2007 = vunpack.c.h.b16 %v705
    %v2008 = vunpack.c.l.b16 %v706
    %v2009 = vunpack.c.h.b16 %v706
    %v2010 = vunpack.c.l.b16 %v707
    %v2011 = vunpack.c.h.b16 %v707
    %v2012 = vunpack.c.l.b16 %v708
    %v2013 = vunpack.c.h.b16 %v708
    %v2014 = vunpack.c.l.b16 %v709
    %v2015 = vunpack.c.h.b16 %v709
    %v2016 = vunpack.c.l.b16 %v710
    %v2017 = vunpack.c.h.b16 %v710
    %v2018 = vunpack.c.l.b16 %v711
    %v2019 = vunpack.c.h.b16 %v711
    %v2020 = vunpack.c.l.b16 %v712
    %v2021 = vunpack.c.h.b16 %v712
    %v2022 = vunpack.c.l.b16 %v713
    %v2023 = vunpack.c.h.b16 %v713
    %v2024 = vunpack.c.l.b16 %v714
    %v2025 = vunpack.c.h.b16 %v714
    %v2026 = vunpack.c.l.b16 %v715
    %v2027 = vunpack.c.h.b16 %v715
    %v2028 = vunpack.c.l.b16 %v716
    %v2029 = vunpack.c.h.b16 %v716
    %v2030 = vunpack.c.l.b16 %v717
    %v2031 = vunpack.c.h.b16 %v717
    %v2032 = vunpack.c.l.b16 %v718
    %v2033 = vunpack.c.h.b16 %v718
    %v2034 = vunpack.c.l.b16 %v719
    %v2035 = vunpack.c.h.b16 %v719
    %v2036 = vunpack.c.l.b16 %v720
    %v2037 = vunpack.c.h.b16 %v720
    %v2038 = vunpack.c.l.b16 %v721
    %v2039 = vunpack.c.h.b16 %v721
    %v2040 = vunpack.c.l.b16 %v722
    %v2041 = vunpack.c.h.b16 %v722
    %v2042 = vunpack.c.l.b16 %v723
    %v2043 = vunpack.c.h.b16 %v723
    %v2044 = vunpack.c.l.b16 %v724
    %v2045 = vunpack.c.h.b16 %v724
    %v2046 = vunpack.c.l.b16 %v725
    %v2047 = vunpack.c.h.b16 %v725
    %v2048 = vunpack.c.l.b16 %v726
    %v2049 = vunpack.c.h.b16 %v726
    %v2050 = vunpack.c.l.b16 %v727
    %v2051 = vunpack.c.h.b16 %v727
    %v2052 = vunpack.c.l.b16 %v728
    %v2053 = vunpack.c.h.b16 %v728
    %v2054 = vunpack.c.l.b16 %v729
    %v2055 = vunpack.c.h.b16 %v729
    %v2056 = vunpack.c.l.b16 %v730
    %v2057 = vunpack.c.h.b16 %v730
    %v2058 = vunpack.c.l.b16 %v731
    %v2059 = vunpack.c.h.b16 %v731
    %v2060 = vunpack.c.l.b16 %v732
    %v2061 = vunpack.c.h.b16 %v732
    %v2062 = vunpack.c.l.b16 %v733
    %v2063 = vunpack.c.h.b16 %v733
    %v2064 = vunpack.c.l.b16 %v734
    %v2065 = vunpack.c.h.b16 %v734
    %v2066 = vunpack.c.l.b16 %v735
    %v2067 = vunpack.c.h.b16 %v735
    %v2068 = vunpack.c.l.b16 %v736
    %v2069 = vunpack.c.h.b16 %v736
    %v2070 = vunpack.c.l.b16 %v737
    %v2071 = vunpack.c.h.b16 %v737
    %v2072 = vunpack.c.l.b16 %v738
    %v2073 = vunpack.c.h.b16 %v738
    %v2074 = vunpack.c.l.b16 %v739
    %v2075 = vunpack.c.h.b16 %v739
    %v2076 = vunpack.c.l.b16 %v740
    %v2077 = vunpack.c.h.b16 %v740
    %v2078 = vunpack.c.l.b16 %v741
    %v2079 = vunpack.c.h.b16 %v741
    %v2080 = vunpack.c.l.b16 %v742
    %v2081 = vunpack.c.h.b16 %v742
    %v2082 = vunpack.c.l.b16 %v743
    %v2083 = vunpack.c.h.b16 %v743
    %v2084 = vunpack.c.l.b16 %v744
    %v2085 = vunpack.c.h.b16 %v744
    %v2086 = vunpack.c.l.b16 %v745
    %v2087 = vunpack.c.h.b16 %v745
    %v2088 = vunpack.c.l.b16 %v746
    %v2089 = vunpack.c.h.b16 %v746
    %v2090 = vunpack.c.l.b16 %v747
    %v2091 = vunpack.c.h.b16 %v747
    %v2092 = vunpack.c.l.b16 %v748
    %v2093 = vunpack.c.h.b16 %v748
    %v2094 = vunpack.c.l.b16 %v749
    %v2095 = vunpack.c.h.b16 %v749
    %v2096 = vunpack.c.l.b16 %v750
    %v2097 = vunpack.c.h.b16 %v750
    %v2098 = vunpack.c.l.b16 %v751
    %v2099 = vunpack.c.h.b16 %v751
    %v2100 = vunpack.c.l.b16 %v752
    %v2101 = vunpack.c.h.b16 %v752
    %v2102 = vunpack.c.l.b16 %v753
    %v2103 = vunpack.c.h.b16 %v753
    %v2104 = vunpack.c.l.b16 %v754
    %v2105 = vunpack.c.h.b16 %v754
    %v2106 = vunpack.c.l.b16 %v755
    %v2107 = vunpack.c.h.b16 %v755
    %v2108 = vunpack.c.l.b16 %v756
    %v2109 = vunpack.c.h.b16 %v756
    %v2110 = vunpack.c.l.b16 %v757
    %v2111 = vunpack.c.h.b16 %v757
    %v2112 = vunpack.c.l.b16 %v758
    %v2113 = vunpack.c.h.b16 %v758
    %v2114 = vunpack.c.l.b16 %v759
    %v2115 = vunpack.c.h.b16 %v759
    %v2116 = vunpack.c.l.b16 %v760
    %v2117 = vunpack.c.h.b16 %v760
    %v2118 = vunpack.c.l.b16 %v761
    %v2119 = vunpack.c.h.b16 %v761
    %v2120 = vunpack.c.l.b16 %v762
    %v2121 = vunpack.c.h.b16 %v762
    %v2122 = vunpack.c.l.b16 %v763
    %v2123 = vunpack.c.h.b16 %v763
    %v2124 = vunpack.c.l.b16 %v764
    %v2125 = vunpack.c.h.b16 %v764
    %v2126 = vunpack.c.l.b16 %v765
    %v2127 = vunpack.c.h.b16 %v765
    %v2128 = vunpack.c.l.b16 %v766
    %v2129 = vunpack.c.h.b16 %v766
    %v2130 = vunpack.c.l.b16 %v767
    %v2131 = vunpack.c.h.b16 %v767
    %v2132 = vunpack.c.l.b16 %v768
    %v2133 = vunpack.c.h.b16 %v768
    %v2134 = vunpack.c.l.b16 %v769
    %v2135 = vunpack.c.h.b16 %v769
    %v2136 = vunpack.c.l.b16 %v770
    %v2137 = vunpack.c.h.b16 %v770
    %v2138 = vunpack.c.l.b16 %v771
    %v2139 = vunpack.c.h.b16 %v771
    %v2140 = vunpack.c.l.b16 %v772
    %v2141 = vunpack.c.h.b16 %v772
    %v2142 = vunpack.c.l.b16 %v773
    %v2143 = vunpack.c.h.b16 %v773
    %v2144 = vunpack.c.l.b16 %v774
    %v2145 = vunpack.c.h.b16 %v774
    %v2146 = vunpack.c.l.b16 %v775
    %v2147 = vunpack.c.h.b16 %v775
    %v2148 = vunpack.c.l.b16 %v776
    %v2149 = vunpack.c.h.b16 %v776
    %v2150 = vunpack.c.l.b16 %v777
    %v2151 = vunpack.c.h.b16 %v777
    %v2152 = vunpack.c.l.b16 %v778
    %v2153 = vunpack.c.h.b16 %v778
    %v2154 = vunpack.c.l.b16 %v779
    %v2155 = vunpack.c.h.b16 %v779
    %v2156 = vunpack.c.l.b16 %v780
    %v2157 = vunpack.c.h.b16 %v780
    %v2158 = vunpack.c.l.b16 %v781
    %v2159 = vunpack.c.h.b16 %v781
    %v2160 = vunpack.c.l.b16 %v782
    %v2161 = vunpack.c.h.b16 %v782
    %v2162 = vunpack.c.l.b16 %v783
    %v2163 = vunpack.c.h.b16 %v783
    %v2164 = vunpack.c.l.b16 %v784
    %v2165 = vunpack.c.h.b16 %v784
    %v2166 = vunpack.c.l.b16 %v785
    %v2167 = vunpack.c.h.b16 %v785
    %v2168 = vunpack.c.l.b16 %v786
    %v2169 = vunpack.c.h.b16 %v786
    %v2170 = vunpack.c.l.b16 %v787
    %v2171 = vunpack.c.h.b16 %v787
    %v2172 = vunpack.c.l.b16 %v788
    %v2173 = vunpack.c.h.b16 %v788
    %v2174 = vunpack.c.l.b16 %v789
    %v2175 = vunpack.c.h.b16 %v789
    %v2176 = vunpack.c.l.b16 %v790
    %v2177 = vunpack.c.h.b16 %v790
    %v2178 = vunpack.c.l.b16 %v791
    %v2179 = vunpack.c.h.b16 %v791
    %v2180 = vunpack.c.l.b16 %v792
    %v2181 = vunpack.c.h.b16 %v792
    %v2182 = vunpack.c.l.b16 %v793
    %v2183 = vunpack.c.h.b16 %v793
    %v2184 = vunpack.c.l.b16 %v794
    %v2185 = vunpack.c.h.b16 %v794
    %v2186 = vunpack.c.l.b16 %v795
    %v2187 = vunpack.c.h.b16 %v795
    %v2188 = vunpack.c.l.b16 %v796
    %v2189 = vunpack.c.h.b16 %v796
    %v2190 = vunpack.c.l.b16 %v797
    %v2191 = vunpack.c.h.b16 %v797
    %v2192 = vunpack.c.l.b16 %v798
    %v2193 = vunpack.c.h.b16 %v798
    %v2194 = vunpack.c.l.b16 %v799
    %v2195 = vunpack.c.h.b16 %v799
    %v2196 = vunpack.c.l.b16 %v800
    %v2197 = vunpack.c.h.b16 %v800
    %v2198 = vunpack.c.l.b16 %v801
    %v2199 = vunpack.c.h.b16 %v801
    %v2200 = vunpack.c.l.b16 %v802
    %v2201 = vunpack.c.h.b16 %v802
    %v2202 = vunpack.c.l.b16 %v803
    %v2203 = vunpack.c.h.b16 %v803
    %v2204 = vunpack.c.l.b16 %v804
    %v2205 = vunpack.c.h.b16 %v804
    %v2206 = vunpack.c.l.b16 %v805
    %v2207 = vunpack.c.h.b16 %v805
    %v2208 = vunpack.c.l.b16 %v806
    %v2209 = vunpack.c.h.b16 %v806
    %v2210 = vunpack.c.l.b16 %v807
    %v2211 = vunpack.c.h.b16 %v807
    %v2212 = vunpack.c.l.b16 %v808
    %v2213 = vunpack.c.h.b16 %v808
    %v2214 = vunpack.c.l.b16 %v809
    %v2215 = vunpack.c.h.b16 %v809
    %v2216 = vunpack.c.l.b16 %v810
    %v2217 = vunpack.c.h.b16 %v810
    %v2218 = vunpack.c.l.b16 %v811
    %v2219 = vunpack.c.h.b16 %v811
    %v2220 = vunpack.c.l.b16 %v812
    %v2221 = vunpack.c.h.b16 %v812
    %v2222 = vunpack.c.l.b16 %v813
    %v2223 = vunpack.c.h.b16 %v813
    %v2224 = vunpack.c.l.b16 %v814
    %v2225 = vunpack.c.h.b16 %v814
    %v2226 = vunpack.c.l.b16 %v815
    %v2227 = vunpack.c.h.b16 %v815
    %v2228 = vunpack.c.l.b16 %v816
    %v2229 = vunpack.c.h.b16 %v816
    %v2230 = vunpack.c.l.b16 %v817
    %v2231 = vunpack.c.h.b16 %v817
    %v2232 = vunpack.c.l.b16 %v818
    %v2233 = vunpack.c.h.b16 %v818
    %v2234 = vunpack.c.l.b16 %v819
    %v2235 = vunpack.c.h.b16 %v819
    %v2236 = vunpack.c.l.b16 %v820
    %v2237 = vunpack.c.h.b16 %v820
    %v2238 = vunpack.c.l.b16 %v821
    %v2239 = vunpack.c.h.b16 %v821
    %v2240 = vunpack.c.l.b16 %v822
    %v2241 = vunpack.c.h.b16 %v822
    %v2242 = vunpack.c.l.b16 %v823
    %v2243 = vunpack.c.h.b16 %v823
    %v2244 = vunpack.c.l.b16 %v824
    %v2245 = vunpack.c.h.b16 %v824
    %v2246 = vunpack.c.l.b16 %v825
    %v2247 = vunpack.c.h.b16 %v825
    %v2248 = vunpack.c.l.b16 %v826
    %v2249 = vunpack.c.h.b16 %v826
    %v2250 = vunpack.c.l.b16 %v827
    %v2251 = vunpack.c.h.b16 %v827
    %v2252 = vunpack.c.l.b16 %v828
    %v2253 = vunpack.c.h.b16 %v828
    %v2254 = vunpack.c.l.b16 %v829
    %v2255 = vunpack.c.h.b16 %v829
    %v2256 = vunpack.c.l.b16 %v830
    %v2257 = vunpack.c.h.b16 %v830
    %v2258 = vunpack.c.l.b16 %v831
    %v2259 = vunpack.c.h.b16 %v831
    %v2260 = vunpack.c.l.b16 %v832
    %v2261 = vunpack.c.h.b16 %v832
    %v2262 = vunpack.c.l.b16 %v833
    %v2263 = vunpack.c.h.b16 %v833
    %v2264 = vunpack.c.l.b16 %v834
    %v2265 = vunpack.c.h.b16 %v834
    %v2266 = vunpack.c.l.b16 %v835
    %v2267 = vunpack.c.h.b16 %v835
    %v2268 = vunpack.c.l.b16 %v836
    %v2269 = vunpack.c.h.b16 %v836
    %v2270 = vunpack.c.l.b16 %v837
    %v2271 = vunpack.c.h.b16 %v837
    %v2272 = vunpack.c.l.b16 %v838
    %v2273 = vunpack.c.h.b16 %v838
    %v2274 = vunpack.c.l.b16 %v839
    %v2275 = vunpack.c.h.b16 %v839
    %v2276 = vunpack.c.l.b16 %v840
    %v2277 = vunpack.c.h.b16 %v840
    %v2278 = vunpack.c.l.b16 %v841
    %v2279 = vunpack.c.h.b16 %v841
    %v2280 = vunpack.c.l.b16 %v842
    %v2281 = vunpack.c.h.b16 %v842
    %v2282 = vunpack.c.l.b16 %v843
    %v2283 = vunpack.c.h.b16 %v843
    %v2284 = vunpack.c.l.b16 %v844
    %v2285 = vunpack.c.h.b16 %v844
    %v2286 = vunpack.c.l.b16 %v845
    %v2287 = vunpack.c.h.b16 %v845
    %v2288 = vunpack.c.l.b16 %v846
    %v2289 = vunpack.c.h.b16 %v846
    %v2290 = vunpack.c.l.b16 %v847
    %v2291 = vunpack.c.h.b16 %v847
    %v2292 = vunpack.c.l.b16 %v848
    %v2293 = vunpack.c.h.b16 %v848
    %v2294 = vunpack.c.l.b16 %v849
    %v2295 = vunpack.c.h.b16 %v849
    %v2296 = vunpack.c.l.b16 %v850
    %v2297 = vunpack.c.h.b16 %v850
    %v2298 = vunpack.c.l.b16 %v851
    %v2299 = vunpack.c.h.b16 %v851
    %v2300 = vunpack.c.l.b16 %v852
    %v2301 = vunpack.c.h.b16 %v852
    %v2302 = vunpack.c.l.b16 %v853
    %v2303 = vunpack.c.h.b16 %v853
    %v2304 = vunpack.c.l.b16 %v854
    %v2305 = vunpack.c.h.b16 %v854
    %v2306 = vunpack.c.l.b16 %v855
    %v2307 = vunpack.c.h.b16 %v855
    %v2308 = vunpack.c.l.b16 %v856
    %v2309 = vunpack.c.h.b16 %v856
    %v2310 = vunpack.c.l.b16 %v857
    %v2311 = vunpack.c.h.b16 %v857
    %v2312 = vunpack.c.l.b16 %v858
    %v2313 = vunpack.c.h.b16 %v858
    %v2314 = vunpack.c.l.b16 %v859
    %v2315 = vunpack.c.h.b16 %v859
    %v2316 = vunpack.c.l.b16 %v860
    %v2317 = vunpack.c.h.b16 %v860
    %v2318 = vunpack.c.l.b16 %v861
    %v2319 = vunpack.c.h.b16 %v861
    %v2320 = vunpack.c.l.b16 %v862
    %v2321 = vunpack.c.h.b16 %v862
    %v2322 = vunpack.c.l.b16 %v863
    %v2323 = vunpack.c.h.b16 %v863
    %v2324 = vunpack.c.l.b16 %v864
    %v2325 = vunpack.c.h.b16 %v864
    %v2326 = vunpack.c.l.b16 %v865
    %v2327 = vunpack.c.h.b16 %v865
    %v2328 = vunpack.c.l.b16 %v866
    %v2329 = vunpack.c.h.b16 %v866
    %v2330 = vunpack.c.l.b16 %v867
    %v2331 = vunpack.c.h.b16 %v867
    %v2332 = vunpack.c.l.b16 %v868
    %v2333 = vunpack.c.h.b16 %v868
    %v2334 = vunpack.c.l.b16 %v869
    %v2335 = vunpack.c.h.b16 %v869
    %v2336 = vunpack.c.l.b16 %v870
    %v2337 = vunpack.c.h.b16 %v870
    %v2338 = vunpack.c.l.b16 %v871
    %v2339 = vunpack.c.h.b16 %v871
    %v2340 = vunpack.c.l.b16 %v872
    %v2341 = vunpack.c.h.b16 %v872
    %v2342 = vunpack.c.l.b16 %v873
    %v2343 = vunpack.c.h.b16 %v873
    %v2344 = vunpack.c.l.b16 %v874
    %v2345 = vunpack.c.h.b16 %v874
    %v2346 = vunpack.c.l.b16 %v875
    %v2347 = vunpack.c.h.b16 %v875
    %v2348 = vunpack.c.l.b16 %v876
    %v2349 = vunpack.c.h.b16 %v876
    %v2350 = vunpack.c.l.b16 %v877
    %v2351 = vunpack.c.h.b16 %v877
    %v2352 = vunpack.c.l.b16 %v878
    %v2353 = vunpack.c.h.b16 %v878
    %v2354 = vunpack.c.l.b16 %v879
    %v2355 = vunpack.c.h.b16 %v879
    %v2356 = vunpack.c.l.b16 %v880
    %v2357 = vunpack.c.h.b16 %v880
    %v2358 = vunpack.c.l.b16 %v881
    %v2359 = vunpack.c.h.b16 %v881
    %v2360 = vunpack.c.l.b16 %v882
    %v2361 = vunpack.c.h.b16 %v882
    %v2362 = vunpack.c.l.b16 %v883
    %v2363 = vunpack.c.h.b16 %v883
    %v2364 = vunpack.c.l.b16 %v884
    %v2365 = vunpack.c.h.b16 %v884
    %v2366 = vunpack.c.l.b16 %v885
    %v2367 = vunpack.c.h.b16 %v885
    %v2368 = vunpack.c.l.b16 %v886
    %v2369 = vunpack.c.h.b16 %v886
    %v2370 = vunpack.c.l.b16 %v887
    %v2371 = vunpack.c.h.b16 %v887
    %v2372 = vunpack.c.l.b16 %v888
    %v2373 = vunpack.c.h.b16 %v888
    %v2374 = vunpack.c.l.b16 %v889
    %v2375 = vunpack.c.h.b16 %v889
    %v2376 = vunpack.c.l.b16 %v890
    %v2377 = vunpack.c.h.b16 %v890
    %v2378 = vunpack.c.l.b16 %v891
    %v2379 = vunpack.c.h.b16 %v891
    %v2380 = vunpack.c.l.b16 %v892
    %v2381 = vunpack.c.h.b16 %v892
    %v2382 = vunpack.c.l.b16 %v893
    %v2383 = vunpack.c.h.b16 %v893
    %v2384 = vunpack.c.l.b16 %v894
    %v2385 = vunpack.c.h.b16 %v894
    %v2386 = vunpack.c.l.b16 %v895
    %v2387 = vunpack.c.h.b16 %v895
    %v2388 = vunpack.c.l.b16 %v896
    %v2389 = vunpack.c.h.b16 %v896
    %v2390 = vunpack.c.l.b16 %v897
    %v2391 = vunpack.c.h.b16 %v897
    %v2392 = vunpack.c.l.b16 %v898
    %v2393 = vunpack.c.h.b16 %v898
    %v2394 = vunpack.c.l.b16 %v899
    %v2395 = vunpack.c.h.b16 %v899
    %v2396 = vunpack.c.l.b16 %v900
    %v2397 = vunpack.c.h.b16 %v900
    %v2398 = vunpack.c.l.b16 %v901
    %v2399 = vunpack.c.h.b16 %v901
    %v2400 = vunpack.c.l.b16 %v902
    %v2401 = vunpack.c.h.b16 %v902
    %v2402 = vunpack.c.l.b16 %v903
    %v2403 = vunpack.c.h.b16 %v903
    %v2404 = vunpack.c.l.b16 %v904
    %v2405 = vunpack.c.h.b16 %v904
    %v2406 = vunpack.c.l.b16 %v905
    %v2407 = vunpack.c.h.b16 %v905
    %v2408 = vunpack.c.l.b16 %v906
    %v2409 = vunpack.c.h.b16 %v906
    %v2410 = vunpack.c.l.b16 %v907
    %v2411 = vunpack.c.h.b16 %v907
    %v2412 = vunpack.c.l.b16 %v908
    %v2413 = vunpack.c.h.b16 %v908
    %v2414 = vunpack.c.l.b16 %v909
    %v2415 = vunpack.c.h.b16 %v909
    %v2416 = vunpack.c.l.b16 %v910
    %v2417 = vunpack.c.h.b16 %v910
    %v2418 = vunpack.c.l.b16 %v911
    %v2419 = vunpack.c.h.b16 %v911
    %v2420 = vunpack.c.l.b16 %v912
    %v2421 = vunpack.c.h.b16 %v912
    %v2422 = vunpack.c.l.b16 %v913
    %v2423 = vunpack.c.h.b16 %v913
    %v2424 = vunpack.c.l.b16 %v914
    %v2425 = vunpack.c.h.b16 %v914
    %v2426 = vunpack.c.l.b16 %v915
    %v2427 = vunpack.c.h.b16 %v915
    %v2428 = vunpack.c.l.b16 %v916
    %v2429 = vunpack.c.h.b16 %v916
    %v2430 = vunpack.c.l.b16 %v917
    %v2431 = vunpack.c.h.b16 %v917
    %v2432 = vunpack.c.l.b16 %v918
    %v2433 = vunpack.c.h.b16 %v918
    %v2434 = vunpack.c.l.b16 %v919
    %v2435 = vunpack.c.h.b16 %v919
    %v2436 = vunpack.c.l.b16 %v920
    %v2437 = vunpack.c.h.b16 %v920
    %v2438 = vunpack.c.l.b16 %v921
    %v2439 = vunpack.c.h.b16 %v921
    %v2440 = vunpack.c.l.b16 %v922
    %v2441 = vunpack.c.h.b16 %v922
    %v2442 = vunpack.c.l.b16 %v923
    %v2443 = vunpack.c.h.b16 %v923
    %v2444 = vunpack.c.l.b16 %v924
    %v2445 = vunpack.c.h.b16 %v924
    %v2446 = vunpack.c.l.b16 %v925
    %v2447 = vunpack.c.h.b16 %v925
    %v2448 = vunpack.c.l.b16 %v926
    %v2449 = vunpack.c.h.b16 %v926
    %v2450 = vunpack.c.l.b16 %v927
    %v2451 = vunpack.c.h.b16 %v927
    %v2452 = vunpack.c.l.b16 %v928
    %v2453 = vunpack.c.h.b16 %v928
    %v2454 = vunpack.c.l.b16 %v929
    %v2455 = vunpack.c.h.b16 %v929
    %v2456 = vunpack.c.l.b16 %v930
    %v2457 = vunpack.c.h.b16 %v930
    %v2458 = vunpack.c.l.b16 %v931
    %v2459 = vunpack.c.h.b16 %v931
    %v2460 = vunpack.c.l.b16 %v932
    %v2461 = vunpack.c.h.b16 %v932
    %v2462 = vunpack.c.l.b16 %v933
    %v2463 = vunpack.c.h.b16 %v933
    %v2464 = vunpack.c.l.b16 %v934
    %v2465 = vunpack.c.h.b16 %v934
    %v2466 = vunpack.c.l.b16 %v935
    %v2467 = vunpack.c.h.b16 %v935
    %v2468 = vunpack.c.l.b16 %v936
    %v2469 = vunpack.c.h.b16 %v936
    %v2470 = vunpack.c.l.b16 %v937
    %v2471 = vunpack.c.h.b16 %v937
    %v2472 = vunpack.c.l.b16 %v938
    %v2473 = vunpack.c.h.b16 %v938
    %v2474 = vunpack.c.l.b16 %v939
    %v2475 = vunpack.c.h.b16 %v939
    %v2476 = vpack.c.b16 %v1456, %v1452
    %v2477 = vpack.c.b16 %v1457, %v1453
    %v2478 = vpack.c.b16 %v1458, %v1454
    %v2479 = vpack.c.b16 %v1459, %v1455
    %v2480 = vpack.c.b16 %v1464, %v1460
    %v2481 = vpack.c.b16 %v1465, %v1461
    %v2482 = vpack.c.b16 %v1466, %v1462
    %v2483 = vpack.c.b16 %v1467, %v1463
    %v2484 = vpack.c.b16 %v1472, %v1468
    %v2485 = vpack.c.b16 %v1473, %v1469
    %v2486 = vpack.c.b16 %v1474, %v1470
    %v2487 = vpack.c.b16 %v1475, %v1471
    %v2488 = vpack.c.b16 %v1480, %v1476
    %v2489 = vpack.c.b16 %v1481, %v1477
    %v2490 = vpack.c.b16 %v1482, %v1478
    %v2491 = vpack.c.b16 %v1483, %v1479
    %v2492 = vpack.c.b16 %v1488, %v1484
    %v2493 = vpack.c.b16 %v1489, %v1485
    %v2494 = vpack.c.b16 %v1490, %v1486
    %v2495 = vpack.c.b16 %v1491, %v1487
    %v2496 = vpack.c.b16 %v1496, %v1492
    %v2497 = vpack.c.b16 %v1497, %v1493
    %v2498 = vpack.c.b16 %v1498, %v1494
    %v2499 = vpack.c.b16 %v1499, %v1495
    %v2500 = vpack.c.b16 %v1504, %v1500
    %v2501 = vpack.c.b16 %v1505, %v1501
    %v2502 = vpack.c.b16 %v1506, %v1502
    %v2503 = vpack.c.b16 %v1507, %v1503
    %v2504 = vpack.c.b16 %v1512, %v1508
    %v2505 = vpack.c.b16 %v1513, %v1509
    %v2506 = vpack.c.b16 %v1514, %v1510
    %v2507 = vpack.c.b16 %v1515, %v1511
    %v2508 = vpack.c.b16 %v1520, %v1516
    %v2509 = vpack.c.b16 %v1521, %v1517
    %v2510 = vpack.c.b16 %v1522, %v1518
    %v2511 = vpack.c.b16 %v1523, %v1519
    %v2512 = vpack.c.b16 %v1528, %v1524
    %v2513 = vpack.c.b16 %v1529, %v1525
    %v2514 = vpack.c.b16 %v1530, %v1526
    %v2515 = vpack.c.b16 %v1531, %v1527
    %v2516 = vpack.c.b16 %v1536, %v1532
    %v2517 = vpack.c.b16 %v1537, %v1533
    %v2518 = vpack.c.b16 %v1538, %v1534
    %v2519 = vpack.c.b16 %v1539, %v1535
    %v2520 = vpack.c.b16 %v1544, %v1540
    %v2521 = vpack.c.b16 %v1545, %v1541
    %v2522 = vpack.c.b16 %v1546, %v1542
    %v2523 = vpack.c.b16 %v1547, %v1543
    %v2524 = vpack.c.b16 %v1552, %v1548
    %v2525 = vpack.c.b16 %v1553, %v1549
    %v2526 = vpack.c.b16 %v1554, %v1550
    %v2527 = vpack.c.b16 %v1555, %v1551
    %v2528 = vpack.c.b16 %v1560, %v1556
    %v2529 = vpack.c.b16 %v1561, %v1557
    %v2530 = vpack.c.b16 %v1562, %v1558
    %v2531 = vpack.c.b16 %v1563, %v1559
    %v2532 = vpack.c.b16 %v1568, %v1564
    %v2533 = vpack.c.b16 %v1569, %v1565
    %v2534 = vpack.c.b16 %v1570, %v1566
    %v2535 = vpack.c.b16 %v1571, %v1567
    %v2536 = vpack.c.b16 %v1576, %v1572
    %v2537 = vpack.c.b16 %v1577, %v1573
    %v2538 = vpack.c.b16 %v1578, %v1574
    %v2539 = vpack.c.b16 %v1579, %v1575
    %v2540 = vpack.c.b16 %v1584, %v1580
    %v2541 = vpack.c.b16 %v1585, %v1581
    %v2542 = vpack.c.b16 %v1586, %v1582
    %v2543 = vpack.c.b16 %v1587, %v1583
    %v2544 = vpack.c.b16 %v1592, %v1588
    %v2545 = vpack.c.b16 %v1593, %v1589
    %v2546 = vpack.c.b16 %v1594, %v1590
    %v2547 = vpack.c.b16 %v1595, %v1591
    %v2548 = vpack.c.b16 %v1600, %v1596
    %v2549 = vpack.c.b16 %v1601, %v1597
    %v2550 = vpack.c.b16 %v1602, %v1598
    %v2551 = vpack.c.b16 %v1603, %v1599
    %v2552 = vpack.c.b16 %v1608, %v1604
    %v2553 = vpack.c.b16 %v1609, %v1605
    %v2554 = vpack.c.b16 %v1610, %v1606
    %v2555 = vpack.c.b16 %v1611, %v1607
    %v2556 = vpack.c.b16 %v1616, %v1612
    %v2557 = vpack.c.b16 %v1617, %v1613
    %v2558 = vpack.c.b16 %v1618, %v1614
    %v2559 = vpack.c.b16 %v1619, %v1615
    %v2560 = vpack.c.b16 %v1624, %v1620
    %v2561 = vpack.c.b16 %v1625, %v1621
    %v2562 = vpack.c.b16 %v1626, %v1622
    %v2563 = vpack.c.b16 %v1627, %v1623
    %v2564 = vpack.c.b16 %v1632, %v1628
    %v2565 = vpack.c.b16 %v1633, %v1629
    %v2566 = vpack.c.b16 %v1634, %v1630
    %v2567 = vpack.c.b16 %v1635, %v1631
    %v2568 = vpack.c.b16 %v1640, %v1636
    %v2569 = vpack.c.b16 %v1641, %v1637
    %v2570 = vpack.c.b16 %v1642, %v1638
    %v2571 = vpack.c.b16 %v1643, %v1639
    %v2572 = vpack.c.b16 %v1648, %v1644
    %v2573 = vpack.c.b16 %v1649, %v1645
    %v2574 = vpack.c.b16 %v1650, %v1646
    %v2575 = vpack.c.b16 %v1651, %v1647
    %v2576 = vpack.c.b16 %v1656, %v1652
    %v2577 = vpack.c.b16 %v1657, %v1653
    %v2578 = vpack.c.b16 %v1658, %v1654
    %v2579 = vpack.c.b16 %v1659, %v1655
    %v2580 = vpack.c.b16 %v1664, %v1660
    %v2581 = vpack.c.b16 %v1665, %v1661
    %v2582 = vpack.c.b16 %v1666, %v1662
    %v2583 = vpack.c.b16 %v1667, %v1663
    %v2584 = vpack.c.b16 %v1672, %v1668
    %v2585 = vpack.c.b16 %v1673, %v1669
    %v2586 = vpack.c.b16 %v1674, %v1670
    %v2587 = vpack.c.b16 %v1675, %v1671
    %v2588 = vpack.c.b16 %v1680, %v1676
    %v2589 = vpack.c.b16 %v1681, %v1677
    %v2590 = vpack.c.b16 %v1682, %v1678
    %v2591 = vpack.c.b16 %v1683, %v1679
    %v2592 = vpack.c.b16 %v1688, %v1684
    %v2593 = vpack.c.b16 %v1689, %v1685
    %v2594 = vpack.c.b16 %v1690, %v1686
    %v2595 = vpack.c.b16 %v1691, %v1687
    %v2596 = vpack.c.b16 %v1696, %v1692
    %v2597 = vpack.c.b16 %v1697, %v1693
    %v2598 = vpack.c.b16 %v1698, %v1694
    %v2599 = vpack.c.b16 %v1699, %v1695
    %v2600 = vpack.c.b16 %v1704, %v1700
    %v2601 = vpack.c.b16 %v1705, %v1701
    %v2602 = vpack.c.b16 %v1706, %v1702
    %v2603 = vpack.c.b16 %v1707, %v1703
    %v2604 = vpack.c.b16 %v1712, %v1708
    %v2605 = vpack.c.b16 %v1713, %v1709
    %v2606 = vpack.c.b16 %v1714, %v1710
    %v2607 = vpack.c.b16 %v1715, %v1711
    %v2608 = vpack.c.b16 %v1720, %v1716
    %v2609 = vpack.c.b16 %v1721, %v1717
    %v2610 = vpack.c.b16 %v1722, %v1718
    %v2611 = vpack.c.b16 %v1723, %v1719
    %v2612 = vpack.c.b16 %v1728, %v1724
    %v2613 = vpack.c.b16 %v1729, %v1725
    %v2614 = vpack.c.b16 %v1730, %v1726
    %v2615 = vpack.c.b16 %v1731, %v1727
    %v2616 = vpack.c.b16 %v1736, %v1732
    %v2617 = vpack.c.b16 %v1737, %v1733
    %v2618 = vpack.c.b16 %v1738, %v1734
    %v2619 = vpack.c.b16 %v1739, %v1735
    %v2620 = vpack.c.b16 %v1744, %v1740
    %v2621 = vpack.c.b16 %v1745, %v1741
    %v2622 = vpack.c.b16 %v1746, %v1742
    %v2623 = vpack.c.b16 %v1747, %v1743
    %v2624 = vpack.c.b16 %v1752, %v1748
    %v2625 = vpack.c.b16 %v1753, %v1749
    %v2626 = vpack.c.b16 %v1754, %v1750
    %v2627 = vpack.c.b16 %v1755, %v1751
    %v2628 = vpack.c.b16 %v1760, %v1756
    %v2629 = vpack.c.b16 %v1761, %v1757
    %v2630 = vpack.c.b16 %v1762, %v1758
    %v2631 = vpack.c.b16 %v1763, %v1759
    %v2632 = vpack.c.b16 %v1768, %v1764
    %v2633 = vpack.c.b16 %v1769, %v1765
    %v2634 = vpack.c.b16 %v1770, %v1766
    %v2635 = vpack.c.b16 %v1771, %v1767
    %v2636 = vpack.c.b16 %v1776, %v1772
    %v2637 = vpack.c.b16 %v1777, %v1773
    %v2638 = vpack.c.b16 %v1778, %v1774
    %v2639 = vpack.c.b16 %v1779, %v1775
    %v2640 = vpack.c.b16 %v1784, %v1780
    %v2641 = vpack.c.b16 %v1785, %v1781
    %v2642 = vpack.c.b16 %v1786, %v1782
    %v2643 = vpack.c.b16 %v1787, %v1783
    %v2644 = vpack.c.b16 %v1792, %v1788
    %v2645 = vpack.c.b16 %v1793, %v1789
    %v2646 = vpack.c.b16 %v1794, %v1790
    %v2647 = vpack.c.b16 %v1795, %v1791
    %v2648 = vpack.c.b16 %v1800, %v1796
    %v2649 = vpack.c.b16 %v1801, %v1797
    %v2650 = vpack.c.b16 %v1802, %v1798
    %v2651 = vpack.c.b16 %v1803, %v1799
    %v2652 = vpack.c.b16 %v1808, %v1804
    %v2653 = vpack.c.b16 %v1809, %v1805
    %v2654 = vpack.c.b16 %v1810, %v1806
    %v2655 = vpack.c.b16 %v1811, %v1807
    %v2656 = vpack.c.b16 %v1816, %v1812
    %v2657 = vpack.c.b16 %v1817, %v1813
    %v2658 = vpack.c.b16 %v1818, %v1814
    %v2659 = vpack.c.b16 %v1819, %v1815
    %v2660 = vpack.c.b16 %v1824, %v1820
    %v2661 = vpack.c.b16 %v1825, %v1821
    %v2662 = vpack.c.b16 %v1826, %v1822
    %v2663 = vpack.c.b16 %v1827, %v1823
    %v2664 = vpack.c.b16 %v1832, %v1828
    %v2665 = vpack.c.b16 %v1833, %v1829
    %v2666 = vpack.c.b16 %v1834, %v1830
    %v2667 = vpack.c.b16 %v1835, %v1831
    %v2668 = vpack.c.b16 %v1840, %v1836
    %v2669 = vpack.c.b16 %v1841, %v1837
    %v2670 = vpack.c.b16 %v1842, %v1838
    %v2671 = vpack.c.b16 %v1843, %v1839
    %v2672 = vpack.c.b16 %v1848, %v1844
    %v2673 = vpack.c.b16 %v1849, %v1845
    %v2674 = vpack.c.b16 %v1850, %v1846
    %v2675 = vpack.c.b16 %v1851, %v1847
    %v2676 = vpack.c.b16 %v1856, %v1852
    %v2677 = vpack.c.b16 %v1857, %v1853
    %v2678 = vpack.c.b16 %v1858, %v1854
    %v2679 = vpack.c.b16 %v1859, %v1855
    %v2680 = vpack.c.b16 %v1864, %v1860
    %v2681 = vpack.c.b16 %v1865, %v1861
    %v2682 = vpack.c.b16 %v1866, %v1862
    %v2683 = vpack.c.b16 %v1867, %v1863
    %v2684 = vpack.c.b16 %v1872, %v1868
    %v2685 = vpack.c.b16 %v1873, %v1869
    %v2686 = vpack.c.b16 %v1874, %v1870
    %v2687 = vpack.c.b16 %v1875, %v1871
    %v2688 = vpack.c.b16 %v1880, %v1876
    %v2689 = vpack.c.b16 %v1881, %v1877
    %v2690 = vpack.c.b16 %v1882, %v1878
    %v2691 = vpack.c.b16 %v1883, %v1879
    %v2692 = vpack.c.b16 %v1888, %v1884
    %v2693 = vpack.c.b16 %v1889, %v1885
    %v2694 = vpack.c.b16 %v1890, %v1886
    %v2695 = vpack.c.b16 %v1891, %v1887
    %v2696 = vpack.c.b16 %v1896, %v1892
    %v2697 = vpack.c.b16 %v1897, %v1893
    %v2698 = vpack.c.b16 %v1898, %v1894
    %v2699 = vpack.c.b16 %v1899, %v1895
    %v2700 = vpack.c.b16 %v1904, %v1900
    %v2701 = vpack.c.b16 %v1905, %v1901
    %v2702 = vpack.c.b16 %v1906, %v1902
    %v2703 = vpack.c.b16 %v1907, %v1903
    %v2704 = vpack.c.b16 %v1912, %v1908
    %v2705 = vpack.c.b16 %v1913, %v1909
    %v2706 = vpack.c.b16 %v1914, %v1910
    %v2707 = vpack.c.b16 %v1915, %v1911
    %v2708 = vpack.c.b16 %v1920, %v1916
    %v2709 = vpack.c.b16 %v1921, %v1917
    %v2710 = vpack.c.b16 %v1922, %v1918
    %v2711 = vpack.c.b16 %v1923, %v1919
    %v2712 = vpack.c.b16 %v1928, %v1924
    %v2713 = vpack.c.b16 %v1929, %v1925
    %v2714 = vpack.c.b16 %v1930, %v1926
    %v2715 = vpack.c.b16 %v1931, %v1927
    %v2716 = vpack.c.b16 %v1936, %v1932
    %v2717 = vpack.c.b16 %v1937, %v1933
    %v2718 = vpack.c.b16 %v1938, %v1934
    %v2719 = vpack.c.b16 %v1939, %v1935
    %v2720 = vpack.c.b16 %v1944, %v1940
    %v2721 = vpack.c.b16 %v1945, %v1941
    %v2722 = vpack.c.b16 %v1946, %v1942
    %v2723 = vpack.c.b16 %v1947, %v1943
    %v2724 = vpack.c.b16 %v1952, %v1948
    %v2725 = vpack.c.b16 %v1953, %v1949
    %v2726 = vpack.c.b16 %v1954, %v1950
    %v2727 = vpack.c.b16 %v1955, %v1951
    %v2728 = vpack.c.b16 %v1960, %v1956
    %v2729 = vpack.c.b16 %v1961, %v1957
    %v2730 = vpack.c.b16 %v1962, %v1958
    %v2731 = vpack.c.b16 %v1963, %v1959
    %v2732 = vpack.c.b16 %v1968, %v1964
    %v2733 = vpack.c.b16 %v1969, %v1965
    %v2734 = vpack.c.b16 %v1970, %v1966
    %v2735 = vpack.c.b16 %v1971, %v1967
    %v2736 = vpack.c.b16 %v1976, %v1972
    %v2737 = vpack.c.b16 %v1977, %v1973
    %v2738 = vpack.c.b16 %v1978, %v1974
    %v2739 = vpack.c.b16 %v1979, %v1975
    %v2740 = vpack.c.b16 %v1984, %v1980
    %v2741 = vpack.c.b16 %v1985, %v1981
    %v2742 = vpack.c.b16 %v1986, %v1982
    %v2743 = vpack.c.b16 %v1987, %v1983
    %v2744 = vpack.c.b16 %v1992, %v1988
    %v2745 = vpack.c.b16 %v1993, %v1989
    %v2746 = vpack.c.b16 %v1994, %v1990
    %v2747 = vpack.c.b16 %v1995, %v1991
    %v2748 = vpack.c.b16 %v2000, %v1996
    %v2749 = vpack.c.b16 %v2001, %v1997
    %v2750 = vpack.c.b16 %v2002, %v1998
    %v2751 = vpack.c.b16 %v2003, %v1999
    %v2752 = vpack.c.b16 %v2008, %v2004
    %v2753 = vpack.c.b16 %v2009, %v2005
    %v2754 = vpack.c.b16 %v2010, %v2006
    %v2755 = vpack.c.b16 %v2011, %v2007
    %v2756 = vpack.c.b16 %v2016, %v2012
    %v2757 = vpack.c.b16 %v2017, %v2013
    %v2758 = vpack.c.b16 %v2018, %v2014
    %v2759 = vpack.c.b16 %v2019, %v2015
    %v2760 = vpack.c.b16 %v2024, %v2020
    %v2761 = vpack.c.b16 %v2025, %v2021
    %v2762 = vpack.c.b16 %v2026, %v2022
    %v2763 = vpack.c.b16 %v2027, %v2023
    %v2764 = vpack.c.b16 %v2032, %v2028
    %v2765 = vpack.c.b16 %v2033, %v2029
    %v2766 = vpack.c.b16 %v2034, %v2030
    %v2767 = vpack.c.b16 %v2035, %v2031
    %v2768 = vpack.c.b16 %v2040, %v2036
    %v2769 = vpack.c.b16 %v2041, %v2037
    %v2770 = vpack.c.b16 %v2042, %v2038
    %v2771 = vpack.c.b16 %v2043, %v2039
    %v2772 = vpack.c.b16 %v2048, %v2044
    %v2773 = vpack.c.b16 %v2049, %v2045
    %v2774 = vpack.c.b16 %v2050, %v2046
    %v2775 = vpack.c.b16 %v2051, %v2047
    %v2776 = vpack.c.b16 %v2056, %v2052
    %v2777 = vpack.c.b16 %v2057, %v2053
    %v2778 = vpack.c.b16 %v2058, %v2054
    %v2779 = vpack.c.b16 %v2059, %v2055
    %v2780 = vpack.c.b16 %v2064, %v2060
    %v2781 = vpack.c.b16 %v2065, %v2061
    %v2782 = vpack.c.b16 %v2066, %v2062
    %v2783 = vpack.c.b16 %v2067, %v2063
    %v2784 = vpack.c.b16 %v2072, %v2068
    %v2785 = vpack.c.b16 %v2073, %v2069
    %v2786 = vpack.c.b16 %v2074, %v2070
    %v2787 = vpack.c.b16 %v2075, %v2071
    %v2788 = vpack.c.b16 %v2080, %v2076
    %v2789 = vpack.c.b16 %v2081, %v2077
    %v2790 = vpack.c.b16 %v2082, %v2078
    %v2791 = vpack.c.b16 %v2083, %v2079
    %v2792 = vpack.c.b16 %v2088, %v2084
    %v2793 = vpack.c.b16 %v2089, %v2085
    %v2794 = vpack.c.b16 %v2090, %v2086
    %v2795 = vpack.c.b16 %v2091, %v2087
    %v2796 = vpack.c.b16 %v2096, %v2092
    %v2797 = vpack.c.b16 %v2097, %v2093
    %v2798 = vpack.c.b16 %v2098, %v2094
    %v2799 = vpack.c.b16 %v2099, %v2095
    %v2800 = vpack.c.b16 %v2104, %v2100
    %v2801 = vpack.c.b16 %v2105, %v2101
    %v2802 = vpack.c.b16 %v2106, %v2102
    %v2803 = vpack.c.b16 %v2107, %v2103
    %v2804 = vpack.c.b16 %v2112, %v2108
    %v2805 = vpack.c.b16 %v2113, %v2109
    %v2806 = vpack.c.b16 %v2114, %v2110
    %v2807 = vpack.c.b16 %v2115, %v2111
    %v2808 = vpack.c.b16 %v2120, %v2116
    %v2809 = vpack.c.b16 %v2121, %v2117
    %v2810 = vpack.c.b16 %v2122, %v2118
    %v2811 = vpack.c.b16 %v2123, %v2119
    %v2812 = vpack.c.b16 %v2128, %v2124
    %v2813 = vpack.c.b16 %v2129, %v2125
    %v2814 = vpack.c.b16 %v2130, %v2126
    %v2815 = vpack.c.b16 %v2131, %v2127
    %v2816 = vpack.c.b16 %v2136, %v2132
    %v2817 = vpack.c.b16 %v2137, %v2133
    %v2818 = vpack.c.b16 %v2138, %v2134
    %v2819 = vpack.c.b16 %v2139, %v2135
    %v2820 = vpack.c.b16 %v2144, %v2140
    %v2821 = vpack.c.b16 %v2145, %v2141
    %v2822 = vpack.c.b16 %v2146, %v2142
    %v2823 = vpack.c.b16 %v2147, %v2143
    %v2824 = vpack.c.b16 %v2152, %v2148
    %v2825 = vpack.c.b16 %v2153, %v2149
    %v2826 = vpack.c.b16 %v2154, %v2150
    %v2827 = vpack.c.b16 %v2155, %v2151
    %v2828 = vpack.c.b16 %v2160, %v2156
    %v2829 = vpack.c.b16 %v2161, %v2157
    %v2830 = vpack.c.b16 %v2162, %v2158
    %v2831 = vpack.c.b16 %v2163, %v2159
    %v2832 = vpack.c.b16 %v2168, %v2164
    %v2833 = vpack.c.b16 %v2169, %v2165
    %v2834 = vpack.c.b16 %v2170, %v2166
    %v2835 = vpack.c.b16 %v2171, %v2167
    %v2836 = vpack.c.b16 %v2176, %v2172
    %v2837 = vpack.c.b16 %v2177, %v2173
    %v2838 = vpack.c.b16 %v2178, %v2174
    %v2839 = vpack.c.b16 %v2179, %v2175
    %v2840 = vpack.c.b16 %v2184, %v2180
    %v2841 = vpack.c.b16 %v2185, %v2181
    %v2842 = vpack.c.b16 %v2186, %v2182
    %v2843 = vpack.c.b16 %v2187, %v2183
    %v2844 = vpack.c.b16 %v2192, %v2188
    %v2845 = vpack.c.b16 %v2193, %v2189
    %v2846 = vpack.c.b16 %v2194, %v2190
    %v2847 = vpack.c.b16 %v2195, %v2191
    %v2848 = vpack.c.b16 %v2200, %v2196
    %v2849 = vpack.c.b16 %v2201, %v2197
    %v2850 = vpack.c.b16 %v2202, %v2198
    %v2851 = vpack.c.b16 %v2203, %v2199
    %v2852 = vpack.c.b16 %v2208, %v2204
    %v2853 = vpack.c.b16 %v2209, %v2205
    %v2854 = vpack.c.b16 %v2210, %v2206
    %v2855 = vpack.c.b16 %v2211, %v2207
    %v2856 = vpack.c.b16 %v2216, %v2212
    %v2857 = vpack.c.b16 %v2217, %v2213
    %v2858 = vpack.c.b16 %v2218, %v2214
    %v2859 = vpack.c.b16 %v2219, %v2215
    %v2860 = vpack.c.b16 %v2224, %v2220
    %v2861 = vpack.c.b16 %v2225, %v2221
    %v2862 = vpack.c.b16 %v2226, %v2222
    %v2863 = vpack.c.b16 %v2227, %v2223
    %v2864 = vpack.c.b16 %v2232, %v2228
    %v2865 = vpack.c.b16 %v2233, %v2229
    %v2866 = vpack.c.b16 %v2234, %v2230
    %v2867 = vpack.c.b16 %v2235, %v2231
    %v2868 = vpack.c.b16 %v2240, %v2236
    %v2869 = vpack.c.b16 %v2241, %v2237
    %v2870 = vpack.c.b16 %v2242, %v2238
    %v2871 = vpack.c.b16 %v2243, %v2239
    %v2872 = vpack.c.b16 %v2248, %v2244
    %v2873 = vpack.c.b16 %v2249, %v2245
    %v2874 = vpack.c.b16 %v2250, %v2246
    %v2875 = vpack.c.b16 %v2251, %v2247
    %v2876 = vpack.c.b16 %v2256, %v2252
    %v2877 = vpack.c.b16 %v2257, %v2253
    %v2878 = vpack.c.b16 %v2258, %v2254
    %v2879 = vpack.c.b16 %v2259, %v2255
    %v2880 = vpack.c.b16 %v2264, %v2260
    %v2881 = vpack.c.b16 %v2265, %v2261
    %v2882 = vpack.c.b16 %v2266, %v2262
    %v2883 = vpack.c.b16 %v2267, %v2263
    %v2884 = vpack.c.b16 %v2272, %v2268
    %v2885 = vpack.c.b16 %v2273, %v2269
    %v2886 = vpack.c.b16 %v2274, %v2270
    %v2887 = vpack.c.b16 %v2275, %v2271
    %v2888 = vpack.c.b16 %v2280, %v2276
    %v2889 = vpack.c.b16 %v2281, %v2277
    %v2890 = vpack.c.b16 %v2282, %v2278
    %v2891 = vpack.c.b16 %v2283, %v2279
    %v2892 = vpack.c.b16 %v2288, %v2284
    %v2893 = vpack.c.b16 %v2289, %v2285
    %v2894 = vpack.c.b16 %v2290, %v2286
    %v2895 = vpack.c.b16 %v2291, %v2287
    %v2896 = vpack.c.b16 %v2296, %v2292
    %v2897 = vpack.c.b16 %v2297, %v2293
    %v2898 = vpack.c.b16 %v2298, %v2294
    %v2899 = vpack.c.b16 %v2299, %v2295
    %v2900 = vpack.c.b16 %v2304, %v2300
    %v2901 = vpack.c.b16 %v2305, %v2301
    %v2902 = vpack.c.b16 %v2306, %v2302
    %v2903 = vpack.c.b16 %v2307, %v2303
    %v2904 = vpack.c.b16 %v2312, %v2308
    %v2905 = vpack.c.b16 %v2313, %v2309
    %v2906 = vpack.c.b16 %v2314, %v2310
    %v2907 = vpack.c.b16 %v2315, %v2311
    %v2908 = vpack.c.b16 %v2320, %v2316
    %v2909 = vpack.c.b16 %v2321, %v2317
    %v2910 = vpack.c.b16 %v2322, %v2318
    %v2911 = vpack.c.b16 %v2323, %v2319
    %v2912 = vpack.c.b16 %v2328, %v2324
    %v2913 = vpack.c.b16 %v2329, %v2325
    %v2914 = vpack.c.b16 %v2330, %v2326
    %v2915 = vpack.c.b16 %v2331, %v2327
    %v2916 = vpack.c.b16 %v2336, %v2332
    %v2917 = vpack.c.b16 %v2337, %v2333
    %v2918 = vpack.c.b16 %v2338, %v2334
    %v2919 = vpack.c.b16 %v2339, %v2335
    %v2920 = vpack.c.b16 %v2344, %v2340
    %v2921 = vpack.c.b16 %v2345, %v2341
    %v2922 = vpack.c.b16 %v2346, %v2342
    %v2923 = vpack.c.b16 %v2347, %v2343
    %v2924 = vpack.c.b16 %v2352, %v2348
    %v2925 = vpack.c.b16 %v2353, %v2349
    %v2926 = vpack.c.b16 %v2354, %v2350
    %v2927 = vpack.c.b16 %v2355, %v2351
    %v2928 = vpack.c.b16 %v2360, %v2356
    %v2929 = vpack.c.b16 %v2361, %v2357
    %v2930 = vpack.c.b16 %v2362, %v2358
    %v2931 = vpack.c.b16 %v2363, %v2359
    %v2932 = vpack.c.b16 %v2368, %v2364
    %v2933 = vpack.c.b16 %v2369, %v2365
    %v2934 = vpack.c.b16 %v2370, %v2366
    %v2935 = vpack.c.b16 %v2371, %v2367
    %v2936 = vpack.c.b16 %v2376, %v2372
    %v2937 = vpack.c.b16 %v2377, %v2373
    %v2938 = vpack.c.b16 %v2378, %v2374
    %v2939 = vpack.c.b16 %v2379, %v2375
    %v2940 = vpack.c.b16 %v2384, %v2380
    %v2941 = vpack.c.b16 %v2385, %v2381
    %v2942 = vpack.c.b16 %v2386, %v2382
    %v2943 = vpack.c.b16 %v2387, %v2383
    %v2944 = vpack.c.b16 %v2392, %v2388
    %v2945 = vpack.c.b16 %v2393, %v2389
    %v2946 = vpack.c.b16 %v2394, %v2390
    %v2947 = vpack.c.b16 %v2395, %v2391
    %v2948 = vpack.c.b16 %v2400, %v2396
    %v2949 = vpack.c.b16 %v2401, %v2397
    %v2950 = vpack.c.b16 %v2402, %v2398
    %v2951 = vpack.c.b16 %v2403, %v2399
    %v2952 = vpack.c.b16 %v2408, %v2404
    %v2953 = vpack.c.b16 %v2409, %v2405
    %v2954 = vpack.c.b16 %v2410, %v2406
    %v2955 = vpack.c.b16 %v2411, %v2407
    %v2956 = vpack.c.b16 %v2416, %v2412
    %v2957 = vpack.c.b16 %v2417, %v2413
    %v2958 = vpack.c.b16 %v2418, %v2414
    %v2959 = vpack.c.b16 %v2419, %v2415
    %v2960 = vpack.c.b16 %v2424, %v2420
    %v2961 = vpack.c.b16 %v2425, %v2421
    %v2962 = vpack.c.b16 %v2426, %v2422
    %v2963 = vpack.c.b16 %v2427, %v2423
    %v2964 = vpack.c.b16 %v2432, %v2428
    %v2965 = vpack.c.b16 %v2433, %v2429
    %v2966 = vpack.c.b16 %v2434, %v2430
    %v2967 = vpack.c.b16 %v2435, %v2431
    %v2968 = vpack.c.b16 %v2440, %v2436
    %v2969 = vpack.c.b16 %v2441, %v2437
    %v2970 = vpack.c.b16 %v2442, %v2438
    %v2971 = vpack.c.b16 %v2443, %v2439
    %v2972 = vpack.c.b16 %v2448, %v2444
    %v2973 = vpack.c.b16 %v2449, %v2445
    %v2974 = vpack.c.b16 %v2450, %v2446
    %v2975 = vpack.c.b16 %v2451, %v2447
    %v2976 = vpack.c.b16 %v2456, %v2452
    %v2977 = vpack.c.b16 %v2457, %v2453
    %v2978 = vpack.c.b16 %v2458, %v2454
    %v2979 = vpack.c.b16 %v2459, %v2455
    %v2980 = vpack.c.b16 %v2464, %v2460
    %v2981 = vpack.c.b16 %v2465, %v2461
    %v2982 = vpack.c.b16 %v2466, %v2462
    %v2983 = vpack.c.b16 %v2467, %v2463
    %v2984 = vpack.c.b16 %v2472, %v2468
    %v2985 = vpack.c.b16 %v2473, %v2469
    %v2986 = vpack.c.b16 %v2474, %v2470
    %v2987 = vpack.c.b16 %v2475, %v2471
    %3500 = vmatprep.subr.bf16.mxu0 %v2505
    %3501 = vmatpush1.bf16.msra.mxu0 %v2504
    %3502 = vmatprep.subr.bf16.mxu0 %v2501
    %3503 = vmatpush1.bf16.msra.mxu0 %v2500
    %3504 = vmatprep.subr.bf16.mxu0 %v2497
    %3505 = vmatpush1.bf16.msra.mxu0 %v2496
    %3506 = vmatprep.subr.bf16.mxu0 %v2493
    %3507 = vmatpush1.bf16.msra.mxu0 %v2492
    %3508 = vmatprep.subr.bf16.mxu0 %v2489
    %3509 = vmatpush1.bf16.msra.mxu0 %v2488
    %3510 = vmatprep.subr.bf16.mxu0 %v2485
    %3511 = vmatpush1.bf16.msra.mxu0 %v2484
    %3512 = vmatprep.subr.bf16.mxu0 %v2481
    %3513 = vmatpush1.bf16.msra.mxu0 %v2480
    %3514 = vmatprep.subr.bf16.mxu0 %v2477
    %3515 = vmatpush1.bf16.msra.mxu0 %v2476
    %3516 = vmatprep.subr.bf16.mxu0 %v2537
    %3517 = vmatpush2.bf16.msra.mxu0 %v2536
    %3518 = vmatprep.subr.bf16.mxu0 %v2533
    %3519 = vmatpush2.bf16.msra.mxu0 %v2532
    %3520 = vmatprep.subr.bf16.mxu0 %v2529
    %3521 = vmatpush2.bf16.msra.mxu0 %v2528
    %3522 = vmatprep.subr.bf16.mxu0 %v2525
    %3523 = vmatpush2.bf16.msra.mxu0 %v2524
    %3524 = vmatprep.subr.bf16.mxu0 %v2521
    %3525 = vmatpush2.bf16.msra.mxu0 %v2520
    %3526 = vmatprep.subr.bf16.mxu0 %v2517
    %3527 = vmatpush2.bf16.msra.mxu0 %v2516
    %3528 = vmatprep.subr.bf16.mxu0 %v2513
    %3529 = vmatpush2.bf16.msra.mxu0 %v2512
    %3530 = vmatprep.subr.bf16.mxu0 %v2509
    %3531 = vmatpush2.bf16.msra.mxu0 %v2508
    %3532 = vmatprep.mubr.bf16.mxu0 %v413
    %3533 = vmatmul.mubr.bf16.gmra.mxu0 %v412
    %v3534 = vpop.f32.mrf.mxu0
    %v3535 = vadd.f32 0.0, %v3534
    %v3536 = vpop.f32.mrf.mxu0
    %v3537 = vadd.f32 0.0, %v3536
    %v3538 = vpop.f32.mrf.mxu0
    %v3539 = vpop.f32.mrf.mxu0
    %3540 = vdwg.mxu0
    %3541 = vmatprep.subr.bf16.mxu0 %v2569
    %3542 = vmatpush1.bf16.msra.mxu0 %v2568
    %3543 = vmatprep.subr.bf16.mxu0 %v2565
    %3544 = vmatpush1.bf16.msra.mxu0 %v2564
    %3545 = vmatprep.subr.bf16.mxu0 %v2561
    %3546 = vmatpush1.bf16.msra.mxu0 %v2560
    %3547 = vmatprep.subr.bf16.mxu0 %v2557
    %3548 = vmatpush1.bf16.msra.mxu0 %v2556
    %3549 = vmatprep.subr.bf16.mxu0 %v2553
    %3550 = vmatpush1.bf16.msra.mxu0 %v2552
    %3551 = vmatprep.subr.bf16.mxu0 %v2549
    %3552 = vmatpush1.bf16.msra.mxu0 %v2548
    %3553 = vmatprep.subr.bf16.mxu0 %v2545
    %3554 = vmatpush1.bf16.msra.mxu0 %v2544
    %3555 = vmatprep.subr.bf16.mxu0 %v2541
    %3556 = vmatpush1.bf16.msra.mxu0 %v2540
    %3557 = vmatprep.subr.bf16.mxu0 %v2601
    %3558 = vmatpush2.bf16.msra.mxu0 %v2600
    %3559 = vmatprep.subr.bf16.mxu0 %v2597
    %3560 = vmatpush2.bf16.msra.mxu0 %v2596
    %3561 = vmatprep.subr.bf16.mxu0 %v2593
    %3562 = vmatpush2.bf16.msra.mxu0 %v2592
    %3563 = vmatprep.subr.bf16.mxu0 %v2589
    %3564 = vmatpush2.bf16.msra.mxu0 %v2588
    %3565 = vmatprep.subr.bf16.mxu0 %v2585
    %3566 = vmatpush2.bf16.msra.mxu0 %v2584
    %3567 = vmatprep.subr.bf16.mxu0 %v2581
    %3568 = vmatpush2.bf16.msra.mxu0 %v2580
    %3569 = vmatprep.subr.bf16.mxu0 %v2577
    %3570 = vmatpush2.bf16.msra.mxu0 %v2576
    %3571 = vmatprep.subr.bf16.mxu0 %v2573
    %3572 = vmatpush2.bf16.msra.mxu0 %v2572
    %3573 = vmatprep.mubr.bf16.mxu0 %v415
    %3574 = vmatmul.mubr.bf16.gmra.mxu0 %v414
    %v3575 = vpop.f32.mrf.mxu0
    %v3576 = vadd.f32 %v3535, %v3575
    %v3577 = vpop.f32.mrf.mxu0
    %v3578 = vadd.f32 %v3537, %v3577
    %v3579 = vpop.f32.mrf.mxu0
    %v3580 = vpop.f32.mrf.mxu0
    %3581 = vdwg.mxu0
    %3582 = vmatprep.subr.bf16.mxu0 %v2633
    %3583 = vmatpush1.bf16.msra.mxu0 %v2632
    %3584 = vmatprep.subr.bf16.mxu0 %v2629
    %3585 = vmatpush1.bf16.msra.mxu0 %v2628
    %3586 = vmatprep.subr.bf16.mxu0 %v2625
    %3587 = vmatpush1.bf16.msra.mxu0 %v2624
    %3588 = vmatprep.subr.bf16.mxu0 %v2621
    %3589 = vmatpush1.bf16.msra.mxu0 %v2620
    %3590 = vmatprep.subr.bf16.mxu0 %v2617
    %3591 = vmatpush1.bf16.msra.mxu0 %v2616
    %3592 = vmatprep.subr.bf16.mxu0 %v2613
    %3593 = vmatpush1.bf16.msra.mxu0 %v2612
    %3594 = vmatprep.subr.bf16.mxu0 %v2609
    %3595 = vmatpush1.bf16.msra.mxu0 %v2608
    %3596 = vmatprep.subr.bf16.mxu0 %v2605
    %3597 = vmatpush1.bf16.msra.mxu0 %v2604
    %3598 = vmatprep.subr.bf16.mxu0 %v2665
    %3599 = vmatpush2.bf16.msra.mxu0 %v2664
    %3600 = vmatprep.subr.bf16.mxu0 %v2661
    %3601 = vmatpush2.bf16.msra.mxu0 %v2660
    %3602 = vmatprep.subr.bf16.mxu0 %v2657
    %3603 = vmatpush2.bf16.msra.mxu0 %v2656
    %3604 = vmatprep.subr.bf16.mxu0 %v2653
    %3605 = vmatpush2.bf16.msra.mxu0 %v2652
    %3606 = vmatprep.subr.bf16.mxu0 %v2649
    %3607 = vmatpush2.bf16.msra.mxu0 %v2648
    %3608 = vmatprep.subr.bf16.mxu0 %v2645
    %3609 = vmatpush2.bf16.msra.mxu0 %v2644
    %3610 = vmatprep.subr.bf16.mxu0 %v2641
    %3611 = vmatpush2.bf16.msra.mxu0 %v2640
    %3612 = vmatprep.subr.bf16.mxu0 %v2637
    %3613 = vmatpush2.bf16.msra.mxu0 %v2636
    %3614 = vmatprep.mubr.bf16.mxu0 %v417
    %3615 = vmatmul.mubr.bf16.gmra.mxu0 %v416
    %v3616 = vpop.f32.mrf.mxu0
    %v3617 = vadd.f32 %v3576, %v3616
    %v3618 = vpop.f32.mrf.mxu0
    %v3619 = vadd.f32 %v3578, %v3618
    %v3620 = vpop.f32.mrf.mxu0
    %v3621 = vpop.f32.mrf.mxu0
    %3622 = vdwg.mxu0
    %3623 = vmatprep.subr.bf16.mxu0 %v2697
    %3624 = vmatpush1.bf16.msra.mxu0 %v2696
    %3625 = vmatprep.subr.bf16.mxu0 %v2693
    %3626 = vmatpush1.bf16.msra.mxu0 %v2692
    %3627 = vmatprep.subr.bf16.mxu0 %v2689
    %3628 = vmatpush1.bf16.msra.mxu0 %v2688
    %3629 = vmatprep.subr.bf16.mxu0 %v2685
    %3630 = vmatpush1.bf16.msra.mxu0 %v2684
    %3631 = vmatprep.subr.bf16.mxu0 %v2681
    %3632 = vmatpush1.bf16.msra.mxu0 %v2680
    %3633 = vmatprep.subr.bf16.mxu0 %v2677
    %3634 = vmatpush1.bf16.msra.mxu0 %v2676
    %3635 = vmatprep.subr.bf16.mxu0 %v2673
    %3636 = vmatpush1.bf16.msra.mxu0 %v2672
    %3637 = vmatprep.subr.bf16.mxu0 %v2669
    %3638 = vmatpush1.bf16.msra.mxu0 %v2668
    %3639 = vmatprep.subr.bf16.mxu0 %v2729
    %3640 = vmatpush2.bf16.msra.mxu0 %v2728
    %3641 = vmatprep.subr.bf16.mxu0 %v2725
    %3642 = vmatpush2.bf16.msra.mxu0 %v2724
    %3643 = vmatprep.subr.bf16.mxu0 %v2721
    %3644 = vmatpush2.bf16.msra.mxu0 %v2720
    %3645 = vmatprep.subr.bf16.mxu0 %v2717
    %3646 = vmatpush2.bf16.msra.mxu0 %v2716
    %3647 = vmatprep.subr.bf16.mxu0 %v2713
    %3648 = vmatpush2.bf16.msra.mxu0 %v2712
    %3649 = vmatprep.subr.bf16.mxu0 %v2709
    %3650 = vmatpush2.bf16.msra.mxu0 %v2708
    %3651 = vmatprep.subr.bf16.mxu0 %v2705
    %3652 = vmatpush2.bf16.msra.mxu0 %v2704
    %3653 = vmatprep.subr.bf16.mxu0 %v2701
    %3654 = vmatpush2.bf16.msra.mxu0 %v2700
    %3655 = vmatprep.mubr.bf16.mxu0 %v419
    %3656 = vmatmul.mubr.bf16.gmra.mxu0 %v418
    %v3657 = vpop.f32.mrf.mxu0
    %v3658 = vadd.f32 %v3617, %v3657
    %v3659 = vpop.f32.mrf.mxu0
    %v3660 = vadd.f32 %v3619, %v3659
    %v3661 = vpop.f32.mrf.mxu0
    %v3662 = vpop.f32.mrf.mxu0
    %3663 = vdwg.mxu0
    %3664 = vmatprep.subr.bf16.mxu0 %v2761
    %3665 = vmatpush1.bf16.msra.mxu0 %v2760
    %3666 = vmatprep.subr.bf16.mxu0 %v2757
    %3667 = vmatpush1.bf16.msra.mxu0 %v2756
    %3668 = vmatprep.subr.bf16.mxu0 %v2753
    %3669 = vmatpush1.bf16.msra.mxu0 %v2752
    %3670 = vmatprep.subr.bf16.mxu0 %v2749
    %3671 = vmatpush1.bf16.msra.mxu0 %v2748
    %3672 = vmatprep.subr.bf16.mxu0 %v2745
    %3673 = vmatpush1.bf16.msra.mxu0 %v2744
    %3674 = vmatprep.subr.bf16.mxu0 %v2741
    %3675 = vmatpush1.bf16.msra.mxu0 %v2740
    %3676 = vmatprep.subr.bf16.mxu0 %v2737
    %3677 = vmatpush1.bf16.msra.mxu0 %v2736
    %3678 = vmatprep.subr.bf16.mxu0 %v2733
    %3679 = vmatpush1.bf16.msra.mxu0 %v2732
    %3680 = vmatprep.subr.bf16.mxu0 %v2793
    %3681 = vmatpush2.bf16.msra.mxu0 %v2792
    %3682 = vmatprep.subr.bf16.mxu0 %v2789
    %3683 = vmatpush2.bf16.msra.mxu0 %v2788
    %3684 = vmatprep.subr.bf16.mxu0 %v2785
    %3685 = vmatpush2.bf16.msra.mxu0 %v2784
    %3686 = vmatprep.subr.bf16.mxu0 %v2781
    %3687 = vmatpush2.bf16.msra.mxu0 %v2780
    %3688 = vmatprep.subr.bf16.mxu0 %v2777
    %3689 = vmatpush2.bf16.msra.mxu0 %v2776
    %3690 = vmatprep.subr.bf16.mxu0 %v2773
    %3691 = vmatpush2.bf16.msra.mxu0 %v2772
    %3692 = vmatprep.subr.bf16.mxu0 %v2769
    %3693 = vmatpush2.bf16.msra.mxu0 %v2768
    %3694 = vmatprep.subr.bf16.mxu0 %v2765
    %3695 = vmatpush2.bf16.msra.mxu0 %v2764
    %3696 = vmatprep.mubr.bf16.mxu0 %v421
    %3697 = vmatmul.mubr.bf16.gmra.mxu0 %v420
    %v3698 = vpop.f32.mrf.mxu0
    %v3699 = vadd.f32 %v3658, %v3698
    %v3700 = vpop.f32.mrf.mxu0
    %v3701 = vadd.f32 %v3660, %v3700
    %v3702 = vpop.f32.mrf.mxu0
    %v3703 = vpop.f32.mrf.mxu0
    %3704 = vdwg.mxu0
    %3705 = vmatprep.subr.bf16.mxu0 %v2825
    %3706 = vmatpush1.bf16.msra.mxu0 %v2824
    %3707 = vmatprep.subr.bf16.mxu0 %v2821
    %3708 = vmatpush1.bf16.msra.mxu0 %v2820
    %3709 = vmatprep.subr.bf16.mxu0 %v2817
    %3710 = vmatpush1.bf16.msra.mxu0 %v2816
    %3711 = vmatprep.subr.bf16.mxu0 %v2813
    %3712 = vmatpush1.bf16.msra.mxu0 %v2812
    %3713 = vmatprep.subr.bf16.mxu0 %v2809
    %3714 = vmatpush1.bf16.msra.mxu0 %v2808
    %3715 = vmatprep.subr.bf16.mxu0 %v2805
    %3716 = vmatpush1.bf16.msra.mxu0 %v2804
    %3717 = vmatprep.subr.bf16.mxu0 %v2801
    %3718 = vmatpush1.bf16.msra.mxu0 %v2800
    %3719 = vmatprep.subr.bf16.mxu0 %v2797
    %3720 = vmatpush1.bf16.msra.mxu0 %v2796
    %3721 = vmatprep.subr.bf16.mxu0 %v2857
    %3722 = vmatpush2.bf16.msra.mxu0 %v2856
    %3723 = vmatprep.subr.bf16.mxu0 %v2853
    %3724 = vmatpush2.bf16.msra.mxu0 %v2852
    %3725 = vmatprep.subr.bf16.mxu0 %v2849
    %3726 = vmatpush2.bf16.msra.mxu0 %v2848
    %3727 = vmatprep.subr.bf16.mxu0 %v2845
    %3728 = vmatpush2.bf16.msra.mxu0 %v2844
    %3729 = vmatprep.subr.bf16.mxu0 %v2841
    %3730 = vmatpush2.bf16.msra.mxu0 %v2840
    %3731 = vmatprep.subr.bf16.mxu0 %v2837
    %3732 = vmatpush2.bf16.msra.mxu0 %v2836
    %3733 = vmatprep.subr.bf16.mxu0 %v2833
    %3734 = vmatpush2.bf16.msra.mxu0 %v2832
    %3735 = vmatprep.subr.bf16.mxu0 %v2829
    %3736 = vmatpush2.bf16.msra.mxu0 %v2828
    %3737 = vmatprep.mubr.bf16.mxu0 %v423
    %3738 = vmatmul.mubr.bf16.gmra.mxu0 %v422
    %v3739 = vpop.f32.mrf.mxu0
    %v3740 = vadd.f32 %v3699, %v3739
    %v3741 = vpop.f32.mrf.mxu0
    %v3742 = vadd.f32 %v3701, %v3741
    %v3743 = vpop.f32.mrf.mxu0
    %v3744 = vpop.f32.mrf.mxu0
    %3745 = vdwg.mxu0
    %3746 = vmatprep.subr.bf16.mxu0 %v2889
    %3747 = vmatpush1.bf16.msra.mxu0 %v2888
    %3748 = vmatprep.subr.bf16.mxu0 %v2885
    %3749 = vmatpush1.bf16.msra.mxu0 %v2884
    %3750 = vmatprep.subr.bf16.mxu0 %v2881
    %3751 = vmatpush1.bf16.msra.mxu0 %v2880
    %3752 = vmatprep.subr.bf16.mxu0 %v2877
    %3753 = vmatpush1.bf16.msra.mxu0 %v2876
    %3754 = vmatprep.subr.bf16.mxu0 %v2873
    %3755 = vmatpush1.bf16.msra.mxu0 %v2872
    %3756 = vmatprep.subr.bf16.mxu0 %v2869
    %3757 = vmatpush1.bf16.msra.mxu0 %v2868
    %3758 = vmatprep.subr.bf16.mxu0 %v2865
    %3759 = vmatpush1.bf16.msra.mxu0 %v2864
    %3760 = vmatprep.subr.bf16.mxu0 %v2861
    %3761 = vmatpush1.bf16.msra.mxu0 %v2860
    %3762 = vmatprep.subr.bf16.mxu0 %v2921
    %3763 = vmatpush2.bf16.msra.mxu0 %v2920
    %3764 = vmatprep.subr.bf16.mxu0 %v2917
    %3765 = vmatpush2.bf16.msra.mxu0 %v2916
    %3766 = vmatprep.subr.bf16.mxu0 %v2913
    %3767 = vmatpush2.bf16.msra.mxu0 %v2912
    %3768 = vmatprep.subr.bf16.mxu0 %v2909
    %3769 = vmatpush2.bf16.msra.mxu0 %v2908
    %3770 = vmatprep.subr.bf16.mxu0 %v2905
    %3771 = vmatpush2.bf16.msra.mxu0 %v2904
    %3772 = vmatprep.subr.bf16.mxu0 %v2901
    %3773 = vmatpush2.bf16.msra.mxu0 %v2900
    %3774 = vmatprep.subr.bf16.mxu0 %v2897
    %3775 = vmatpush2.bf16.msra.mxu0 %v2896
    %3776 = vmatprep.subr.bf16.mxu0 %v2893
    %3777 = vmatpush2.bf16.msra.mxu0 %v2892
    %3778 = vmatprep.mubr.bf16.mxu0 %v425
    %3779 = vmatmul.mubr.bf16.gmra.mxu0 %v424
    %v3780 = vpop.f32.mrf.mxu0
    %v3781 = vadd.f32 %v3740, %v3780
    %v3782 = vpop.f32.mrf.mxu0
    %v3783 = vadd.f32 %v3742, %v3782
    %v3784 = vpop.f32.mrf.mxu0
    %v3785 = vpop.f32.mrf.mxu0
    %3786 = vdwg.mxu0
    %3787 = vmatprep.subr.bf16.mxu0 %v2953
    %3788 = vmatpush1.bf16.msra.mxu0 %v2952
    %3789 = vmatprep.subr.bf16.mxu0 %v2949
    %3790 = vmatpush1.bf16.msra.mxu0 %v2948
    %3791 = vmatprep.subr.bf16.mxu0 %v2945
    %3792 = vmatpush1.bf16.msra.mxu0 %v2944
    %3793 = vmatprep.subr.bf16.mxu0 %v2941
    %3794 = vmatpush1.bf16.msra.mxu0 %v2940
    %3795 = vmatprep.subr.bf16.mxu0 %v2937
    %3796 = vmatpush1.bf16.msra.mxu0 %v2936
    %3797 = vmatprep.subr.bf16.mxu0 %v2933
    %3798 = vmatpush1.bf16.msra.mxu0 %v2932
    %3799 = vmatprep.subr.bf16.mxu0 %v2929
    %3800 = vmatpush1.bf16.msra.mxu0 %v2928
    %3801 = vmatprep.subr.bf16.mxu0 %v2925
    %3802 = vmatpush1.bf16.msra.mxu0 %v2924
    %3803 = vmatprep.subr.bf16.mxu0 %v2985
    %3804 = vmatpush2.bf16.msra.mxu0 %v2984
    %3805 = vmatprep.subr.bf16.mxu0 %v2981
    %3806 = vmatpush2.bf16.msra.mxu0 %v2980
    %3807 = vmatprep.subr.bf16.mxu0 %v2977
    %3808 = vmatpush2.bf16.msra.mxu0 %v2976
    %3809 = vmatprep.subr.bf16.mxu0 %v2973
    %3810 = vmatpush2.bf16.msra.mxu0 %v2972
    %3811 = vmatprep.subr.bf16.mxu0 %v2969
    %3812 = vmatpush2.bf16.msra.mxu0 %v2968
    %3813 = vmatprep.subr.bf16.mxu0 %v2965
    %3814 = vmatpush2.bf16.msra.mxu0 %v2964
    %3815 = vmatprep.subr.bf16.mxu0 %v2961
    %3816 = vmatpush2.bf16.msra.mxu0 %v2960
    %3817 = vmatprep.subr.bf16.mxu0 %v2957
    %3818 = vmatpush2.bf16.msra.mxu0 %v2956
    %3819 = vmatprep.mubr.bf16.mxu0 %v427
    %3820 = vmatmul.mubr.bf16.gmra.mxu0 %v426
    %v3821 = vpop.f32.mrf.mxu0
    %v3822 = vadd.f32 %v3781, %v3821
    %v3823 = vpop.f32.mrf.mxu0
    %v3824 = vadd.f32 %v3783, %v3823
    %v3825 = vpop.f32.mrf.mxu0
    %v3826 = vpop.f32.mrf.mxu0
    %3827 = vdwg.mxu0
    %3828 = vmatprep.subr.bf16.mxu0 %v2507
    %3829 = vmatpush1.bf16.msra.mxu0 %v2506
    %3830 = vmatprep.subr.bf16.mxu0 %v2503
    %3831 = vmatpush1.bf16.msra.mxu0 %v2502
    %3832 = vmatprep.subr.bf16.mxu0 %v2499
    %3833 = vmatpush1.bf16.msra.mxu0 %v2498
    %3834 = vmatprep.subr.bf16.mxu0 %v2495
    %3835 = vmatpush1.bf16.msra.mxu0 %v2494
    %3836 = vmatprep.subr.bf16.mxu0 %v2491
    %3837 = vmatpush1.bf16.msra.mxu0 %v2490
    %3838 = vmatprep.subr.bf16.mxu0 %v2487
    %3839 = vmatpush1.bf16.msra.mxu0 %v2486
    %3840 = vmatprep.subr.bf16.mxu0 %v2483
    %3841 = vmatpush1.bf16.msra.mxu0 %v2482
    %3842 = vmatprep.subr.bf16.mxu0 %v2479
    %3843 = vmatpush1.bf16.msra.mxu0 %v2478
    %3844 = vmatprep.subr.bf16.mxu0 %v2539
    %3845 = vmatpush2.bf16.msra.mxu0 %v2538
    %3846 = vmatprep.subr.bf16.mxu0 %v2535
    %3847 = vmatpush2.bf16.msra.mxu0 %v2534
    %3848 = vmatprep.subr.bf16.mxu0 %v2531
    %3849 = vmatpush2.bf16.msra.mxu0 %v2530
    %3850 = vmatprep.subr.bf16.mxu0 %v2527
    %3851 = vmatpush2.bf16.msra.mxu0 %v2526
    %3852 = vmatprep.subr.bf16.mxu0 %v2523
    %3853 = vmatpush2.bf16.msra.mxu0 %v2522
    %3854 = vmatprep.subr.bf16.mxu0 %v2519
    %3855 = vmatpush2.bf16.msra.mxu0 %v2518
    %3856 = vmatprep.subr.bf16.mxu0 %v2515
    %3857 = vmatpush2.bf16.msra.mxu0 %v2514
    %3858 = vmatprep.subr.bf16.mxu0 %v2511
    %3859 = vmatpush2.bf16.msra.mxu0 %v2510
    %3860 = vmatprep.mubr.bf16.mxu0 %v413
    %3861 = vmatmul.mubr.bf16.gmra.mxu0 %v412
    %v3862 = vpop.f32.mrf.mxu0
    %v3863 = vadd.f32 0.0, %v3862
    %v3864 = vpop.f32.mrf.mxu0
    %v3865 = vadd.f32 0.0, %v3864
    %v3866 = vpop.f32.mrf.mxu0
    %v3867 = vpop.f32.mrf.mxu0
    %3868 = vdwg.mxu0
    %3869 = vmatprep.subr.bf16.mxu0 %v2571
    %3870 = vmatpush1.bf16.msra.mxu0 %v2570
    %3871 = vmatprep.subr.bf16.mxu0 %v2567
    %3872 = vmatpush1.bf16.msra.mxu0 %v2566
    %3873 = vmatprep.subr.bf16.mxu0 %v2563
    %3874 = vmatpush1.bf16.msra.mxu0 %v2562
    %3875 = vmatprep.subr.bf16.mxu0 %v2559
    %3876 = vmatpush1.bf16.msra.mxu0 %v2558
    %3877 = vmatprep.subr.bf16.mxu0 %v2555
    %3878 = vmatpush1.bf16.msra.mxu0 %v2554
    %3879 = vmatprep.subr.bf16.mxu0 %v2551
    %3880 = vmatpush1.bf16.msra.mxu0 %v2550
    %3881 = vmatprep.subr.bf16.mxu0 %v2547
    %3882 = vmatpush1.bf16.msra.mxu0 %v2546
    %3883 = vmatprep.subr.bf16.mxu0 %v2543
    %3884 = vmatpush1.bf16.msra.mxu0 %v2542
    %3885 = vmatprep.subr.bf16.mxu0 %v2603
    %3886 = vmatpush2.bf16.msra.mxu0 %v2602
    %3887 = vmatprep.subr.bf16.mxu0 %v2599
    %3888 = vmatpush2.bf16.msra.mxu0 %v2598
    %3889 = vmatprep.subr.bf16.mxu0 %v2595
    %3890 = vmatpush2.bf16.msra.mxu0 %v2594
    %3891 = vmatprep.subr.bf16.mxu0 %v2591
    %3892 = vmatpush2.bf16.msra.mxu0 %v2590
    %3893 = vmatprep.subr.bf16.mxu0 %v2587
    %3894 = vmatpush2.bf16.msra.mxu0 %v2586
    %3895 = vmatprep.subr.bf16.mxu0 %v2583
    %3896 = vmatpush2.bf16.msra.mxu0 %v2582
    %3897 = vmatprep.subr.bf16.mxu0 %v2579
    %3898 = vmatpush2.bf16.msra.mxu0 %v2578
    %3899 = vmatprep.subr.bf16.mxu0 %v2575
    %3900 = vmatpush2.bf16.msra.mxu0 %v2574
    %3901 = vmatprep.mubr.bf16.mxu0 %v415
    %3902 = vmatmul.mubr.bf16.gmra.mxu0 %v414
    %v3903 = vpop.f32.mrf.mxu0
    %v3904 = vadd.f32 %v3863, %v3903
    %v3905 = vpop.f32.mrf.mxu0
    %v3906 = vadd.f32 %v3865, %v3905
    %v3907 = vpop.f32.mrf.mxu0
    %v3908 = vpop.f32.mrf.mxu0
    %3909 = vdwg.mxu0
    %3910 = vmatprep.subr.bf16.mxu0 %v2635
    %3911 = vmatpush1.bf16.msra.mxu0 %v2634
    %3912 = vmatprep.subr.bf16.mxu0 %v2631
    %3913 = vmatpush1.bf16.msra.mxu0 %v2630
    %3914 = vmatprep.subr.bf16.mxu0 %v2627
    %3915 = vmatpush1.bf16.msra.mxu0 %v2626
    %3916 = vmatprep.subr.bf16.mxu0 %v2623
    %3917 = vmatpush1.bf16.msra.mxu0 %v2622
    %3918 = vmatprep.subr.bf16.mxu0 %v2619
    %3919 = vmatpush1.bf16.msra.mxu0 %v2618
    %3920 = vmatprep.subr.bf16.mxu0 %v2615
    %3921 = vmatpush1.bf16.msra.mxu0 %v2614
    %3922 = vmatprep.subr.bf16.mxu0 %v2611
    %3923 = vmatpush1.bf16.msra.mxu0 %v2610
    %3924 = vmatprep.subr.bf16.mxu0 %v2607
    %3925 = vmatpush1.bf16.msra.mxu0 %v2606
    %3926 = vmatprep.subr.bf16.mxu0 %v2667
    %3927 = vmatpush2.bf16.msra.mxu0 %v2666
    %3928 = vmatprep.subr.bf16.mxu0 %v2663
    %3929 = vmatpush2.bf16.msra.mxu0 %v2662
    %3930 = vmatprep.subr.bf16.mxu0 %v2659
    %3931 = vmatpush2.bf16.msra.mxu0 %v2658
    %3932 = vmatprep.subr.bf16.mxu0 %v2655
    %3933 = vmatpush2.bf16.msra.mxu0 %v2654
    %3934 = vmatprep.subr.bf16.mxu0 %v2651
    %3935 = vmatpush2.bf16.msra.mxu0 %v2650
    %3936 = vmatprep.subr.bf16.mxu0 %v2647
    %3937 = vmatpush2.bf16.msra.mxu0 %v2646
    %3938 = vmatprep.subr.bf16.mxu0 %v2643
    %3939 = vmatpush2.bf16.msra.mxu0 %v2642
    %3940 = vmatprep.subr.bf16.mxu0 %v2639
    %3941 = vmatpush2.bf16.msra.mxu0 %v2638
    %3942 = vmatprep.mubr.bf16.mxu0 %v417
    %3943 = vmatmul.mubr.bf16.gmra.mxu0 %v416
    %v3944 = vpop.f32.mrf.mxu0
    %v3945 = vadd.f32 %v3904, %v3944
    %v3946 = vpop.f32.mrf.mxu0
    %v3947 = vadd.f32 %v3906, %v3946
    %v3948 = vpop.f32.mrf.mxu0
    %v3949 = vpop.f32.mrf.mxu0
    %3950 = vdwg.mxu0
    %3951 = vmatprep.subr.bf16.mxu0 %v2699
    %3952 = vmatpush1.bf16.msra.mxu0 %v2698
    %3953 = vmatprep.subr.bf16.mxu0 %v2695
    %3954 = vmatpush1.bf16.msra.mxu0 %v2694
    %3955 = vmatprep.subr.bf16.mxu0 %v2691
    %3956 = vmatpush1.bf16.msra.mxu0 %v2690
    %3957 = vmatprep.subr.bf16.mxu0 %v2687
    %3958 = vmatpush1.bf16.msra.mxu0 %v2686
    %3959 = vmatprep.subr.bf16.mxu0 %v2683
    %3960 = vmatpush1.bf16.msra.mxu0 %v2682
    %3961 = vmatprep.subr.bf16.mxu0 %v2679
    %3962 = vmatpush1.bf16.msra.mxu0 %v2678
    %3963 = vmatprep.subr.bf16.mxu0 %v2675
    %3964 = vmatpush1.bf16.msra.mxu0 %v2674
    %3965 = vmatprep.subr.bf16.mxu0 %v2671
    %3966 = vmatpush1.bf16.msra.mxu0 %v2670
    %3967 = vmatprep.subr.bf16.mxu0 %v2731
    %3968 = vmatpush2.bf16.msra.mxu0 %v2730
    %3969 = vmatprep.subr.bf16.mxu0 %v2727
    %3970 = vmatpush2.bf16.msra.mxu0 %v2726
    %3971 = vmatprep.subr.bf16.mxu0 %v2723
    %3972 = vmatpush2.bf16.msra.mxu0 %v2722
    %3973 = vmatprep.subr.bf16.mxu0 %v2719
    %3974 = vmatpush2.bf16.msra.mxu0 %v2718
    %3975 = vmatprep.subr.bf16.mxu0 %v2715
    %3976 = vmatpush2.bf16.msra.mxu0 %v2714
    %3977 = vmatprep.subr.bf16.mxu0 %v2711
    %3978 = vmatpush2.bf16.msra.mxu0 %v2710
    %3979 = vmatprep.subr.bf16.mxu0 %v2707
    %3980 = vmatpush2.bf16.msra.mxu0 %v2706
    %3981 = vmatprep.subr.bf16.mxu0 %v2703
    %3982 = vmatpush2.bf16.msra.mxu0 %v2702
    %3983 = vmatprep.mubr.bf16.mxu0 %v419
    %3984 = vmatmul.mubr.bf16.gmra.mxu0 %v418
    %v3985 = vpop.f32.mrf.mxu0
    %v3986 = vadd.f32 %v3945, %v3985
    %v3987 = vpop.f32.mrf.mxu0
    %v3988 = vadd.f32 %v3947, %v3987
    %v3989 = vpop.f32.mrf.mxu0
    %v3990 = vpop.f32.mrf.mxu0
    %3991 = vdwg.mxu0
    %3992 = vmatprep.subr.bf16.mxu0 %v2763
    %3993 = vmatpush1.bf16.msra.mxu0 %v2762
    %3994 = vmatprep.subr.bf16.mxu0 %v2759
    %3995 = vmatpush1.bf16.msra.mxu0 %v2758
    %3996 = vmatprep.subr.bf16.mxu0 %v2755
    %3997 = vmatpush1.bf16.msra.mxu0 %v2754
    %3998 = vmatprep.subr.bf16.mxu0 %v2751
    %3999 = vmatpush1.bf16.msra.mxu0 %v2750
    %4000 = vmatprep.subr.bf16.mxu0 %v2747
    %4001 = vmatpush1.bf16.msra.mxu0 %v2746
    %4002 = vmatprep.subr.bf16.mxu0 %v2743
    %4003 = vmatpush1.bf16.msra.mxu0 %v2742
    %4004 = vmatprep.subr.bf16.mxu0 %v2739
    %4005 = vmatpush1.bf16.msra.mxu0 %v2738
    %4006 = vmatprep.subr.bf16.mxu0 %v2735
    %4007 = vmatpush1.bf16.msra.mxu0 %v2734
    %4008 = vmatprep.subr.bf16.mxu0 %v2795
    %4009 = vmatpush2.bf16.msra.mxu0 %v2794
    %4010 = vmatprep.subr.bf16.mxu0 %v2791
    %4011 = vmatpush2.bf16.msra.mxu0 %v2790
    %4012 = vmatprep.subr.bf16.mxu0 %v2787
    %4013 = vmatpush2.bf16.msra.mxu0 %v2786
    %4014 = vmatprep.subr.bf16.mxu0 %v2783
    %4015 = vmatpush2.bf16.msra.mxu0 %v2782
    %4016 = vmatprep.subr.bf16.mxu0 %v2779
    %4017 = vmatpush2.bf16.msra.mxu0 %v2778
    %4018 = vmatprep.subr.bf16.mxu0 %v2775
    %4019 = vmatpush2.bf16.msra.mxu0 %v2774
    %4020 = vmatprep.subr.bf16.mxu0 %v2771
    %4021 = vmatpush2.bf16.msra.mxu0 %v2770
    %4022 = vmatprep.subr.bf16.mxu0 %v2767
    %4023 = vmatpush2.bf16.msra.mxu0 %v2766
    %4024 = vmatprep.mubr.bf16.mxu0 %v421
    %4025 = vmatmul.mubr.bf16.gmra.mxu0 %v420
    %v4026 = vpop.f32.mrf.mxu0
    %v4027 = vadd.f32 %v3986, %v4026
    %v4028 = vpop.f32.mrf.mxu0
    %v4029 = vadd.f32 %v3988, %v4028
    %v4030 = vpop.f32.mrf.mxu0
    %v4031 = vpop.f32.mrf.mxu0
    %4032 = vdwg.mxu0
    %4033 = vmatprep.subr.bf16.mxu0 %v2827
    %4034 = vmatpush1.bf16.msra.mxu0 %v2826
    %4035 = vmatprep.subr.bf16.mxu0 %v2823
    %4036 = vmatpush1.bf16.msra.mxu0 %v2822
    %4037 = vmatprep.subr.bf16.mxu0 %v2819
    %4038 = vmatpush1.bf16.msra.mxu0 %v2818
    %4039 = vmatprep.subr.bf16.mxu0 %v2815
    %4040 = vmatpush1.bf16.msra.mxu0 %v2814
    %4041 = vmatprep.subr.bf16.mxu0 %v2811
    %4042 = vmatpush1.bf16.msra.mxu0 %v2810
    %4043 = vmatprep.subr.bf16.mxu0 %v2807
    %4044 = vmatpush1.bf16.msra.mxu0 %v2806
    %4045 = vmatprep.subr.bf16.mxu0 %v2803
    %4046 = vmatpush1.bf16.msra.mxu0 %v2802
    %4047 = vmatprep.subr.bf16.mxu0 %v2799
    %4048 = vmatpush1.bf16.msra.mxu0 %v2798
    %4049 = vmatprep.subr.bf16.mxu0 %v2859
    %4050 = vmatpush2.bf16.msra.mxu0 %v2858
    %4051 = vmatprep.subr.bf16.mxu0 %v2855
    %4052 = vmatpush2.bf16.msra.mxu0 %v2854
    %4053 = vmatprep.subr.bf16.mxu0 %v2851
    %4054 = vmatpush2.bf16.msra.mxu0 %v2850
    %4055 = vmatprep.subr.bf16.mxu0 %v2847
    %4056 = vmatpush2.bf16.msra.mxu0 %v2846
    %4057 = vmatprep.subr.bf16.mxu0 %v2843
    %4058 = vmatpush2.bf16.msra.mxu0 %v2842
    %4059 = vmatprep.subr.bf16.mxu0 %v2839
    %4060 = vmatpush2.bf16.msra.mxu0 %v2838
    %4061 = vmatprep.subr.bf16.mxu0 %v2835
    %4062 = vmatpush2.bf16.msra.mxu0 %v2834
    %4063 = vmatprep.subr.bf16.mxu0 %v2831
    %4064 = vmatpush2.bf16.msra.mxu0 %v2830
    %4065 = vmatprep.mubr.bf16.mxu0 %v423
    %4066 = vmatmul.mubr.bf16.gmra.mxu0 %v422
    %v4067 = vpop.f32.mrf.mxu0
    %v4068 = vadd.f32 %v4027, %v4067
    %v4069 = vpop.f32.mrf.mxu0
    %v4070 = vadd.f32 %v4029, %v4069
    %v4071 = vpop.f32.mrf.mxu0
    %v4072 = vpop.f32.mrf.mxu0
    %4073 = vdwg.mxu0
    %4074 = vmatprep.subr.bf16.mxu0 %v2891
    %4075 = vmatpush1.bf16.msra.mxu0 %v2890
    %4076 = vmatprep.subr.bf16.mxu0 %v2887
    %4077 = vmatpush1.bf16.msra.mxu0 %v2886
    %4078 = vmatprep.subr.bf16.mxu0 %v2883
    %4079 = vmatpush1.bf16.msra.mxu0 %v2882
    %4080 = vmatprep.subr.bf16.mxu0 %v2879
    %4081 = vmatpush1.bf16.msra.mxu0 %v2878
    %4082 = vmatprep.subr.bf16.mxu0 %v2875
    %4083 = vmatpush1.bf16.msra.mxu0 %v2874
    %4084 = vmatprep.subr.bf16.mxu0 %v2871
    %4085 = vmatpush1.bf16.msra.mxu0 %v2870
    %4086 = vmatprep.subr.bf16.mxu0 %v2867
    %4087 = vmatpush1.bf16.msra.mxu0 %v2866
    %4088 = vmatprep.subr.bf16.mxu0 %v2863
    %4089 = vmatpush1.bf16.msra.mxu0 %v2862
    %4090 = vmatprep.subr.bf16.mxu0 %v2923
    %4091 = vmatpush2.bf16.msra.mxu0 %v2922
    %4092 = vmatprep.subr.bf16.mxu0 %v2919
    %4093 = vmatpush2.bf16.msra.mxu0 %v2918
    %4094 = vmatprep.subr.bf16.mxu0 %v2915
    %4095 = vmatpush2.bf16.msra.mxu0 %v2914
    %4096 = vmatprep.subr.bf16.mxu0 %v2911
    %4097 = vmatpush2.bf16.msra.mxu0 %v2910
    %4098 = vmatprep.subr.bf16.mxu0 %v2907
    %4099 = vmatpush2.bf16.msra.mxu0 %v2906
    %4100 = vmatprep.subr.bf16.mxu0 %v2903
    %4101 = vmatpush2.bf16.msra.mxu0 %v2902
    %4102 = vmatprep.subr.bf16.mxu0 %v2899
    %4103 = vmatpush2.bf16.msra.mxu0 %v2898
    %4104 = vmatprep.subr.bf16.mxu0 %v2895
    %4105 = vmatpush2.bf16.msra.mxu0 %v2894
    %4106 = vmatprep.mubr.bf16.mxu0 %v425
    %4107 = vmatmul.mubr.bf16.gmra.mxu0 %v424
    %v4108 = vpop.f32.mrf.mxu0
    %v4109 = vadd.f32 %v4068, %v4108
    %v4110 = vpop.f32.mrf.mxu0
    %v4111 = vadd.f32 %v4070, %v4110
    %v4112 = vpop.f32.mrf.mxu0
    %v4113 = vpop.f32.mrf.mxu0
    %4114 = vdwg.mxu0
    %4115 = vmatprep.subr.bf16.mxu0 %v2955
    %4116 = vmatpush1.bf16.msra.mxu0 %v2954
    %4117 = vmatprep.subr.bf16.mxu0 %v2951
    %4118 = vmatpush1.bf16.msra.mxu0 %v2950
    %4119 = vmatprep.subr.bf16.mxu0 %v2947
    %4120 = vmatpush1.bf16.msra.mxu0 %v2946
    %4121 = vmatprep.subr.bf16.mxu0 %v2943
    %4122 = vmatpush1.bf16.msra.mxu0 %v2942
    %4123 = vmatprep.subr.bf16.mxu0 %v2939
    %4124 = vmatpush1.bf16.msra.mxu0 %v2938
    %4125 = vmatprep.subr.bf16.mxu0 %v2935
    %4126 = vmatpush1.bf16.msra.mxu0 %v2934
    %4127 = vmatprep.subr.bf16.mxu0 %v2931
    %4128 = vmatpush1.bf16.msra.mxu0 %v2930
    %4129 = vmatprep.subr.bf16.mxu0 %v2927
    %4130 = vmatpush1.bf16.msra.mxu0 %v2926
    %4131 = vmatprep.subr.bf16.mxu0 %v2987
    %4132 = vmatpush2.bf16.msra.mxu0 %v2986
    %4133 = vmatprep.subr.bf16.mxu0 %v2983
    %4134 = vmatpush2.bf16.msra.mxu0 %v2982
    %4135 = vmatprep.subr.bf16.mxu0 %v2979
    %4136 = vmatpush2.bf16.msra.mxu0 %v2978
    %4137 = vmatprep.subr.bf16.mxu0 %v2975
    %4138 = vmatpush2.bf16.msra.mxu0 %v2974
    %4139 = vmatprep.subr.bf16.mxu0 %v2971
    %4140 = vmatpush2.bf16.msra.mxu0 %v2970
    %4141 = vmatprep.subr.bf16.mxu0 %v2967
    %4142 = vmatpush2.bf16.msra.mxu0 %v2966
    %4143 = vmatprep.subr.bf16.mxu0 %v2963
    %4144 = vmatpush2.bf16.msra.mxu0 %v2962
    %4145 = vmatprep.subr.bf16.mxu0 %v2959
    %4146 = vmatpush2.bf16.msra.mxu0 %v2958
    %4147 = vmatprep.mubr.bf16.mxu0 %v427
    %4148 = vmatmul.mubr.bf16.gmra.mxu0 %v426
    %v4149 = vpop.f32.mrf.mxu0
    %v4150 = vadd.f32 %v4109, %v4149
    %v4151 = vpop.f32.mrf.mxu0
    %v4152 = vadd.f32 %v4111, %v4151
    %v4153 = vpop.f32.mrf.mxu0
    %v4154 = vpop.f32.mrf.mxu0
    %4155 = vdwg.mxu0
    %v4412 = vunpack.c.l.b16 %v140
    %v4413 = vunpack.c.h.b16 %v140
    %v4414 = vunpack.c.l.b16 %v141
    %v4415 = vunpack.c.h.b16 %v141
    %v4416 = vunpack.c.l.b16 %v142
    %v4417 = vunpack.c.h.b16 %v142
    %v4418 = vunpack.c.l.b16 %v143
    %v4419 = vunpack.c.h.b16 %v143
    %v4420 = vunpack.c.l.b16 %v144
    %v4421 = vunpack.c.h.b16 %v144
    %v4422 = vunpack.c.l.b16 %v145
    %v4423 = vunpack.c.h.b16 %v145
    %v4424 = vunpack.c.l.b16 %v146
    %v4425 = vunpack.c.h.b16 %v146
    %v4426 = vunpack.c.l.b16 %v147
    %v4427 = vunpack.c.h.b16 %v147
    %v4428 = vunpack.c.l.b16 %v148
    %v4429 = vunpack.c.h.b16 %v148
    %v4430 = vunpack.c.l.b16 %v149
    %v4431 = vunpack.c.h.b16 %v149
    %v4432 = vunpack.c.l.b16 %v150
    %v4433 = vunpack.c.h.b16 %v150
    %v4434 = vunpack.c.l.b16 %v151
    %v4435 = vunpack.c.h.b16 %v151
    %v4436 = vunpack.c.l.b16 %v152
    %v4437 = vunpack.c.h.b16 %v152
    %v4438 = vunpack.c.l.b16 %v153
    %v4439 = vunpack.c.h.b16 %v153
    %v4440 = vunpack.c.l.b16 %v154
    %v4441 = vunpack.c.h.b16 %v154
    %v4442 = vunpack.c.l.b16 %v155
    %v4443 = vunpack.c.h.b16 %v155
    %v4444 = vunpack.c.l.b16 %v156
    %v4445 = vunpack.c.h.b16 %v156
    %v4446 = vunpack.c.l.b16 %v157
    %v4447 = vunpack.c.h.b16 %v157
    %v4448 = vunpack.c.l.b16 %v158
    %v4449 = vunpack.c.h.b16 %v158
    %v4450 = vunpack.c.l.b16 %v159
    %v4451 = vunpack.c.h.b16 %v159
    %v4452 = vunpack.c.l.b16 %v160
    %v4453 = vunpack.c.h.b16 %v160
    %v4454 = vunpack.c.l.b16 %v161
    %v4455 = vunpack.c.h.b16 %v161
    %v4456 = vunpack.c.l.b16 %v162
    %v4457 = vunpack.c.h.b16 %v162
    %v4458 = vunpack.c.l.b16 %v163
    %v4459 = vunpack.c.h.b16 %v163
    %v4460 = vunpack.c.l.b16 %v164
    %v4461 = vunpack.c.h.b16 %v164
    %v4462 = vunpack.c.l.b16 %v165
    %v4463 = vunpack.c.h.b16 %v165
    %v4464 = vunpack.c.l.b16 %v166
    %v4465 = vunpack.c.h.b16 %v166
    %v4466 = vunpack.c.l.b16 %v167
    %v4467 = vunpack.c.h.b16 %v167
    %v4468 = vunpack.c.l.b16 %v168
    %v4469 = vunpack.c.h.b16 %v168
    %v4470 = vunpack.c.l.b16 %v169
    %v4471 = vunpack.c.h.b16 %v169
    %v4472 = vunpack.c.l.b16 %v170
    %v4473 = vunpack.c.h.b16 %v170
    %v4474 = vunpack.c.l.b16 %v171
    %v4475 = vunpack.c.h.b16 %v171
    %v4476 = vunpack.c.l.b16 %v172
    %v4477 = vunpack.c.h.b16 %v172
    %v4478 = vunpack.c.l.b16 %v173
    %v4479 = vunpack.c.h.b16 %v173
    %v4480 = vunpack.c.l.b16 %v174
    %v4481 = vunpack.c.h.b16 %v174
    %v4482 = vunpack.c.l.b16 %v175
    %v4483 = vunpack.c.h.b16 %v175
    %v4484 = vunpack.c.l.b16 %v176
    %v4485 = vunpack.c.h.b16 %v176
    %v4486 = vunpack.c.l.b16 %v177
    %v4487 = vunpack.c.h.b16 %v177
    %v4488 = vunpack.c.l.b16 %v178
    %v4489 = vunpack.c.h.b16 %v178
    %v4490 = vunpack.c.l.b16 %v179
    %v4491 = vunpack.c.h.b16 %v179
    %v4492 = vunpack.c.l.b16 %v180
    %v4493 = vunpack.c.h.b16 %v180
    %v4494 = vunpack.c.l.b16 %v181
    %v4495 = vunpack.c.h.b16 %v181
    %v4496 = vunpack.c.l.b16 %v182
    %v4497 = vunpack.c.h.b16 %v182
    %v4498 = vunpack.c.l.b16 %v183
    %v4499 = vunpack.c.h.b16 %v183
    %v4500 = vunpack.c.l.b16 %v184
    %v4501 = vunpack.c.h.b16 %v184
    %v4502 = vunpack.c.l.b16 %v185
    %v4503 = vunpack.c.h.b16 %v185
    %v4504 = vunpack.c.l.b16 %v186
    %v4505 = vunpack.c.h.b16 %v186
    %v4506 = vunpack.c.l.b16 %v187
    %v4507 = vunpack.c.h.b16 %v187
    %v4508 = vunpack.c.l.b16 %v188
    %v4509 = vunpack.c.h.b16 %v188
    %v4510 = vunpack.c.l.b16 %v189
    %v4511 = vunpack.c.h.b16 %v189
    %v4512 = vunpack.c.l.b16 %v190
    %v4513 = vunpack.c.h.b16 %v190
    %v4514 = vunpack.c.l.b16 %v191
    %v4515 = vunpack.c.h.b16 %v191
    %v4516 = vunpack.c.l.b16 %v192
    %v4517 = vunpack.c.h.b16 %v192
    %v4518 = vunpack.c.l.b16 %v193
    %v4519 = vunpack.c.h.b16 %v193
    %v4520 = vunpack.c.l.b16 %v194
    %v4521 = vunpack.c.h.b16 %v194
    %v4522 = vunpack.c.l.b16 %v195
    %v4523 = vunpack.c.h.b16 %v195
    %v4524 = vunpack.c.l.b16 %v196
    %v4525 = vunpack.c.h.b16 %v196
    %v4526 = vunpack.c.l.b16 %v197
    %v4527 = vunpack.c.h.b16 %v197
    %v4528 = vunpack.c.l.b16 %v198
    %v4529 = vunpack.c.h.b16 %v198
    %v4530 = vunpack.c.l.b16 %v199
    %v4531 = vunpack.c.h.b16 %v199
    %v4532 = vunpack.c.l.b16 %v200
    %v4533 = vunpack.c.h.b16 %v200
    %v4534 = vunpack.c.l.b16 %v201
    %v4535 = vunpack.c.h.b16 %v201
    %v4536 = vunpack.c.l.b16 %v202
    %v4537 = vunpack.c.h.b16 %v202
    %v4538 = vunpack.c.l.b16 %v203
    %v4539 = vunpack.c.h.b16 %v203
    %v4540 = vunpack.c.l.b16 %v204
    %v4541 = vunpack.c.h.b16 %v204
    %v4542 = vunpack.c.l.b16 %v205
    %v4543 = vunpack.c.h.b16 %v205
    %v4544 = vunpack.c.l.b16 %v206
    %v4545 = vunpack.c.h.b16 %v206
    %v4546 = vunpack.c.l.b16 %v207
    %v4547 = vunpack.c.h.b16 %v207
    %v4548 = vunpack.c.l.b16 %v208
    %v4549 = vunpack.c.h.b16 %v208
    %v4550 = vunpack.c.l.b16 %v209
    %v4551 = vunpack.c.h.b16 %v209
    %v4552 = vunpack.c.l.b16 %v210
    %v4553 = vunpack.c.h.b16 %v210
    %v4554 = vunpack.c.l.b16 %v211
    %v4555 = vunpack.c.h.b16 %v211
    %v4556 = vunpack.c.l.b16 %v212
    %v4557 = vunpack.c.h.b16 %v212
    %v4558 = vunpack.c.l.b16 %v213
    %v4559 = vunpack.c.h.b16 %v213
    %v4560 = vunpack.c.l.b16 %v214
    %v4561 = vunpack.c.h.b16 %v214
    %v4562 = vunpack.c.l.b16 %v215
    %v4563 = vunpack.c.h.b16 %v215
    %v4564 = vunpack.c.l.b16 %v216
    %v4565 = vunpack.c.h.b16 %v216
    %v4566 = vunpack.c.l.b16 %v217
    %v4567 = vunpack.c.h.b16 %v217
    %v4568 = vunpack.c.l.b16 %v218
    %v4569 = vunpack.c.h.b16 %v218
    %v4570 = vunpack.c.l.b16 %v219
    %v4571 = vunpack.c.h.b16 %v219
    %v4572 = vunpack.c.l.b16 %v220
    %v4573 = vunpack.c.h.b16 %v220
    %v4574 = vunpack.c.l.b16 %v221
    %v4575 = vunpack.c.h.b16 %v221
    %v4576 = vunpack.c.l.b16 %v222
    %v4577 = vunpack.c.h.b16 %v222
    %v4578 = vunpack.c.l.b16 %v223
    %v4579 = vunpack.c.h.b16 %v223
    %v4580 = vunpack.c.l.b16 %v224
    %v4581 = vunpack.c.h.b16 %v224
    %v4582 = vunpack.c.l.b16 %v225
    %v4583 = vunpack.c.h.b16 %v225
    %v4584 = vunpack.c.l.b16 %v226
    %v4585 = vunpack.c.h.b16 %v226
    %v4586 = vunpack.c.l.b16 %v227
    %v4587 = vunpack.c.h.b16 %v227
    %v4588 = vunpack.c.l.b16 %v228
    %v4589 = vunpack.c.h.b16 %v228
    %v4590 = vunpack.c.l.b16 %v229
    %v4591 = vunpack.c.h.b16 %v229
    %v4592 = vunpack.c.l.b16 %v230
    %v4593 = vunpack.c.h.b16 %v230
    %v4594 = vunpack.c.l.b16 %v231
    %v4595 = vunpack.c.h.b16 %v231
    %v4596 = vunpack.c.l.b16 %v232
    %v4597 = vunpack.c.h.b16 %v232
    %v4598 = vunpack.c.l.b16 %v233
    %v4599 = vunpack.c.h.b16 %v233
    %v4600 = vunpack.c.l.b16 %v234
    %v4601 = vunpack.c.h.b16 %v234
    %v4602 = vunpack.c.l.b16 %v235
    %v4603 = vunpack.c.h.b16 %v235
    %v4604 = vunpack.c.l.b16 %v236
    %v4605 = vunpack.c.h.b16 %v236
    %v4606 = vunpack.c.l.b16 %v237
    %v4607 = vunpack.c.h.b16 %v237
    %v4608 = vunpack.c.l.b16 %v238
    %v4609 = vunpack.c.h.b16 %v238
    %v4610 = vunpack.c.l.b16 %v239
    %v4611 = vunpack.c.h.b16 %v239
    %v4612 = vunpack.c.l.b16 %v240
    %v4613 = vunpack.c.h.b16 %v240
    %v4614 = vunpack.c.l.b16 %v241
    %v4615 = vunpack.c.h.b16 %v241
    %v4616 = vunpack.c.l.b16 %v242
    %v4617 = vunpack.c.h.b16 %v242
    %v4618 = vunpack.c.l.b16 %v243
    %v4619 = vunpack.c.h.b16 %v243
    %v4620 = vunpack.c.l.b16 %v244
    %v4621 = vunpack.c.h.b16 %v244
    %v4622 = vunpack.c.l.b16 %v245
    %v4623 = vunpack.c.h.b16 %v245
    %v4624 = vunpack.c.l.b16 %v246
    %v4625 = vunpack.c.h.b16 %v246
    %v4626 = vunpack.c.l.b16 %v247
    %v4627 = vunpack.c.h.b16 %v247
    %v4628 = vunpack.c.l.b16 %v248
    %v4629 = vunpack.c.h.b16 %v248
    %v4630 = vunpack.c.l.b16 %v249
    %v4631 = vunpack.c.h.b16 %v249
    %v4632 = vunpack.c.l.b16 %v250
    %v4633 = vunpack.c.h.b16 %v250
    %v4634 = vunpack.c.l.b16 %v251
    %v4635 = vunpack.c.h.b16 %v251
    %v4636 = vunpack.c.l.b16 %v252
    %v4637 = vunpack.c.h.b16 %v252
    %v4638 = vunpack.c.l.b16 %v253
    %v4639 = vunpack.c.h.b16 %v253
    %v4640 = vunpack.c.l.b16 %v254
    %v4641 = vunpack.c.h.b16 %v254
    %v4642 = vunpack.c.l.b16 %v255
    %v4643 = vunpack.c.h.b16 %v255
    %v4644 = vunpack.c.l.b16 %v256
    %v4645 = vunpack.c.h.b16 %v256
    %v4646 = vunpack.c.l.b16 %v257
    %v4647 = vunpack.c.h.b16 %v257
    %v4648 = vunpack.c.l.b16 %v258
    %v4649 = vunpack.c.h.b16 %v258
    %v4650 = vunpack.c.l.b16 %v259
    %v4651 = vunpack.c.h.b16 %v259
    %v4652 = vunpack.c.l.b16 %v260
    %v4653 = vunpack.c.h.b16 %v260
    %v4654 = vunpack.c.l.b16 %v261
    %v4655 = vunpack.c.h.b16 %v261
    %v4656 = vunpack.c.l.b16 %v262
    %v4657 = vunpack.c.h.b16 %v262
    %v4658 = vunpack.c.l.b16 %v263
    %v4659 = vunpack.c.h.b16 %v263
    %v4660 = vunpack.c.l.b16 %v264
    %v4661 = vunpack.c.h.b16 %v264
    %v4662 = vunpack.c.l.b16 %v265
    %v4663 = vunpack.c.h.b16 %v265
    %v4664 = vunpack.c.l.b16 %v266
    %v4665 = vunpack.c.h.b16 %v266
    %v4666 = vunpack.c.l.b16 %v267
    %v4667 = vunpack.c.h.b16 %v267
    %v4668 = vunpack.c.l.b16 %v268
    %v4669 = vunpack.c.h.b16 %v268
    %v4670 = vunpack.c.l.b16 %v269
    %v4671 = vunpack.c.h.b16 %v269
    %v4672 = vunpack.c.l.b16 %v270
    %v4673 = vunpack.c.h.b16 %v270
    %v4674 = vunpack.c.l.b16 %v271
    %v4675 = vunpack.c.h.b16 %v271
    %v4676 = vunpack.c.l.b16 %v272
    %v4677 = vunpack.c.h.b16 %v272
    %v4678 = vunpack.c.l.b16 %v273
    %v4679 = vunpack.c.h.b16 %v273
    %v4680 = vunpack.c.l.b16 %v274
    %v4681 = vunpack.c.h.b16 %v274
    %v4682 = vunpack.c.l.b16 %v275
    %v4683 = vunpack.c.h.b16 %v275
    %v4684 = vunpack.c.l.b16 %v276
    %v4685 = vunpack.c.h.b16 %v276
    %v4686 = vunpack.c.l.b16 %v277
    %v4687 = vunpack.c.h.b16 %v277
    %v4688 = vunpack.c.l.b16 %v278
    %v4689 = vunpack.c.h.b16 %v278
    %v4690 = vunpack.c.l.b16 %v279
    %v4691 = vunpack.c.h.b16 %v279
    %v4692 = vunpack.c.l.b16 %v280
    %v4693 = vunpack.c.h.b16 %v280
    %v4694 = vunpack.c.l.b16 %v281
    %v4695 = vunpack.c.h.b16 %v281
    %v4696 = vunpack.c.l.b16 %v282
    %v4697 = vunpack.c.h.b16 %v282
    %v4698 = vunpack.c.l.b16 %v283
    %v4699 = vunpack.c.h.b16 %v283
    %v4700 = vunpack.c.l.b16 %v284
    %v4701 = vunpack.c.h.b16 %v284
    %v4702 = vunpack.c.l.b16 %v285
    %v4703 = vunpack.c.h.b16 %v285
    %v4704 = vunpack.c.l.b16 %v286
    %v4705 = vunpack.c.h.b16 %v286
    %v4706 = vunpack.c.l.b16 %v287
    %v4707 = vunpack.c.h.b16 %v287
    %v4708 = vunpack.c.l.b16 %v288
    %v4709 = vunpack.c.h.b16 %v288
    %v4710 = vunpack.c.l.b16 %v289
    %v4711 = vunpack.c.h.b16 %v289
    %v4712 = vunpack.c.l.b16 %v290
    %v4713 = vunpack.c.h.b16 %v290
    %v4714 = vunpack.c.l.b16 %v291
    %v4715 = vunpack.c.h.b16 %v291
    %v4716 = vunpack.c.l.b16 %v292
    %v4717 = vunpack.c.h.b16 %v292
    %v4718 = vunpack.c.l.b16 %v293
    %v4719 = vunpack.c.h.b16 %v293
    %v4720 = vunpack.c.l.b16 %v294
    %v4721 = vunpack.c.h.b16 %v294
    %v4722 = vunpack.c.l.b16 %v295
    %v4723 = vunpack.c.h.b16 %v295
    %v4724 = vunpack.c.l.b16 %v296
    %v4725 = vunpack.c.h.b16 %v296
    %v4726 = vunpack.c.l.b16 %v297
    %v4727 = vunpack.c.h.b16 %v297
    %v4728 = vunpack.c.l.b16 %v298
    %v4729 = vunpack.c.h.b16 %v298
    %v4730 = vunpack.c.l.b16 %v299
    %v4731 = vunpack.c.h.b16 %v299
    %v4732 = vunpack.c.l.b16 %v300
    %v4733 = vunpack.c.h.b16 %v300
    %v4734 = vunpack.c.l.b16 %v301
    %v4735 = vunpack.c.h.b16 %v301
    %v4736 = vunpack.c.l.b16 %v302
    %v4737 = vunpack.c.h.b16 %v302
    %v4738 = vunpack.c.l.b16 %v303
    %v4739 = vunpack.c.h.b16 %v303
    %v4740 = vunpack.c.l.b16 %v304
    %v4741 = vunpack.c.h.b16 %v304
    %v4742 = vunpack.c.l.b16 %v305
    %v4743 = vunpack.c.h.b16 %v305
    %v4744 = vunpack.c.l.b16 %v306
    %v4745 = vunpack.c.h.b16 %v306
    %v4746 = vunpack.c.l.b16 %v307
    %v4747 = vunpack.c.h.b16 %v307
    %v4748 = vunpack.c.l.b16 %v308
    %v4749 = vunpack.c.h.b16 %v308
    %v4750 = vunpack.c.l.b16 %v309
    %v4751 = vunpack.c.h.b16 %v309
    %v4752 = vunpack.c.l.b16 %v310
    %v4753 = vunpack.c.h.b16 %v310
    %v4754 = vunpack.c.l.b16 %v311
    %v4755 = vunpack.c.h.b16 %v311
    %v4756 = vunpack.c.l.b16 %v312
    %v4757 = vunpack.c.h.b16 %v312
    %v4758 = vunpack.c.l.b16 %v313
    %v4759 = vunpack.c.h.b16 %v313
    %v4760 = vunpack.c.l.b16 %v314
    %v4761 = vunpack.c.h.b16 %v314
    %v4762 = vunpack.c.l.b16 %v315
    %v4763 = vunpack.c.h.b16 %v315
    %v4764 = vunpack.c.l.b16 %v316
    %v4765 = vunpack.c.h.b16 %v316
    %v4766 = vunpack.c.l.b16 %v317
    %v4767 = vunpack.c.h.b16 %v317
    %v4768 = vunpack.c.l.b16 %v318
    %v4769 = vunpack.c.h.b16 %v318
    %v4770 = vunpack.c.l.b16 %v319
    %v4771 = vunpack.c.h.b16 %v319
    %v4772 = vunpack.c.l.b16 %v320
    %v4773 = vunpack.c.h.b16 %v320
    %v4774 = vunpack.c.l.b16 %v321
    %v4775 = vunpack.c.h.b16 %v321
    %v4776 = vunpack.c.l.b16 %v322
    %v4777 = vunpack.c.h.b16 %v322
    %v4778 = vunpack.c.l.b16 %v323
    %v4779 = vunpack.c.h.b16 %v323
    %v4780 = vunpack.c.l.b16 %v324
    %v4781 = vunpack.c.h.b16 %v324
    %v4782 = vunpack.c.l.b16 %v325
    %v4783 = vunpack.c.h.b16 %v325
    %v4784 = vunpack.c.l.b16 %v326
    %v4785 = vunpack.c.h.b16 %v326
    %v4786 = vunpack.c.l.b16 %v327
    %v4787 = vunpack.c.h.b16 %v327
    %v4788 = vunpack.c.l.b16 %v328
    %v4789 = vunpack.c.h.b16 %v328
    %v4790 = vunpack.c.l.b16 %v329
    %v4791 = vunpack.c.h.b16 %v329
    %v4792 = vunpack.c.l.b16 %v330
    %v4793 = vunpack.c.h.b16 %v330
    %v4794 = vunpack.c.l.b16 %v331
    %v4795 = vunpack.c.h.b16 %v331
    %v4796 = vunpack.c.l.b16 %v332
    %v4797 = vunpack.c.h.b16 %v332
    %v4798 = vunpack.c.l.b16 %v333
    %v4799 = vunpack.c.h.b16 %v333
    %v4800 = vunpack.c.l.b16 %v334
    %v4801 = vunpack.c.h.b16 %v334
    %v4802 = vunpack.c.l.b16 %v335
    %v4803 = vunpack.c.h.b16 %v335
    %v4804 = vunpack.c.l.b16 %v336
    %v4805 = vunpack.c.h.b16 %v336
    %v4806 = vunpack.c.l.b16 %v337
    %v4807 = vunpack.c.h.b16 %v337
    %v4808 = vunpack.c.l.b16 %v338
    %v4809 = vunpack.c.h.b16 %v338
    %v4810 = vunpack.c.l.b16 %v339
    %v4811 = vunpack.c.h.b16 %v339
    %v4812 = vunpack.c.l.b16 %v340
    %v4813 = vunpack.c.h.b16 %v340
    %v4814 = vunpack.c.l.b16 %v341
    %v4815 = vunpack.c.h.b16 %v341
    %v4816 = vunpack.c.l.b16 %v342
    %v4817 = vunpack.c.h.b16 %v342
    %v4818 = vunpack.c.l.b16 %v343
    %v4819 = vunpack.c.h.b16 %v343
    %v4820 = vunpack.c.l.b16 %v344
    %v4821 = vunpack.c.h.b16 %v344
    %v4822 = vunpack.c.l.b16 %v345
    %v4823 = vunpack.c.h.b16 %v345
    %v4824 = vunpack.c.l.b16 %v346
    %v4825 = vunpack.c.h.b16 %v346
    %v4826 = vunpack.c.l.b16 %v347
    %v4827 = vunpack.c.h.b16 %v347
    %v4828 = vunpack.c.l.b16 %v348
    %v4829 = vunpack.c.h.b16 %v348
    %v4830 = vunpack.c.l.b16 %v349
    %v4831 = vunpack.c.h.b16 %v349
    %v4832 = vunpack.c.l.b16 %v350
    %v4833 = vunpack.c.h.b16 %v350
    %v4834 = vunpack.c.l.b16 %v351
    %v4835 = vunpack.c.h.b16 %v351
    %v4836 = vunpack.c.l.b16 %v352
    %v4837 = vunpack.c.h.b16 %v352
    %v4838 = vunpack.c.l.b16 %v353
    %v4839 = vunpack.c.h.b16 %v353
    %v4840 = vunpack.c.l.b16 %v354
    %v4841 = vunpack.c.h.b16 %v354
    %v4842 = vunpack.c.l.b16 %v355
    %v4843 = vunpack.c.h.b16 %v355
    %v4844 = vunpack.c.l.b16 %v356
    %v4845 = vunpack.c.h.b16 %v356
    %v4846 = vunpack.c.l.b16 %v357
    %v4847 = vunpack.c.h.b16 %v357
    %v4848 = vunpack.c.l.b16 %v358
    %v4849 = vunpack.c.h.b16 %v358
    %v4850 = vunpack.c.l.b16 %v359
    %v4851 = vunpack.c.h.b16 %v359
    %v4852 = vunpack.c.l.b16 %v360
    %v4853 = vunpack.c.h.b16 %v360
    %v4854 = vunpack.c.l.b16 %v361
    %v4855 = vunpack.c.h.b16 %v361
    %v4856 = vunpack.c.l.b16 %v362
    %v4857 = vunpack.c.h.b16 %v362
    %v4858 = vunpack.c.l.b16 %v363
    %v4859 = vunpack.c.h.b16 %v363
    %v4860 = vunpack.c.l.b16 %v364
    %v4861 = vunpack.c.h.b16 %v364
    %v4862 = vunpack.c.l.b16 %v365
    %v4863 = vunpack.c.h.b16 %v365
    %v4864 = vunpack.c.l.b16 %v366
    %v4865 = vunpack.c.h.b16 %v366
    %v4866 = vunpack.c.l.b16 %v367
    %v4867 = vunpack.c.h.b16 %v367
    %v4868 = vunpack.c.l.b16 %v368
    %v4869 = vunpack.c.h.b16 %v368
    %v4870 = vunpack.c.l.b16 %v369
    %v4871 = vunpack.c.h.b16 %v369
    %v4872 = vunpack.c.l.b16 %v370
    %v4873 = vunpack.c.h.b16 %v370
    %v4874 = vunpack.c.l.b16 %v371
    %v4875 = vunpack.c.h.b16 %v371
    %v4876 = vunpack.c.l.b16 %v372
    %v4877 = vunpack.c.h.b16 %v372
    %v4878 = vunpack.c.l.b16 %v373
    %v4879 = vunpack.c.h.b16 %v373
    %v4880 = vunpack.c.l.b16 %v374
    %v4881 = vunpack.c.h.b16 %v374
    %v4882 = vunpack.c.l.b16 %v375
    %v4883 = vunpack.c.h.b16 %v375
    %v4884 = vunpack.c.l.b16 %v376
    %v4885 = vunpack.c.h.b16 %v376
    %v4886 = vunpack.c.l.b16 %v377
    %v4887 = vunpack.c.h.b16 %v377
    %v4888 = vunpack.c.l.b16 %v378
    %v4889 = vunpack.c.h.b16 %v378
    %v4890 = vunpack.c.l.b16 %v379
    %v4891 = vunpack.c.h.b16 %v379
    %v4892 = vunpack.c.l.b16 %v380
    %v4893 = vunpack.c.h.b16 %v380
    %v4894 = vunpack.c.l.b16 %v381
    %v4895 = vunpack.c.h.b16 %v381
    %v4896 = vunpack.c.l.b16 %v382
    %v4897 = vunpack.c.h.b16 %v382
    %v4898 = vunpack.c.l.b16 %v383
    %v4899 = vunpack.c.h.b16 %v383
    %v4900 = vunpack.c.l.b16 %v384
    %v4901 = vunpack.c.h.b16 %v384
    %v4902 = vunpack.c.l.b16 %v385
    %v4903 = vunpack.c.h.b16 %v385
    %v4904 = vunpack.c.l.b16 %v386
    %v4905 = vunpack.c.h.b16 %v386
    %v4906 = vunpack.c.l.b16 %v387
    %v4907 = vunpack.c.h.b16 %v387
    %v4908 = vunpack.c.l.b16 %v388
    %v4909 = vunpack.c.h.b16 %v388
    %v4910 = vunpack.c.l.b16 %v389
    %v4911 = vunpack.c.h.b16 %v389
    %v4912 = vunpack.c.l.b16 %v390
    %v4913 = vunpack.c.h.b16 %v390
    %v4914 = vunpack.c.l.b16 %v391
    %v4915 = vunpack.c.h.b16 %v391
    %v4916 = vunpack.c.l.b16 %v392
    %v4917 = vunpack.c.h.b16 %v392
    %v4918 = vunpack.c.l.b16 %v393
    %v4919 = vunpack.c.h.b16 %v393
    %v4920 = vunpack.c.l.b16 %v394
    %v4921 = vunpack.c.h.b16 %v394
    %v4922 = vunpack.c.l.b16 %v395
    %v4923 = vunpack.c.h.b16 %v395
    %v4924 = vpack.c.b16 %v4416, %v4412
    %v4925 = vpack.c.b16 %v4417, %v4413
    %v4926 = vpack.c.b16 %v4418, %v4414
    %v4927 = vpack.c.b16 %v4419, %v4415
    %v4928 = vpack.c.b16 %v4424, %v4420
    %v4929 = vpack.c.b16 %v4425, %v4421
    %v4930 = vpack.c.b16 %v4426, %v4422
    %v4931 = vpack.c.b16 %v4427, %v4423
    %v4932 = vpack.c.b16 %v4432, %v4428
    %v4933 = vpack.c.b16 %v4433, %v4429
    %v4934 = vpack.c.b16 %v4434, %v4430
    %v4935 = vpack.c.b16 %v4435, %v4431
    %v4936 = vpack.c.b16 %v4440, %v4436
    %v4937 = vpack.c.b16 %v4441, %v4437
    %v4938 = vpack.c.b16 %v4442, %v4438
    %v4939 = vpack.c.b16 %v4443, %v4439
    %v4940 = vpack.c.b16 %v4448, %v4444
    %v4941 = vpack.c.b16 %v4449, %v4445
    %v4942 = vpack.c.b16 %v4450, %v4446
    %v4943 = vpack.c.b16 %v4451, %v4447
    %v4944 = vpack.c.b16 %v4456, %v4452
    %v4945 = vpack.c.b16 %v4457, %v4453
    %v4946 = vpack.c.b16 %v4458, %v4454
    %v4947 = vpack.c.b16 %v4459, %v4455
    %v4948 = vpack.c.b16 %v4464, %v4460
    %v4949 = vpack.c.b16 %v4465, %v4461
    %v4950 = vpack.c.b16 %v4466, %v4462
    %v4951 = vpack.c.b16 %v4467, %v4463
    %v4952 = vpack.c.b16 %v4472, %v4468
    %v4953 = vpack.c.b16 %v4473, %v4469
    %v4954 = vpack.c.b16 %v4474, %v4470
    %v4955 = vpack.c.b16 %v4475, %v4471
    %v4956 = vpack.c.b16 %v4480, %v4476
    %v4957 = vpack.c.b16 %v4481, %v4477
    %v4958 = vpack.c.b16 %v4482, %v4478
    %v4959 = vpack.c.b16 %v4483, %v4479
    %v4960 = vpack.c.b16 %v4488, %v4484
    %v4961 = vpack.c.b16 %v4489, %v4485
    %v4962 = vpack.c.b16 %v4490, %v4486
    %v4963 = vpack.c.b16 %v4491, %v4487
    %v4964 = vpack.c.b16 %v4496, %v4492
    %v4965 = vpack.c.b16 %v4497, %v4493
    %v4966 = vpack.c.b16 %v4498, %v4494
    %v4967 = vpack.c.b16 %v4499, %v4495
    %v4968 = vpack.c.b16 %v4504, %v4500
    %v4969 = vpack.c.b16 %v4505, %v4501
    %v4970 = vpack.c.b16 %v4506, %v4502
    %v4971 = vpack.c.b16 %v4507, %v4503
    %v4972 = vpack.c.b16 %v4512, %v4508
    %v4973 = vpack.c.b16 %v4513, %v4509
    %v4974 = vpack.c.b16 %v4514, %v4510
    %v4975 = vpack.c.b16 %v4515, %v4511
    %v4976 = vpack.c.b16 %v4520, %v4516
    %v4977 = vpack.c.b16 %v4521, %v4517
    %v4978 = vpack.c.b16 %v4522, %v4518
    %v4979 = vpack.c.b16 %v4523, %v4519
    %v4980 = vpack.c.b16 %v4528, %v4524
    %v4981 = vpack.c.b16 %v4529, %v4525
    %v4982 = vpack.c.b16 %v4530, %v4526
    %v4983 = vpack.c.b16 %v4531, %v4527
    %v4984 = vpack.c.b16 %v4536, %v4532
    %v4985 = vpack.c.b16 %v4537, %v4533
    %v4986 = vpack.c.b16 %v4538, %v4534
    %v4987 = vpack.c.b16 %v4539, %v4535
    %v4988 = vpack.c.b16 %v4544, %v4540
    %v4989 = vpack.c.b16 %v4545, %v4541
    %v4990 = vpack.c.b16 %v4546, %v4542
    %v4991 = vpack.c.b16 %v4547, %v4543
    %v4992 = vpack.c.b16 %v4552, %v4548
    %v4993 = vpack.c.b16 %v4553, %v4549
    %v4994 = vpack.c.b16 %v4554, %v4550
    %v4995 = vpack.c.b16 %v4555, %v4551
    %v4996 = vpack.c.b16 %v4560, %v4556
    %v4997 = vpack.c.b16 %v4561, %v4557
    %v4998 = vpack.c.b16 %v4562, %v4558
    %v4999 = vpack.c.b16 %v4563, %v4559
    %v5000 = vpack.c.b16 %v4568, %v4564
    %v5001 = vpack.c.b16 %v4569, %v4565
    %v5002 = vpack.c.b16 %v4570, %v4566
    %v5003 = vpack.c.b16 %v4571, %v4567
    %v5004 = vpack.c.b16 %v4576, %v4572
    %v5005 = vpack.c.b16 %v4577, %v4573
    %v5006 = vpack.c.b16 %v4578, %v4574
    %v5007 = vpack.c.b16 %v4579, %v4575
    %v5008 = vpack.c.b16 %v4584, %v4580
    %v5009 = vpack.c.b16 %v4585, %v4581
    %v5010 = vpack.c.b16 %v4586, %v4582
    %v5011 = vpack.c.b16 %v4587, %v4583
    %v5012 = vpack.c.b16 %v4592, %v4588
    %v5013 = vpack.c.b16 %v4593, %v4589
    %v5014 = vpack.c.b16 %v4594, %v4590
    %v5015 = vpack.c.b16 %v4595, %v4591
    %v5016 = vpack.c.b16 %v4600, %v4596
    %v5017 = vpack.c.b16 %v4601, %v4597
    %v5018 = vpack.c.b16 %v4602, %v4598
    %v5019 = vpack.c.b16 %v4603, %v4599
    %v5020 = vpack.c.b16 %v4608, %v4604
    %v5021 = vpack.c.b16 %v4609, %v4605
    %v5022 = vpack.c.b16 %v4610, %v4606
    %v5023 = vpack.c.b16 %v4611, %v4607
    %v5024 = vpack.c.b16 %v4616, %v4612
    %v5025 = vpack.c.b16 %v4617, %v4613
    %v5026 = vpack.c.b16 %v4618, %v4614
    %v5027 = vpack.c.b16 %v4619, %v4615
    %v5028 = vpack.c.b16 %v4624, %v4620
    %v5029 = vpack.c.b16 %v4625, %v4621
    %v5030 = vpack.c.b16 %v4626, %v4622
    %v5031 = vpack.c.b16 %v4627, %v4623
    %v5032 = vpack.c.b16 %v4632, %v4628
    %v5033 = vpack.c.b16 %v4633, %v4629
    %v5034 = vpack.c.b16 %v4634, %v4630
    %v5035 = vpack.c.b16 %v4635, %v4631
    %v5036 = vpack.c.b16 %v4640, %v4636
    %v5037 = vpack.c.b16 %v4641, %v4637
    %v5038 = vpack.c.b16 %v4642, %v4638
    %v5039 = vpack.c.b16 %v4643, %v4639
    %v5040 = vpack.c.b16 %v4648, %v4644
    %v5041 = vpack.c.b16 %v4649, %v4645
    %v5042 = vpack.c.b16 %v4650, %v4646
    %v5043 = vpack.c.b16 %v4651, %v4647
    %v5044 = vpack.c.b16 %v4656, %v4652
    %v5045 = vpack.c.b16 %v4657, %v4653
    %v5046 = vpack.c.b16 %v4658, %v4654
    %v5047 = vpack.c.b16 %v4659, %v4655
    %v5048 = vpack.c.b16 %v4664, %v4660
    %v5049 = vpack.c.b16 %v4665, %v4661
    %v5050 = vpack.c.b16 %v4666, %v4662
    %v5051 = vpack.c.b16 %v4667, %v4663
    %v5052 = vpack.c.b16 %v4672, %v4668
    %v5053 = vpack.c.b16 %v4673, %v4669
    %v5054 = vpack.c.b16 %v4674, %v4670
    %v5055 = vpack.c.b16 %v4675, %v4671
    %v5056 = vpack.c.b16 %v4680, %v4676
    %v5057 = vpack.c.b16 %v4681, %v4677
    %v5058 = vpack.c.b16 %v4682, %v4678
    %v5059 = vpack.c.b16 %v4683, %v4679
    %v5060 = vpack.c.b16 %v4688, %v4684
    %v5061 = vpack.c.b16 %v4689, %v4685
    %v5062 = vpack.c.b16 %v4690, %v4686
    %v5063 = vpack.c.b16 %v4691, %v4687
    %v5064 = vpack.c.b16 %v4696, %v4692
    %v5065 = vpack.c.b16 %v4697, %v4693
    %v5066 = vpack.c.b16 %v4698, %v4694
    %v5067 = vpack.c.b16 %v4699, %v4695
    %v5068 = vpack.c.b16 %v4704, %v4700
    %v5069 = vpack.c.b16 %v4705, %v4701
    %v5070 = vpack.c.b16 %v4706, %v4702
    %v5071 = vpack.c.b16 %v4707, %v4703
    %v5072 = vpack.c.b16 %v4712, %v4708
    %v5073 = vpack.c.b16 %v4713, %v4709
    %v5074 = vpack.c.b16 %v4714, %v4710
    %v5075 = vpack.c.b16 %v4715, %v4711
    %v5076 = vpack.c.b16 %v4720, %v4716
    %v5077 = vpack.c.b16 %v4721, %v4717
    %v5078 = vpack.c.b16 %v4722, %v4718
    %v5079 = vpack.c.b16 %v4723, %v4719
    %v5080 = vpack.c.b16 %v4728, %v4724
    %v5081 = vpack.c.b16 %v4729, %v4725
    %v5082 = vpack.c.b16 %v4730, %v4726
    %v5083 = vpack.c.b16 %v4731, %v4727
    %v5084 = vpack.c.b16 %v4736, %v4732
    %v5085 = vpack.c.b16 %v4737, %v4733
    %v5086 = vpack.c.b16 %v4738, %v4734
    %v5087 = vpack.c.b16 %v4739, %v4735
    %v5088 = vpack.c.b16 %v4744, %v4740
    %v5089 = vpack.c.b16 %v4745, %v4741
    %v5090 = vpack.c.b16 %v4746, %v4742
    %v5091 = vpack.c.b16 %v4747, %v4743
    %v5092 = vpack.c.b16 %v4752, %v4748
    %v5093 = vpack.c.b16 %v4753, %v4749
    %v5094 = vpack.c.b16 %v4754, %v4750
    %v5095 = vpack.c.b16 %v4755, %v4751
    %v5096 = vpack.c.b16 %v4760, %v4756
    %v5097 = vpack.c.b16 %v4761, %v4757
    %v5098 = vpack.c.b16 %v4762, %v4758
    %v5099 = vpack.c.b16 %v4763, %v4759
    %v5100 = vpack.c.b16 %v4768, %v4764
    %v5101 = vpack.c.b16 %v4769, %v4765
    %v5102 = vpack.c.b16 %v4770, %v4766
    %v5103 = vpack.c.b16 %v4771, %v4767
    %v5104 = vpack.c.b16 %v4776, %v4772
    %v5105 = vpack.c.b16 %v4777, %v4773
    %v5106 = vpack.c.b16 %v4778, %v4774
    %v5107 = vpack.c.b16 %v4779, %v4775
    %v5108 = vpack.c.b16 %v4784, %v4780
    %v5109 = vpack.c.b16 %v4785, %v4781
    %v5110 = vpack.c.b16 %v4786, %v4782
    %v5111 = vpack.c.b16 %v4787, %v4783
    %v5112 = vpack.c.b16 %v4792, %v4788
    %v5113 = vpack.c.b16 %v4793, %v4789
    %v5114 = vpack.c.b16 %v4794, %v4790
    %v5115 = vpack.c.b16 %v4795, %v4791
    %v5116 = vpack.c.b16 %v4800, %v4796
    %v5117 = vpack.c.b16 %v4801, %v4797
    %v5118 = vpack.c.b16 %v4802, %v4798
    %v5119 = vpack.c.b16 %v4803, %v4799
    %v5120 = vpack.c.b16 %v4808, %v4804
    %v5121 = vpack.c.b16 %v4809, %v4805
    %v5122 = vpack.c.b16 %v4810, %v4806
    %v5123 = vpack.c.b16 %v4811, %v4807
    %v5124 = vpack.c.b16 %v4816, %v4812
    %v5125 = vpack.c.b16 %v4817, %v4813
    %v5126 = vpack.c.b16 %v4818, %v4814
    %v5127 = vpack.c.b16 %v4819, %v4815
    %v5128 = vpack.c.b16 %v4824, %v4820
    %v5129 = vpack.c.b16 %v4825, %v4821
    %v5130 = vpack.c.b16 %v4826, %v4822
    %v5131 = vpack.c.b16 %v4827, %v4823
    %v5132 = vpack.c.b16 %v4832, %v4828
    %v5133 = vpack.c.b16 %v4833, %v4829
    %v5134 = vpack.c.b16 %v4834, %v4830
    %v5135 = vpack.c.b16 %v4835, %v4831
    %v5136 = vpack.c.b16 %v4840, %v4836
    %v5137 = vpack.c.b16 %v4841, %v4837
    %v5138 = vpack.c.b16 %v4842, %v4838
    %v5139 = vpack.c.b16 %v4843, %v4839
    %v5140 = vpack.c.b16 %v4848, %v4844
    %v5141 = vpack.c.b16 %v4849, %v4845
    %v5142 = vpack.c.b16 %v4850, %v4846
    %v5143 = vpack.c.b16 %v4851, %v4847
    %v5144 = vpack.c.b16 %v4856, %v4852
    %v5145 = vpack.c.b16 %v4857, %v4853
    %v5146 = vpack.c.b16 %v4858, %v4854
    %v5147 = vpack.c.b16 %v4859, %v4855
    %v5148 = vpack.c.b16 %v4864, %v4860
    %v5149 = vpack.c.b16 %v4865, %v4861
    %v5150 = vpack.c.b16 %v4866, %v4862
    %v5151 = vpack.c.b16 %v4867, %v4863
    %v5152 = vpack.c.b16 %v4872, %v4868
    %v5153 = vpack.c.b16 %v4873, %v4869
    %v5154 = vpack.c.b16 %v4874, %v4870
    %v5155 = vpack.c.b16 %v4875, %v4871
    %v5156 = vpack.c.b16 %v4880, %v4876
    %v5157 = vpack.c.b16 %v4881, %v4877
    %v5158 = vpack.c.b16 %v4882, %v4878
    %v5159 = vpack.c.b16 %v4883, %v4879
    %v5160 = vpack.c.b16 %v4888, %v4884
    %v5161 = vpack.c.b16 %v4889, %v4885
    %v5162 = vpack.c.b16 %v4890, %v4886
    %v5163 = vpack.c.b16 %v4891, %v4887
    %v5164 = vpack.c.b16 %v4896, %v4892
    %v5165 = vpack.c.b16 %v4897, %v4893
    %v5166 = vpack.c.b16 %v4898, %v4894
    %v5167 = vpack.c.b16 %v4899, %v4895
    %v5168 = vpack.c.b16 %v4904, %v4900
    %v5169 = vpack.c.b16 %v4905, %v4901
    %v5170 = vpack.c.b16 %v4906, %v4902
    %v5171 = vpack.c.b16 %v4907, %v4903
    %v5172 = vpack.c.b16 %v4912, %v4908
    %v5173 = vpack.c.b16 %v4913, %v4909
    %v5174 = vpack.c.b16 %v4914, %v4910
    %v5175 = vpack.c.b16 %v4915, %v4911
    %v5176 = vpack.c.b16 %v4920, %v4916
    %v5177 = vpack.c.b16 %v4921, %v4917
    %v5178 = vpack.c.b16 %v4922, %v4918
    %v5179 = vpack.c.b16 %v4923, %v4919
    %5436 = vmatprep.subr.bf16.mxu0 %v4953
    %5437 = vmatpush1.bf16.msra.mxu0 %v4952
    %5438 = vmatprep.subr.bf16.mxu0 %v4949
    %5439 = vmatpush1.bf16.msra.mxu0 %v4948
    %5440 = vmatprep.subr.bf16.mxu0 %v4945
    %5441 = vmatpush1.bf16.msra.mxu0 %v4944
    %5442 = vmatprep.subr.bf16.mxu0 %v4941
    %5443 = vmatpush1.bf16.msra.mxu0 %v4940
    %5444 = vmatprep.subr.bf16.mxu0 %v4937
    %5445 = vmatpush1.bf16.msra.mxu0 %v4936
    %5446 = vmatprep.subr.bf16.mxu0 %v4933
    %5447 = vmatpush1.bf16.msra.mxu0 %v4932
    %5448 = vmatprep.subr.bf16.mxu0 %v4929
    %5449 = vmatpush1.bf16.msra.mxu0 %v4928
    %5450 = vmatprep.subr.bf16.mxu0 %v4925
    %5451 = vmatpush1.bf16.msra.mxu0 %v4924
    %5452 = vmatprep.subr.bf16.mxu0 %v4985
    %5453 = vmatpush2.bf16.msra.mxu0 %v4984
    %5454 = vmatprep.subr.bf16.mxu0 %v4981
    %5455 = vmatpush2.bf16.msra.mxu0 %v4980
    %5456 = vmatprep.subr.bf16.mxu0 %v4977
    %5457 = vmatpush2.bf16.msra.mxu0 %v4976
    %5458 = vmatprep.subr.bf16.mxu0 %v4973
    %5459 = vmatpush2.bf16.msra.mxu0 %v4972
    %5460 = vmatprep.subr.bf16.mxu0 %v4969
    %5461 = vmatpush2.bf16.msra.mxu0 %v4968
    %5462 = vmatprep.subr.bf16.mxu0 %v4965
    %5463 = vmatpush2.bf16.msra.mxu0 %v4964
    %5464 = vmatprep.subr.bf16.mxu0 %v4961
    %5465 = vmatpush2.bf16.msra.mxu0 %v4960
    %5466 = vmatprep.subr.bf16.mxu0 %v4957
    %5467 = vmatpush2.bf16.msra.mxu0 %v4956
    %5468 = vmatprep.mubr.bf16.mxu0 %v133
    %5469 = vmatmul.mubr.bf16.gmra.mxu0 %v132
    %v5470 = vpop.f32.mrf.mxu0
    %v5471 = vadd.f32 %v3822, %v5470
    %v5472 = vpop.f32.mrf.mxu0
    %v5473 = vadd.f32 %v3824, %v5472
    %v5474 = vpop.f32.mrf.mxu0
    %v5475 = vpop.f32.mrf.mxu0
    %5476 = vdwg.mxu0
    %5477 = vmatprep.subr.bf16.mxu0 %v5017
    %5478 = vmatpush1.bf16.msra.mxu0 %v5016
    %5479 = vmatprep.subr.bf16.mxu0 %v5013
    %5480 = vmatpush1.bf16.msra.mxu0 %v5012
    %5481 = vmatprep.subr.bf16.mxu0 %v5009
    %5482 = vmatpush1.bf16.msra.mxu0 %v5008
    %5483 = vmatprep.subr.bf16.mxu0 %v5005
    %5484 = vmatpush1.bf16.msra.mxu0 %v5004
    %5485 = vmatprep.subr.bf16.mxu0 %v5001
    %5486 = vmatpush1.bf16.msra.mxu0 %v5000
    %5487 = vmatprep.subr.bf16.mxu0 %v4997
    %5488 = vmatpush1.bf16.msra.mxu0 %v4996
    %5489 = vmatprep.subr.bf16.mxu0 %v4993
    %5490 = vmatpush1.bf16.msra.mxu0 %v4992
    %5491 = vmatprep.subr.bf16.mxu0 %v4989
    %5492 = vmatpush1.bf16.msra.mxu0 %v4988
    %5493 = vmatprep.subr.bf16.mxu0 %v5049
    %5494 = vmatpush2.bf16.msra.mxu0 %v5048
    %5495 = vmatprep.subr.bf16.mxu0 %v5045
    %5496 = vmatpush2.bf16.msra.mxu0 %v5044
    %5497 = vmatprep.subr.bf16.mxu0 %v5041
    %5498 = vmatpush2.bf16.msra.mxu0 %v5040
    %5499 = vmatprep.subr.bf16.mxu0 %v5037
    %5500 = vmatpush2.bf16.msra.mxu0 %v5036
    %5501 = vmatprep.subr.bf16.mxu0 %v5033
    %5502 = vmatpush2.bf16.msra.mxu0 %v5032
    %5503 = vmatprep.subr.bf16.mxu0 %v5029
    %5504 = vmatpush2.bf16.msra.mxu0 %v5028
    %5505 = vmatprep.subr.bf16.mxu0 %v5025
    %5506 = vmatpush2.bf16.msra.mxu0 %v5024
    %5507 = vmatprep.subr.bf16.mxu0 %v5021
    %5508 = vmatpush2.bf16.msra.mxu0 %v5020
    %5509 = vmatprep.mubr.bf16.mxu0 %v135
    %5510 = vmatmul.mubr.bf16.gmra.mxu0 %v134
    %v5511 = vpop.f32.mrf.mxu0
    %v5512 = vadd.f32 %v5471, %v5511
    %v5513 = vpop.f32.mrf.mxu0
    %v5514 = vadd.f32 %v5473, %v5513
    %v5515 = vpop.f32.mrf.mxu0
    %v5516 = vpop.f32.mrf.mxu0
    %5517 = vdwg.mxu0
    %5518 = vmatprep.subr.bf16.mxu0 %v5081
    %5519 = vmatpush1.bf16.msra.mxu0 %v5080
    %5520 = vmatprep.subr.bf16.mxu0 %v5077
    %5521 = vmatpush1.bf16.msra.mxu0 %v5076
    %5522 = vmatprep.subr.bf16.mxu0 %v5073
    %5523 = vmatpush1.bf16.msra.mxu0 %v5072
    %5524 = vmatprep.subr.bf16.mxu0 %v5069
    %5525 = vmatpush1.bf16.msra.mxu0 %v5068
    %5526 = vmatprep.subr.bf16.mxu0 %v5065
    %5527 = vmatpush1.bf16.msra.mxu0 %v5064
    %5528 = vmatprep.subr.bf16.mxu0 %v5061
    %5529 = vmatpush1.bf16.msra.mxu0 %v5060
    %5530 = vmatprep.subr.bf16.mxu0 %v5057
    %5531 = vmatpush1.bf16.msra.mxu0 %v5056
    %5532 = vmatprep.subr.bf16.mxu0 %v5053
    %5533 = vmatpush1.bf16.msra.mxu0 %v5052
    %5534 = vmatprep.subr.bf16.mxu0 %v5113
    %5535 = vmatpush2.bf16.msra.mxu0 %v5112
    %5536 = vmatprep.subr.bf16.mxu0 %v5109
    %5537 = vmatpush2.bf16.msra.mxu0 %v5108
    %5538 = vmatprep.subr.bf16.mxu0 %v5105
    %5539 = vmatpush2.bf16.msra.mxu0 %v5104
    %5540 = vmatprep.subr.bf16.mxu0 %v5101
    %5541 = vmatpush2.bf16.msra.mxu0 %v5100
    %5542 = vmatprep.subr.bf16.mxu0 %v5097
    %5543 = vmatpush2.bf16.msra.mxu0 %v5096
    %5544 = vmatprep.subr.bf16.mxu0 %v5093
    %5545 = vmatpush2.bf16.msra.mxu0 %v5092
    %5546 = vmatprep.subr.bf16.mxu0 %v5089
    %5547 = vmatpush2.bf16.msra.mxu0 %v5088
    %5548 = vmatprep.subr.bf16.mxu0 %v5085
    %5549 = vmatpush2.bf16.msra.mxu0 %v5084
    %5550 = vmatprep.mubr.bf16.mxu0 %v137
    %5551 = vmatmul.mubr.bf16.gmra.mxu0 %v136
    %v5552 = vpop.f32.mrf.mxu0
    %v5553 = vadd.f32 %v5512, %v5552
    %v5554 = vpop.f32.mrf.mxu0
    %v5555 = vadd.f32 %v5514, %v5554
    %v5556 = vpop.f32.mrf.mxu0
    %v5557 = vpop.f32.mrf.mxu0
    %5558 = vdwg.mxu0
    %5559 = vmatprep.subr.bf16.mxu0 %v5145
    %5560 = vmatpush1.bf16.msra.mxu0 %v5144
    %5561 = vmatprep.subr.bf16.mxu0 %v5141
    %5562 = vmatpush1.bf16.msra.mxu0 %v5140
    %5563 = vmatprep.subr.bf16.mxu0 %v5137
    %5564 = vmatpush1.bf16.msra.mxu0 %v5136
    %5565 = vmatprep.subr.bf16.mxu0 %v5133
    %5566 = vmatpush1.bf16.msra.mxu0 %v5132
    %5567 = vmatprep.subr.bf16.mxu0 %v5129
    %5568 = vmatpush1.bf16.msra.mxu0 %v5128
    %5569 = vmatprep.subr.bf16.mxu0 %v5125
    %5570 = vmatpush1.bf16.msra.mxu0 %v5124
    %5571 = vmatprep.subr.bf16.mxu0 %v5121
    %5572 = vmatpush1.bf16.msra.mxu0 %v5120
    %5573 = vmatprep.subr.bf16.mxu0 %v5117
    %5574 = vmatpush1.bf16.msra.mxu0 %v5116
    %5575 = vmatprep.subr.bf16.mxu0 %v5177
    %5576 = vmatpush2.bf16.msra.mxu0 %v5176
    %5577 = vmatprep.subr.bf16.mxu0 %v5173
    %5578 = vmatpush2.bf16.msra.mxu0 %v5172
    %5579 = vmatprep.subr.bf16.mxu0 %v5169
    %5580 = vmatpush2.bf16.msra.mxu0 %v5168
    %5581 = vmatprep.subr.bf16.mxu0 %v5165
    %5582 = vmatpush2.bf16.msra.mxu0 %v5164
    %5583 = vmatprep.subr.bf16.mxu0 %v5161
    %5584 = vmatpush2.bf16.msra.mxu0 %v5160
    %5585 = vmatprep.subr.bf16.mxu0 %v5157
    %5586 = vmatpush2.bf16.msra.mxu0 %v5156
    %5587 = vmatprep.subr.bf16.mxu0 %v5153
    %5588 = vmatpush2.bf16.msra.mxu0 %v5152
    %5589 = vmatprep.subr.bf16.mxu0 %v5149
    %5590 = vmatpush2.bf16.msra.mxu0 %v5148
    %5591 = vmatprep.mubr.bf16.mxu0 %v139
    %5592 = vmatmul.mubr.bf16.gmra.mxu0 %v138
    %v5593 = vpop.f32.mrf.mxu0
    %v5594 = vadd.f32 %v5553, %v5593
    %v5595 = vpop.f32.mrf.mxu0
    %v5596 = vadd.f32 %v5555, %v5595
    %v5597 = vpop.f32.mrf.mxu0
    %v5598 = vpop.f32.mrf.mxu0
    %5599 = vdwg.mxu0
    %5600 = vmatprep.subr.bf16.mxu0 %v4955
    %5601 = vmatpush1.bf16.msra.mxu0 %v4954
    %5602 = vmatprep.subr.bf16.mxu0 %v4951
    %5603 = vmatpush1.bf16.msra.mxu0 %v4950
    %5604 = vmatprep.subr.bf16.mxu0 %v4947
    %5605 = vmatpush1.bf16.msra.mxu0 %v4946
    %5606 = vmatprep.subr.bf16.mxu0 %v4943
    %5607 = vmatpush1.bf16.msra.mxu0 %v4942
    %5608 = vmatprep.subr.bf16.mxu0 %v4939
    %5609 = vmatpush1.bf16.msra.mxu0 %v4938
    %5610 = vmatprep.subr.bf16.mxu0 %v4935
    %5611 = vmatpush1.bf16.msra.mxu0 %v4934
    %5612 = vmatprep.subr.bf16.mxu0 %v4931
    %5613 = vmatpush1.bf16.msra.mxu0 %v4930
    %5614 = vmatprep.subr.bf16.mxu0 %v4927
    %5615 = vmatpush1.bf16.msra.mxu0 %v4926
    %5616 = vmatprep.subr.bf16.mxu0 %v4987
    %5617 = vmatpush2.bf16.msra.mxu0 %v4986
    %5618 = vmatprep.subr.bf16.mxu0 %v4983
    %5619 = vmatpush2.bf16.msra.mxu0 %v4982
    %5620 = vmatprep.subr.bf16.mxu0 %v4979
    %5621 = vmatpush2.bf16.msra.mxu0 %v4978
    %5622 = vmatprep.subr.bf16.mxu0 %v4975
    %5623 = vmatpush2.bf16.msra.mxu0 %v4974
    %5624 = vmatprep.subr.bf16.mxu0 %v4971
    %5625 = vmatpush2.bf16.msra.mxu0 %v4970
    %5626 = vmatprep.subr.bf16.mxu0 %v4967
    %5627 = vmatpush2.bf16.msra.mxu0 %v4966
    %5628 = vmatprep.subr.bf16.mxu0 %v4963
    %5629 = vmatpush2.bf16.msra.mxu0 %v4962
    %5630 = vmatprep.subr.bf16.mxu0 %v4959
    %5631 = vmatpush2.bf16.msra.mxu0 %v4958
    %5632 = vmatprep.mubr.bf16.mxu0 %v133
    %5633 = vmatmul.mubr.bf16.gmra.mxu0 %v132
    %v5634 = vpop.f32.mrf.mxu0
    %v5635 = vadd.f32 %v4150, %v5634
    %v5636 = vpop.f32.mrf.mxu0
    %v5637 = vadd.f32 %v4152, %v5636
    %v5638 = vpop.f32.mrf.mxu0
    %v5639 = vpop.f32.mrf.mxu0
    %5640 = vdwg.mxu0
    %5641 = vmatprep.subr.bf16.mxu0 %v5019
    %5642 = vmatpush1.bf16.msra.mxu0 %v5018
    %5643 = vmatprep.subr.bf16.mxu0 %v5015
    %5644 = vmatpush1.bf16.msra.mxu0 %v5014
    %5645 = vmatprep.subr.bf16.mxu0 %v5011
    %5646 = vmatpush1.bf16.msra.mxu0 %v5010
    %5647 = vmatprep.subr.bf16.mxu0 %v5007
    %5648 = vmatpush1.bf16.msra.mxu0 %v5006
    %5649 = vmatprep.subr.bf16.mxu0 %v5003
    %5650 = vmatpush1.bf16.msra.mxu0 %v5002
    %5651 = vmatprep.subr.bf16.mxu0 %v4999
    %5652 = vmatpush1.bf16.msra.mxu0 %v4998
    %5653 = vmatprep.subr.bf16.mxu0 %v4995
    %5654 = vmatpush1.bf16.msra.mxu0 %v4994
    %5655 = vmatprep.subr.bf16.mxu0 %v4991
    %5656 = vmatpush1.bf16.msra.mxu0 %v4990
    %5657 = vmatprep.subr.bf16.mxu0 %v5051
    %5658 = vmatpush2.bf16.msra.mxu0 %v5050
    %5659 = vmatprep.subr.bf16.mxu0 %v5047
    %5660 = vmatpush2.bf16.msra.mxu0 %v5046
    %5661 = vmatprep.subr.bf16.mxu0 %v5043
    %5662 = vmatpush2.bf16.msra.mxu0 %v5042
    %5663 = vmatprep.subr.bf16.mxu0 %v5039
    %5664 = vmatpush2.bf16.msra.mxu0 %v5038
    %5665 = vmatprep.subr.bf16.mxu0 %v5035
    %5666 = vmatpush2.bf16.msra.mxu0 %v5034
    %5667 = vmatprep.subr.bf16.mxu0 %v5031
    %5668 = vmatpush2.bf16.msra.mxu0 %v5030
    %5669 = vmatprep.subr.bf16.mxu0 %v5027
    %5670 = vmatpush2.bf16.msra.mxu0 %v5026
    %5671 = vmatprep.subr.bf16.mxu0 %v5023
    %5672 = vmatpush2.bf16.msra.mxu0 %v5022
    %5673 = vmatprep.mubr.bf16.mxu0 %v135
    %5674 = vmatmul.mubr.bf16.gmra.mxu0 %v134
    %v5675 = vpop.f32.mrf.mxu0
    %v5676 = vadd.f32 %v5635, %v5675
    %v5677 = vpop.f32.mrf.mxu0
    %v5678 = vadd.f32 %v5637, %v5677
    %v5679 = vpop.f32.mrf.mxu0
    %v5680 = vpop.f32.mrf.mxu0
    %5681 = vdwg.mxu0
    %5682 = vmatprep.subr.bf16.mxu0 %v5083
    %5683 = vmatpush1.bf16.msra.mxu0 %v5082
    %5684 = vmatprep.subr.bf16.mxu0 %v5079
    %5685 = vmatpush1.bf16.msra.mxu0 %v5078
    %5686 = vmatprep.subr.bf16.mxu0 %v5075
    %5687 = vmatpush1.bf16.msra.mxu0 %v5074
    %5688 = vmatprep.subr.bf16.mxu0 %v5071
    %5689 = vmatpush1.bf16.msra.mxu0 %v5070
    %5690 = vmatprep.subr.bf16.mxu0 %v5067
    %5691 = vmatpush1.bf16.msra.mxu0 %v5066
    %5692 = vmatprep.subr.bf16.mxu0 %v5063
    %5693 = vmatpush1.bf16.msra.mxu0 %v5062
    %5694 = vmatprep.subr.bf16.mxu0 %v5059
    %5695 = vmatpush1.bf16.msra.mxu0 %v5058
    %5696 = vmatprep.subr.bf16.mxu0 %v5055
    %5697 = vmatpush1.bf16.msra.mxu0 %v5054
    %5698 = vmatprep.subr.bf16.mxu0 %v5115
    %5699 = vmatpush2.bf16.msra.mxu0 %v5114
    %5700 = vmatprep.subr.bf16.mxu0 %v5111
    %5701 = vmatpush2.bf16.msra.mxu0 %v5110
    %5702 = vmatprep.subr.bf16.mxu0 %v5107
    %5703 = vmatpush2.bf16.msra.mxu0 %v5106
    %5704 = vmatprep.subr.bf16.mxu0 %v5103
    %5705 = vmatpush2.bf16.msra.mxu0 %v5102
    %5706 = vmatprep.subr.bf16.mxu0 %v5099
    %5707 = vmatpush2.bf16.msra.mxu0 %v5098
    %5708 = vmatprep.subr.bf16.mxu0 %v5095
    %5709 = vmatpush2.bf16.msra.mxu0 %v5094
    %5710 = vmatprep.subr.bf16.mxu0 %v5091
    %5711 = vmatpush2.bf16.msra.mxu0 %v5090
    %5712 = vmatprep.subr.bf16.mxu0 %v5087
    %5713 = vmatpush2.bf16.msra.mxu0 %v5086
    %5714 = vmatprep.mubr.bf16.mxu0 %v137
    %5715 = vmatmul.mubr.bf16.gmra.mxu0 %v136
    %v5716 = vpop.f32.mrf.mxu0
    %v5717 = vadd.f32 %v5676, %v5716
    %v5718 = vpop.f32.mrf.mxu0
    %v5719 = vadd.f32 %v5678, %v5718
    %v5720 = vpop.f32.mrf.mxu0
    %v5721 = vpop.f32.mrf.mxu0
    %5722 = vdwg.mxu0
    %5723 = vmatprep.subr.bf16.mxu0 %v5147
    %5724 = vmatpush1.bf16.msra.mxu0 %v5146
    %5725 = vmatprep.subr.bf16.mxu0 %v5143
    %5726 = vmatpush1.bf16.msra.mxu0 %v5142
    %5727 = vmatprep.subr.bf16.mxu0 %v5139
    %5728 = vmatpush1.bf16.msra.mxu0 %v5138
    %5729 = vmatprep.subr.bf16.mxu0 %v5135
    %5730 = vmatpush1.bf16.msra.mxu0 %v5134
    %5731 = vmatprep.subr.bf16.mxu0 %v5131
    %5732 = vmatpush1.bf16.msra.mxu0 %v5130
    %5733 = vmatprep.subr.bf16.mxu0 %v5127
    %5734 = vmatpush1.bf16.msra.mxu0 %v5126
    %5735 = vmatprep.subr.bf16.mxu0 %v5123
    %5736 = vmatpush1.bf16.msra.mxu0 %v5122
    %5737 = vmatprep.subr.bf16.mxu0 %v5119
    %5738 = vmatpush1.bf16.msra.mxu0 %v5118
    %5739 = vmatprep.subr.bf16.mxu0 %v5179
    %5740 = vmatpush2.bf16.msra.mxu0 %v5178
    %5741 = vmatprep.subr.bf16.mxu0 %v5175
    %5742 = vmatpush2.bf16.msra.mxu0 %v5174
    %5743 = vmatprep.subr.bf16.mxu0 %v5171
    %5744 = vmatpush2.bf16.msra.mxu0 %v5170
    %5745 = vmatprep.subr.bf16.mxu0 %v5167
    %5746 = vmatpush2.bf16.msra.mxu0 %v5166
    %5747 = vmatprep.subr.bf16.mxu0 %v5163
    %5748 = vmatpush2.bf16.msra.mxu0 %v5162
    %5749 = vmatprep.subr.bf16.mxu0 %v5159
    %5750 = vmatpush2.bf16.msra.mxu0 %v5158
    %5751 = vmatprep.subr.bf16.mxu0 %v5155
    %5752 = vmatpush2.bf16.msra.mxu0 %v5154
    %5753 = vmatprep.subr.bf16.mxu0 %v5151
    %5754 = vmatpush2.bf16.msra.mxu0 %v5150
    %5755 = vmatprep.mubr.bf16.mxu0 %v139
    %5756 = vmatmul.mubr.bf16.gmra.mxu0 %v138
    %v5757 = vpop.f32.mrf.mxu0
    %v5758 = vadd.f32 %v5717, %v5757
    %v5759 = vpop.f32.mrf.mxu0
    %v5760 = vadd.f32 %v5719, %v5759
    %v5761 = vpop.f32.mrf.mxu0
    %v5762 = vpop.f32.mrf.mxu0
    %5763 = vdwg.mxu0
    %v5764 = vld [vmem:[%s2] sm:$0xff]
    %v5765 = vpack.c.bf16 %v5764, %v5764
    %v5766 = vld [vmem:[#allocation10] sm:$0xff]
    %v5767 = vld [vmem:[#allocation10 + $0x8] sm:$0xff]
    %v5768 = vld [vmem:[#allocation10 + $0x10] sm:$0xff]
    %v5769 = vld [vmem:[#allocation10 + $0x18] sm:$0xff]
    %v5770 = vld [vmem:[#allocation10 + $0x20] sm:$0xff]
    %v5771 = vld [vmem:[#allocation10 + $0x28] sm:$0xff]
    %v5772 = vld [vmem:[#allocation10 + $0x30] sm:$0xff]
    %v5773 = vld [vmem:[#allocation10 + $0x38] sm:$0xff]
    %v5774 = vld [vmem:[#allocation10 + $0x40] sm:$0xff]
    %v5775 = vld [vmem:[#allocation10 + $0x48] sm:$0xff]
    %v5776 = vld [vmem:[#allocation10 + $0x50] sm:$0xff]
    %v5777 = vld [vmem:[#allocation10 + $0x58] sm:$0xff]
    %v5778 = vld [vmem:[#allocation10 + $0x60] sm:$0xff]
    %v5779 = vld [vmem:[#allocation10 + $0x68] sm:$0xff]
    %v5780 = vld [vmem:[#allocation10 + $0x70] sm:$0xff]
    %v5781 = vld [vmem:[#allocation10 + $0x78] sm:$0xff]
    %v5782 = vld [vmem:[#allocation10 + $0x80] sm:$0xff]
    %v5783 = vld [vmem:[#allocation10 + $0x88] sm:$0xff]
    %v5784 = vld [vmem:[#allocation10 + $0x90] sm:$0xff]
    %v5785 = vld [vmem:[#allocation10 + $0x98] sm:$0xff]
    %v5786 = vld [vmem:[#allocation10 + $0xa0] sm:$0xff]
    %v5787 = vld [vmem:[#allocation10 + $0xa8] sm:$0xff]
    %v5788 = vld [vmem:[#allocation10 + $0xb0] sm:$0xff]
    %v5789 = vld [vmem:[#allocation10 + $0xb8] sm:$0xff]
    %v5790 = vld [vmem:[#allocation10 + $0xc0] sm:$0xff]
    %v5791 = vld [vmem:[#allocation10 + $0xc8] sm:$0xff]
    %v5792 = vld [vmem:[#allocation10 + $0xd0] sm:$0xff]
    %v5793 = vld [vmem:[#allocation10 + $0xd8] sm:$0xff]
    %v5794 = vld [vmem:[#allocation10 + $0xe0] sm:$0xff]
    %v5795 = vld [vmem:[#allocation10 + $0xe8] sm:$0xff]
    %v5796 = vld [vmem:[#allocation10 + $0xf0] sm:$0xff]
    %v5797 = vld [vmem:[#allocation10 + $0xf8] sm:$0xff]
    %v5830 = vunpack.c.l.b16 %v5766
    %v5831 = vunpack.c.h.b16 %v5766
    %v5832 = vunpack.c.l.b16 %v5767
    %v5833 = vunpack.c.h.b16 %v5767
    %v5834 = vunpack.c.l.b16 %v5768
    %v5835 = vunpack.c.h.b16 %v5768
    %v5836 = vunpack.c.l.b16 %v5769
    %v5837 = vunpack.c.h.b16 %v5769
    %v5838 = vunpack.c.l.b16 %v5770
    %v5839 = vunpack.c.h.b16 %v5770
    %v5840 = vunpack.c.l.b16 %v5771
    %v5841 = vunpack.c.h.b16 %v5771
    %v5842 = vunpack.c.l.b16 %v5772
    %v5843 = vunpack.c.h.b16 %v5772
    %v5844 = vunpack.c.l.b16 %v5773
    %v5845 = vunpack.c.h.b16 %v5773
    %v5846 = vunpack.c.l.b16 %v5774
    %v5847 = vunpack.c.h.b16 %v5774
    %v5848 = vunpack.c.l.b16 %v5775
    %v5849 = vunpack.c.h.b16 %v5775
    %v5850 = vunpack.c.l.b16 %v5776
    %v5851 = vunpack.c.h.b16 %v5776
    %v5852 = vunpack.c.l.b16 %v5777
    %v5853 = vunpack.c.h.b16 %v5777
    %v5854 = vunpack.c.l.b16 %v5778
    %v5855 = vunpack.c.h.b16 %v5778
    %v5856 = vunpack.c.l.b16 %v5779
    %v5857 = vunpack.c.h.b16 %v5779
    %v5858 = vunpack.c.l.b16 %v5780
    %v5859 = vunpack.c.h.b16 %v5780
    %v5860 = vunpack.c.l.b16 %v5781
    %v5861 = vunpack.c.h.b16 %v5781
    %v5862 = vunpack.c.l.b16 %v5782
    %v5863 = vunpack.c.h.b16 %v5782
    %v5864 = vunpack.c.l.b16 %v5783
    %v5865 = vunpack.c.h.b16 %v5783
    %v5866 = vunpack.c.l.b16 %v5784
    %v5867 = vunpack.c.h.b16 %v5784
    %v5868 = vunpack.c.l.b16 %v5785
    %v5869 = vunpack.c.h.b16 %v5785
    %v5870 = vunpack.c.l.b16 %v5786
    %v5871 = vunpack.c.h.b16 %v5786
    %v5872 = vunpack.c.l.b16 %v5787
    %v5873 = vunpack.c.h.b16 %v5787
    %v5874 = vunpack.c.l.b16 %v5788
    %v5875 = vunpack.c.h.b16 %v5788
    %v5876 = vunpack.c.l.b16 %v5789
    %v5877 = vunpack.c.h.b16 %v5789
    %v5878 = vunpack.c.l.b16 %v5790
    %v5879 = vunpack.c.h.b16 %v5790
    %v5880 = vunpack.c.l.b16 %v5791
    %v5881 = vunpack.c.h.b16 %v5791
    %v5882 = vunpack.c.l.b16 %v5792
    %v5883 = vunpack.c.h.b16 %v5792
    %v5884 = vunpack.c.l.b16 %v5793
    %v5885 = vunpack.c.h.b16 %v5793
    %v5886 = vunpack.c.l.b16 %v5794
    %v5887 = vunpack.c.h.b16 %v5794
    %v5888 = vunpack.c.l.b16 %v5795
    %v5889 = vunpack.c.h.b16 %v5795
    %v5890 = vunpack.c.l.b16 %v5796
    %v5891 = vunpack.c.h.b16 %v5796
    %v5892 = vunpack.c.l.b16 %v5797
    %v5893 = vunpack.c.h.b16 %v5797
    %v5894 = vpack.c.b16 %v5834, %v5830
    %v5895 = vpack.c.b16 %v5835, %v5831
    %v5896 = vpack.c.b16 %v5836, %v5832
    %v5897 = vpack.c.b16 %v5837, %v5833
    %v5898 = vpack.c.b16 %v5842, %v5838
    %v5899 = vpack.c.b16 %v5843, %v5839
    %v5900 = vpack.c.b16 %v5844, %v5840
    %v5901 = vpack.c.b16 %v5845, %v5841
    %v5902 = vpack.c.b16 %v5850, %v5846
    %v5903 = vpack.c.b16 %v5851, %v5847
    %v5904 = vpack.c.b16 %v5852, %v5848
    %v5905 = vpack.c.b16 %v5853, %v5849
    %v5906 = vpack.c.b16 %v5858, %v5854
    %v5907 = vpack.c.b16 %v5859, %v5855
    %v5908 = vpack.c.b16 %v5860, %v5856
    %v5909 = vpack.c.b16 %v5861, %v5857
    %v5910 = vpack.c.b16 %v5866, %v5862
    %v5911 = vpack.c.b16 %v5867, %v5863
    %v5912 = vpack.c.b16 %v5868, %v5864
    %v5913 = vpack.c.b16 %v5869, %v5865
    %v5914 = vpack.c.b16 %v5874, %v5870
    %v5915 = vpack.c.b16 %v5875, %v5871
    %v5916 = vpack.c.b16 %v5876, %v5872
    %v5917 = vpack.c.b16 %v5877, %v5873
    %v5918 = vpack.c.b16 %v5882, %v5878
    %v5919 = vpack.c.b16 %v5883, %v5879
    %v5920 = vpack.c.b16 %v5884, %v5880
    %v5921 = vpack.c.b16 %v5885, %v5881
    %v5922 = vpack.c.b16 %v5890, %v5886
    %v5923 = vpack.c.b16 %v5891, %v5887
    %v5924 = vpack.c.b16 %v5892, %v5888
    %v5925 = vpack.c.b16 %v5893, %v5889
    %5958 = vmatprep.subr.bf16.mxu0 %v5923
    %5959 = vmatpush1.bf16.msra.mxu0 %v5922
    %5960 = vmatprep.subr.bf16.mxu0 %v5919
    %5961 = vmatpush1.bf16.msra.mxu0 %v5918
    %5962 = vmatprep.subr.bf16.mxu0 %v5915
    %5963 = vmatpush1.bf16.msra.mxu0 %v5914
    %5964 = vmatprep.subr.bf16.mxu0 %v5911
    %5965 = vmatpush1.bf16.msra.mxu0 %v5910
    %5966 = vmatprep.subr.bf16.mxu0 %v5907
    %5967 = vmatpush1.bf16.msra.mxu0 %v5906
    %5968 = vmatprep.subr.bf16.mxu0 %v5903
    %5969 = vmatpush1.bf16.msra.mxu0 %v5902
    %5970 = vmatprep.subr.bf16.mxu0 %v5899
    %5971 = vmatpush1.bf16.msra.mxu0 %v5898
    %5972 = vmatprep.subr.bf16.mxu0 %v5895
    %5973 = vmatpush1.bf16.msra.mxu0 %v5894
    %5974 = vmatprep.subr.bf16.mxu0 0
    %5975 = vmatpush2.bf16.msra.mxu0 0
    %5976 = vmatprep.subr.bf16.mxu0 0
    %5977 = vmatpush2.bf16.msra.mxu0 0
    %5978 = vmatprep.subr.bf16.mxu0 0
    %5979 = vmatpush2.bf16.msra.mxu0 0
    %5980 = vmatprep.subr.bf16.mxu0 0
    %5981 = vmatpush2.bf16.msra.mxu0 0
    %5982 = vmatprep.subr.bf16.mxu0 0
    %5983 = vmatpush2.bf16.msra.mxu0 0
    %5984 = vmatprep.subr.bf16.mxu0 0
    %5985 = vmatpush2.bf16.msra.mxu0 0
    %5986 = vmatprep.subr.bf16.mxu0 0
    %5987 = vmatpush2.bf16.msra.mxu0 0
    %5988 = vmatprep.subr.bf16.mxu0 0
    %5989 = vmatpush2.bf16.msra.mxu0 0
    %5990 = vmatprep.mubr.bf16.mxu0 0
    %5991 = vmatmul.mubr.bf16.gmra.mxu0 %v5765
    %v5992 = vpop.f32.mrf.mxu0
    %v5993 = vadd.f32 0.0, %v5992
    %v5994 = vpop.f32.mrf.mxu0
    %v5995 = vadd.f32 0.0, %v5994
    %v5996 = vpop.f32.mrf.mxu0
    %v5997 = vpop.f32.mrf.mxu0
    %5998 = vdwg.mxu0
    %5999 = vmatprep.subr.bf16.mxu0 %v5925
    %6000 = vmatpush1.bf16.msra.mxu0 %v5924
    %6001 = vmatprep.subr.bf16.mxu0 %v5921
    %6002 = vmatpush1.bf16.msra.mxu0 %v5920
    %6003 = vmatprep.subr.bf16.mxu0 %v5917
    %6004 = vmatpush1.bf16.msra.mxu0 %v5916
    %6005 = vmatprep.subr.bf16.mxu0 %v5913
    %6006 = vmatpush1.bf16.msra.mxu0 %v5912
    %6007 = vmatprep.subr.bf16.mxu0 %v5909
    %6008 = vmatpush1.bf16.msra.mxu0 %v5908
    %6009 = vmatprep.subr.bf16.mxu0 %v5905
    %6010 = vmatpush1.bf16.msra.mxu0 %v5904
    %6011 = vmatprep.subr.bf16.mxu0 %v5901
    %6012 = vmatpush1.bf16.msra.mxu0 %v5900
    %6013 = vmatprep.subr.bf16.mxu0 %v5897
    %6014 = vmatpush1.bf16.msra.mxu0 %v5896
    %6015 = vmatprep.subr.bf16.mxu0 0
    %6016 = vmatpush2.bf16.msra.mxu0 0
    %6017 = vmatprep.subr.bf16.mxu0 0
    %6018 = vmatpush2.bf16.msra.mxu0 0
    %6019 = vmatprep.subr.bf16.mxu0 0
    %6020 = vmatpush2.bf16.msra.mxu0 0
    %6021 = vmatprep.subr.bf16.mxu0 0
    %6022 = vmatpush2.bf16.msra.mxu0 0
    %6023 = vmatprep.subr.bf16.mxu0 0
    %6024 = vmatpush2.bf16.msra.mxu0 0
    %6025 = vmatprep.subr.bf16.mxu0 0
    %6026 = vmatpush2.bf16.msra.mxu0 0
    %6027 = vmatprep.subr.bf16.mxu0 0
    %6028 = vmatpush2.bf16.msra.mxu0 0
    %6029 = vmatprep.subr.bf16.mxu0 0
    %6030 = vmatpush2.bf16.msra.mxu0 0
    %6031 = vmatprep.mubr.bf16.mxu0 0
    %6032 = vmatmul.mubr.bf16.gmra.mxu0 %v5765
    %v6033 = vpop.f32.mrf.mxu0
    %v6034 = vadd.f32 0.0, %v6033
    %v6035 = vpop.f32.mrf.mxu0
    %v6036 = vadd.f32 0.0, %v6035
    %v6037 = vpop.f32.mrf.mxu0
    %v6038 = vpop.f32.mrf.mxu0
    %6039 = vdwg.mxu0
    %v6040 = vadd.f32 %v5594, %v5993
    %v6041 = vadd.f32 %v5596, %v5995
    %v6042 = vadd.f32 %v5758, %v6034
    %v6043 = vadd.f32 %v5760, %v6036
    %v6044 = vld [vmem:[#allocation11] sm:$0xf]
    %v6046 = vlaneseq
    %v6047 = vshrl.u32 %v6046, 7
    %v6048 = vsub.s32 0, %v6047
    %v6049 = vrot.slane %v6044, %v6048
    %v6050 = vlaneseq
    %v6051 = vshrl.u32 %v6050, 7
    %v6052 = vsub.s32 1, %v6051
    %v6053 = vrot.slane %v6044, %v6052
    %v6054 = vlaneseq
    %v6055 = vshrl.u32 %v6054, 7
    %v6056 = vsub.s32 2, %v6055
    %v6057 = vrot.slane %v6044, %v6056
    %v6058 = vlaneseq
    %v6059 = vshrl.u32 %v6058, 7
    %v6060 = vsub.s32 3, %v6059
    %v6061 = vrot.slane %v6044, %v6060
    %v6066 = vadd.f32 %v6040, %v6049
    %v6067 = vadd.f32 %v6041, %v6053
    %v6068 = vadd.f32 %v6042, %v6057
    %v6069 = vadd.f32 %v6043, %v6061
    %v6070 = vmax.f32 %v6066, 0.0
    %v6071 = vmax.f32 %v6067, 0.0
    %v6072 = vmax.f32 %v6068, 0.0
    %v6073 = vmax.f32 %v6069, 0.0
    %v6074 = vld [vmem:[#allocation13] sm:$0xf]
    %v6076 = vlaneseq
    %v6077 = vshrl.u32 %v6076, 7
    %v6078 = vsub.s32 0, %v6077
    %v6079 = vrot.slane %v6074, %v6078
    %v6080 = vlaneseq
    %v6081 = vshrl.u32 %v6080, 7
    %v6082 = vsub.s32 1, %v6081
    %v6083 = vrot.slane %v6074, %v6082
    %v6084 = vlaneseq
    %v6085 = vshrl.u32 %v6084, 7
    %v6086 = vsub.s32 2, %v6085
    %v6087 = vrot.slane %v6074, %v6086
    %v6088 = vlaneseq
    %v6089 = vshrl.u32 %v6088, 7
    %v6090 = vsub.s32 3, %v6089
    %v6091 = vrot.slane %v6074, %v6090
    %v6096 = vmul.f32 %v6070, %v6079
    %v6097 = vmul.f32 %v6071, %v6083
    %v6098 = vmul.f32 %v6072, %v6087
    %v6099 = vmul.f32 %v6073, %v6091
    %v6100 = vadd.f32 %v6096, %v6097
    %v6101 = vadd.f32 %v6100, %v6098
    %v6102 = vadd.f32 %v6101, %v6099
    %6103 = vadd.xlane.f32.xlu0 %v6102
    %v6104 = vpop.xlane.xlu0 %6103
    %s6105 = sld [smem:[#allocation2]]
    %v6106 = vstv %s6105
    %v6107 = vadd.f32 %v6104, %v6106
    %v6108 = vld [vmem:[%s9] sm:$0xff]
    %v6109 = vadd.f32 %v6107, %v6108
    %v6110 = vmul.f32 %v6109, 0.5
    %vm6111 = vcmask 7168
    %6112 = vst.msk [vmem:[%s10] sm:$0xff] %vm6111, %v6110
    // Predicated region
    $region70: #{ensemble_forward.1} parent=1 // pred_check
      _
    $region71: #{ensemble_forward.1} parent=1 // pred_check_branch
      %6114 = sbr.rel (0) target = $region73
    $region72: #{ensemble_forward.1} parent=1 // pred_region
      _
    $region73: #{ensemble_forward.1} parent=1 // pred_fallthru
      _
    // Predicated region
    $region74: #{ensemble_forward.1} parent=1 // pred_check
      _
    $region75: #{ensemble_forward.1} parent=1 // pred_check_branch
      %6116 = sbr.rel (0) target = $region77
    $region76: #{ensemble_forward.1} parent=1 // pred_region
      _
    $region77: #{ensemble_forward.1} parent=1 // pred_fallthru
      _
    %6117 = vsyncpa [#allocation4], 1
    %6118 = vsyncpa [#allocation6], 1
    %6119 = vsyncpa [#allocation9], 1
    %6120 = vsyncpa [#allocation12], 1

</llo_original>
